<compile_context>
chip_gen: v7x
topology: tpu7x:2x2x1
jax: 0.10.0
libtpu: 0.0.40
codegen_flags: <defaults>
</compile_context>

<pallas_src>
import jax
import jax.numpy as jnp
from jax.experimental import pallas as pl
from jax.experimental.pallas import tpu as pltpu


def _round_up(x, m):
    return ((x + m - 1) // m) * m


# --------------------------------------------------------------------------
# Fused kernel: LSTM1 -> LSTM2 -> BatchNorm1d (train stats) -> Linear -> Sigmoid
# --------------------------------------------------------------------------
def _fused_kernel(x_ref, wih1_ref, whh1_ref, b1_ref,
                  wih2_ref, whh2_ref, b2_ref,
                  gamma_ref, beta_ref, wcls_ref, bcls_ref,
                  out_ref, h1_sc):
    B, T, F = x_ref.shape
    HP1 = whh1_ref.shape[0]          # layer-1 hidden, padded to 128 lanes
    HP2 = whh2_ref.shape[0]          # layer-2 hidden, padded to 128 lanes

    def gate_update(gates, c, hp):
        # Gate k occupies lanes [k*hp, (k+1)*hp); hp is a multiple of 128, so
        # each slice is a lane-block aligned vreg select.
        i = jax.nn.sigmoid(gates[:, 0 * hp:1 * hp])
        f = jax.nn.sigmoid(gates[:, 1 * hp:2 * hp])
        g = jnp.tanh(gates[:, 2 * hp:3 * hp])
        o = jax.nn.sigmoid(gates[:, 3 * hp:4 * hp])
        c_new = f * c + i * g
        h_new = o * jnp.tanh(c_new)
        return h_new, c_new

    # ---- Layer 1: hoisted input projection (one MXU call for all T steps) ----
    x2d = x_ref[...].reshape(B * T, F)                              # row = b*T + t
    gx1 = jnp.dot(x2d, wih1_ref[...], preferred_element_type=jnp.float32)
    gx1 = (gx1 + b1_ref[...]).reshape(B, T, 4 * HP1)

    h1 = jnp.zeros((B, HP1), jnp.float32)
    c1 = jnp.zeros((B, HP1), jnp.float32)
    for t in range(T):                                              # unrolled (T=8)
        gates = gx1[:, t, :] + jnp.dot(h1, whh1_ref[...],
                                       preferred_element_type=jnp.float32)
        h1, c1 = gate_update(gates, c1, HP1)
        h1_sc[t] = h1                                               # contiguous (B, HP1) write

    # ---- Layer 2: hoisted input projection over the whole hidden sequence ----
    h1_all = h1_sc[...].reshape(T * B, HP1)                         # time-major rows
    gx2 = jnp.dot(h1_all, wih2_ref[...], preferred_element_type=jnp.float32)
    gx2 = (gx2 + b2_ref[...]).reshape(T, B, 4 * HP2)

    h2 = jnp.zeros((B, HP2), jnp.float32)
    c2 = jnp.zeros((B, HP2), jnp.float32)
    for t in range(T):
        gates = gx2[t] + jnp.dot(h2, whh2_ref[...],
                                 preferred_element_type=jnp.float32)
        h2, c2 = gate_update(gates, c2, HP2)

    # ---- Head: BatchNorm1d (biased batch stats, eps=1e-5) + Linear + Sigmoid ----
    h = h2                                                          # (B, HP2); padded lanes == 0
    mean = jnp.mean(h, axis=0, keepdims=True)
    var = jnp.mean((h - mean) ** 2, axis=0, keepdims=True)
    hn = (h - mean) * jax.lax.rsqrt(var + 1e-5)
    hn = hn * gamma_ref[...] + beta_ref[...]                        # padded lanes zeroed by gamma/beta
    logits = jnp.dot(hn, wcls_ref[...],
                     preferred_element_type=jnp.float32) + bcls_ref[...]
    out_ref[...] = jax.nn.sigmoid(logits).astype(out_ref.dtype)


@jax.jit
def lstm_classifier_forward(x, p):
    """x: (B, T, F) batch_first (like the PyTorch module). p: prepare_params(...) output."""
    B, T, F = x.shape
    HP1 = p["whh1"].shape[0]
    C = p["wcls"].shape[1]
    vmem = pl.BlockSpec(memory_space=pltpu.MemorySpace.VMEM)
    return pl.pallas_call(
        _fused_kernel,
        out_shape=jax.ShapeDtypeStruct((B, C), jnp.float32),
        in_specs=[vmem] * 11,
        out_specs=vmem,
        scratch_shapes=[pltpu.VMEM((T, B, HP1), jnp.float32)],   # time-major layer-1 hidden sequence
    )(x.astype(jnp.float32),
      p["wih1"], p["whh1"], p["b1"],
      p["wih2"], p["whh2"], p["b2"],
      p["gamma"], p["beta"], p["wcls"], p["bcls"])


# --------------------------------------------------------------------------
# One-time parameter packing (outside the jitted forward): transpose, fuse the
# two LSTM biases, pad hidden sizes to 128 lanes, give each gate its own
# 128-lane block.
# --------------------------------------------------------------------------
def _pack_gate_weight(w, h, hp, in_dim, in_pad):
    # w: PyTorch layout (4h, in_dim)  ->  (in_pad, 4*hp), gate k at cols [k*hp, k*hp+h)
    wt = jnp.asarray(w, jnp.float32).T                      # (in_dim, 4h)
    out = jnp.zeros((in_pad, 4 * hp), jnp.float32)
    for k in range(4):
        out = out.at[:in_dim, k * hp:k * hp + h].set(wt[:, k * h:(k + 1) * h])
    return out


def _pack_gate_bias(b_ih, b_hh, h, hp):
    b = jnp.asarray(b_ih, jnp.float32) + jnp.asarray(b_hh, jnp.float32)
    out = jnp.zeros((1, 4 * hp), jnp.float32)
    for k in range(4):
        out = out.at[0, k * hp:k * hp + h].set(b[k * h:(k + 1) * h])
    return out


def prepare_params(raw):
    F = raw["w_ih1"].shape[1]
    H1 = raw["w_hh1"].shape[1]
    H2 = raw["w_hh2"].shape[1]
    C = raw["w_cls"].shape[0]
    HP1 = _round_up(H1, 128)
    HP2 = _round_up(H2, 128)
    gamma = jnp.zeros((1, HP2), jnp.float32).at[0, :H2].set(
        jnp.asarray(raw["bn_gamma"], jnp.float32))
    beta = jnp.zeros((1, HP2), jnp.float32).at[0, :H2].set(
        jnp.asarray(raw["bn_beta"], jnp.float32))
    wcls = jnp.zeros((HP2, C), jnp.float32).at[:H2, :].set(
        jnp.asarray(raw["w_cls"], jnp.float32).T)
    return {
        "wih1": _pack_gate_weight(raw["w_ih1"], H1, HP1, F, F),
        "whh1": _pack_gate_weight(raw["w_hh1"], H1, HP1, H1, HP1),
        "b1":   _pack_gate_bias(raw["b_ih1"], raw["b_hh1"], H1, HP1),
        "wih2": _pack_gate_weight(raw["w_ih2"], H2, HP2, H1, HP1),
        "whh2": _pack_gate_weight(raw["w_hh2"], H2, HP2, H2, HP2),
        "b2":   _pack_gate_bias(raw["b_ih2"], raw["b_hh2"], H2, HP2),
        "gamma": gamma,
        "beta": beta,
        "wcls": wcls,
        "bcls": jnp.asarray(raw["b_cls"], jnp.float32).reshape(1, C),
    }


def init_params(key, n_features, n_classes, n_hidden):
    """Deterministic PyTorch-style init (uniform(-1/sqrt(H), 1/sqrt(H))), raw layout."""
    ks = jax.random.split(key, 12)
    h1, h2 = n_hidden * 2, n_hidden
    s1, s2 = 1.0 / jnp.sqrt(h1), 1.0 / jnp.sqrt(h2)
    sc = 1.0 / jnp.sqrt(n_hidden)
    u = lambda k, shape, s: jax.random.uniform(k, shape, jnp.float32, -s, s)
    return {
        "w_ih1": u(ks[0], (4 * h1, n_features), s1),
        "w_hh1": u(ks[1], (4 * h1, h1), s1),
        "b_ih1": u(ks[2], (4 * h1,), s1),
        "b_hh1": u(ks[3], (4 * h1,), s1),
        "w_ih2": u(ks[4], (4 * h2, h1), s2),
        "w_hh2": u(ks[5], (4 * h2, h2), s2),
        "b_ih2": u(ks[6], (4 * h2,), s2),
        "b_hh2": u(ks[7], (4 * h2,), s2),
        "bn_gamma": jnp.ones((n_hidden,), jnp.float32),
        "bn_beta": jnp.zeros((n_hidden,), jnp.float32),
        "w_cls": u(ks[8], (n_classes, n_hidden), sc),
        "b_cls": u(ks[9], (n_classes,), sc),
    }


# --------------------------------------------------------------------------
# Pure-JAX reference (for correctness check)
# --------------------------------------------------------------------------
def _ref_lstm(x_btf, w_ih, w_hh, b_ih, b_hh):
    B, T, F = x_btf.shape
    H = w_ih.shape[0] // 4

    def step(carry, x_t):
        h, c = carry
        gates = x_t @ w_ih.T + h @ w_hh.T + b_ih + b_hh
        i, f, g, o = jnp.split(gates, 4, axis=-1)
        i, f, o = jax.nn.sigmoid(i), jax.nn.sigmoid(f), jax.nn.sigmoid(o)
        g = jnp.tanh(g)
        c = f * c + i * g
        h = o * jnp.tanh(c)
        return (h, c), h

    init = (jnp.zeros((B, H)), jnp.zeros((B, H)))
    (_, _), hs = jax.lax.scan(step, init, jnp.transpose(x_btf, (1, 0, 2)))
    return jnp.transpose(hs, (1, 0, 2))                          # (B, T, H)


def _ref_forward(x, p):
    seq1 = _ref_lstm(x, p["w_ih1"], p["w_hh1"], p["b_ih1"], p["b_hh1"])
    seq2 = _ref_lstm(seq1, p["w_ih2"], p["w_hh2"], p["b_ih2"], p["b_hh2"])
    h = seq2[:, -1]
    mean = jnp.mean(h, axis=0, keepdims=True)
    var = jnp.mean((h - mean) ** 2, axis=0, keepdims=True)
    hn = (h - mean) / jnp.sqrt(var + 1e-5) * p["bn_gamma"] + p["bn_beta"]
    return jax.nn.sigmoid(hn @ p["w_cls"].T + p["b_cls"])


if __name__ == "__main__":
    key = jax.random.PRNGKey(0)
    k_param, k_x = jax.random.split(key)

    B, T, F = 2, 8, 13          # batch, seq_len, n_features (ESP data has 13)
    n_hidden, n_classes = 32, 1

    raw_params = init_params(k_param, F, n_classes, n_hidden)
    prepared = prepare_params(raw_params)     # one-time packing, outside the forward
    x = jax.random.normal(k_x, (B, T, F), jnp.float32)

    out = lstm_classifier_forward(x, prepared)
    out = jax.block_until_ready(out)

    ref = _ref_forward(x, raw_params)
    assert out.shape == (B, n_classes), out.shape
    assert jnp.allclose(out, ref, rtol=1e-4, atol=1e-5), (out, ref)

    print("KERNEL_OK")
</pallas_src>

<mosaic_0001>
module attributes {stable_mosaic.version = 11 : i64} {
  func.func @_fused_kernel(%arg0: memref<2x8x13xf32, #tpu.memory_space<vmem>>, %arg1: memref<13x512xf32, #tpu.memory_space<vmem>>, %arg2: memref<128x512xf32, #tpu.memory_space<vmem>>, %arg3: memref<1x512xf32, #tpu.memory_space<vmem>>, %arg4: memref<128x512xf32, #tpu.memory_space<vmem>>, %arg5: memref<128x512xf32, #tpu.memory_space<vmem>>, %arg6: memref<1x512xf32, #tpu.memory_space<vmem>>, %arg7: memref<1x128xf32, #tpu.memory_space<vmem>>, %arg8: memref<1x128xf32, #tpu.memory_space<vmem>>, %arg9: memref<128x1xf32, #tpu.memory_space<vmem>>, %arg10: memref<1x1xf32, #tpu.memory_space<vmem>>, %arg11: memref<2x1xf32, #tpu.memory_space<vmem>>, %arg12: memref<8x2x128xf32, #tpu.memory_space<vmem>>) attributes {dimension_semantics = [], scalar_prefetch = 0 : i64, scratch_operands = 1 : i64, tpu.core_type = #tpu.core_type<tc>} {
    %c0 = arith.constant 0 : index
    %c0_0 = arith.constant 0 : index
    %c0_1 = arith.constant 0 : index
    %0 = vector.load %arg0[%c0, %c0_0, %c0_1] : memref<2x8x13xf32, #tpu.memory_space<vmem>>, vector<2x8x13xf32>
    %1 = vector.shape_cast %0 : vector<2x8x13xf32> to vector<16x13xf32>
    %c0_2 = arith.constant 0 : index
    %c0_3 = arith.constant 0 : index
    %2 = vector.load %arg1[%c0_2, %c0_3] : memref<13x512xf32, #tpu.memory_space<vmem>>, vector<13x512xf32>
    %cst = arith.constant dense<0.000000e+00> : vector<16x512xf32>
    %3 = tpu.matmul %1, %2, %cst {dimension_numbers = #tpu.dot_dimension_numbers<[1], [0], [0], [1], [0, 0, 1, 1], [], []>} : vector<16x13xf32>, vector<13x512xf32>, vector<16x512xf32> -> vector<16x512xf32>
    %c0_4 = arith.constant 0 : index
    %c0_5 = arith.constant 0 : index
    %4 = vector.load %arg3[%c0_4, %c0_5] : memref<1x512xf32, #tpu.memory_space<vmem>>, vector<1x512xf32>
    %5 = vector.broadcast %4 : vector<1x512xf32> to vector<16x512xf32>
    %6 = arith.addf %3, %5 : vector<16x512xf32>
    %7 = vector.shape_cast %6 : vector<16x512xf32> to vector<2x8x512xf32>
    %cst_6 = arith.constant 0.000000e+00 : f32
    %8 = vector.broadcast %cst_6 : f32 to vector<2x128xf32>
    %cst_7 = arith.constant 0.000000e+00 : f32
    %9 = vector.broadcast %cst_7 : f32 to vector<2x128xf32>
    %10 = vector.extract_strided_slice %7 {offsets = [0, 0, 0], sizes = [2, 1, 512], strides = [1, 1, 1]} : vector<2x8x512xf32> to vector<2x1x512xf32>
    %11 = vector.shape_cast %10 : vector<2x1x512xf32> to vector<2x512xf32>
    %c0_8 = arith.constant 0 : index
    %c0_9 = arith.constant 0 : index
    %12 = vector.load %arg2[%c0_8, %c0_9] : memref<128x512xf32, #tpu.memory_space<vmem>>, vector<128x512xf32>
    %cst_10 = arith.constant dense<0.000000e+00> : vector<2x512xf32>
    %13 = tpu.matmul %8, %12, %cst_10 {dimension_numbers = #tpu.dot_dimension_numbers<[1], [0], [0], [1], [0, 0, 1, 1], [], []>} : vector<2x128xf32>, vector<128x512xf32>, vector<2x512xf32> -> vector<2x512xf32>
    %14 = arith.addf %11, %13 : vector<2x512xf32>
    %15 = vector.extract_strided_slice %14 {offsets = [0, 0], sizes = [2, 128], strides = [1, 1]} : vector<2x512xf32> to vector<2x128xf32>
    %16 = arith.negf %15 : vector<2x128xf32>
    %17 = math.exp %16 : vector<2x128xf32>
    %cst_11 = arith.constant 1.000000e+00 : f32
    %18 = vector.broadcast %cst_11 : f32 to vector<2x128xf32>
    %19 = arith.addf %18, %17 : vector<2x128xf32>
    %20 = arith.divf %18, %19 : vector<2x128xf32>
    %21 = vector.extract_strided_slice %14 {offsets = [0, 128], sizes = [2, 128], strides = [1, 1]} : vector<2x512xf32> to vector<2x128xf32>
    %22 = arith.negf %21 : vector<2x128xf32>
    %23 = math.exp %22 : vector<2x128xf32>
    %cst_12 = arith.constant 1.000000e+00 : f32
    %24 = vector.broadcast %cst_12 : f32 to vector<2x128xf32>
    %25 = arith.addf %24, %23 : vector<2x128xf32>
    %26 = arith.divf %24, %25 : vector<2x128xf32>
    %27 = vector.extract_strided_slice %14 {offsets = [0, 256], sizes = [2, 128], strides = [1, 1]} : vector<2x512xf32> to vector<2x128xf32>
    %28 = math.tanh %27 : vector<2x128xf32>
    %29 = vector.extract_strided_slice %14 {offsets = [0, 384], sizes = [2, 128], strides = [1, 1]} : vector<2x512xf32> to vector<2x128xf32>
    %30 = arith.negf %29 : vector<2x128xf32>
    %31 = math.exp %30 : vector<2x128xf32>
    %cst_13 = arith.constant 1.000000e+00 : f32
    %32 = vector.broadcast %cst_13 : f32 to vector<2x128xf32>
    %33 = arith.addf %32, %31 : vector<2x128xf32>
    %34 = arith.divf %32, %33 : vector<2x128xf32>
    %35 = arith.mulf %26, %9 : vector<2x128xf32>
    %36 = arith.mulf %20, %28 : vector<2x128xf32>
    %37 = arith.addf %35, %36 : vector<2x128xf32>
    %38 = math.tanh %37 : vector<2x128xf32>
    %39 = arith.mulf %34, %38 : vector<2x128xf32>
    %c0_14 = arith.constant 0 : index
    %c0_15 = arith.constant 0 : index
    %c0_16 = arith.constant 0 : index
    %40 = vector.load %arg12[%c0_14, %c0_15, %c0_16] : memref<8x2x128xf32, #tpu.memory_space<vmem>>, vector<1x2x128xf32>
    %41 = vector.shape_cast %40 : vector<1x2x128xf32> to vector<2x128xf32>
    %42 = vector.shape_cast %39 : vector<2x128xf32> to vector<1x2x128xf32>
    tpu.vector_store %arg12[%c0_14, %c0_15, %c0_16], %42 {strides = array<i32>} : memref<8x2x128xf32, #tpu.memory_space<vmem>>, vector<1x2x128xf32>,
    %43 = vector.extract_strided_slice %7 {offsets = [0, 1, 0], sizes = [2, 1, 512], strides = [1, 1, 1]} : vector<2x8x512xf32> to vector<2x1x512xf32>
    %44 = vector.shape_cast %43 : vector<2x1x512xf32> to vector<2x512xf32>
    %c0_17 = arith.constant 0 : index
    %c0_18 = arith.constant 0 : index
    %45 = vector.load %arg2[%c0_17, %c0_18] : memref<128x512xf32, #tpu.memory_space<vmem>>, vector<128x512xf32>
    %cst_19 = arith.constant dense<0.000000e+00> : vector<2x512xf32>
    %46 = tpu.matmul %39, %45, %cst_19 {dimension_numbers = #tpu.dot_dimension_numbers<[1], [0], [0], [1], [0, 0, 1, 1], [], []>} : vector<2x128xf32>, vector<128x512xf32>, vector<2x512xf32> -> vector<2x512xf32>
    %47 = arith.addf %44, %46 : vector<2x512xf32>
    %48 = vector.extract_strided_slice %47 {offsets = [0, 0], sizes = [2, 128], strides = [1, 1]} : vector<2x512xf32> to vector<2x128xf32>
    %49 = arith.negf %48 : vector<2x128xf32>
    %50 = math.exp %49 : vector<2x128xf32>
    %cst_20 = arith.constant 1.000000e+00 : f32
    %51 = vector.broadcast %cst_20 : f32 to vector<2x128xf32>
    %52 = arith.addf %51, %50 : vector<2x128xf32>
    %53 = arith.divf %51, %52 : vector<2x128xf32>
    %54 = vector.extract_strided_slice %47 {offsets = [0, 128], sizes = [2, 128], strides = [1, 1]} : vector<2x512xf32> to vector<2x128xf32>
    %55 = arith.negf %54 : vector<2x128xf32>
    %56 = math.exp %55 : vector<2x128xf32>
    %cst_21 = arith.constant 1.000000e+00 : f32
    %57 = vector.broadcast %cst_21 : f32 to vector<2x128xf32>
    %58 = arith.addf %57, %56 : vector<2x128xf32>
    %59 = arith.divf %57, %58 : vector<2x128xf32>
    %60 = vector.extract_strided_slice %47 {offsets = [0, 256], sizes = [2, 128], strides = [1, 1]} : vector<2x512xf32> to vector<2x128xf32>
    %61 = math.tanh %60 : vector<2x128xf32>
    %62 = vector.extract_strided_slice %47 {offsets = [0, 384], sizes = [2, 128], strides = [1, 1]} : vector<2x512xf32> to vector<2x128xf32>
    %63 = arith.negf %62 : vector<2x128xf32>
    %64 = math.exp %63 : vector<2x128xf32>
    %cst_22 = arith.constant 1.000000e+00 : f32
    %65 = vector.broadcast %cst_22 : f32 to vector<2x128xf32>
    %66 = arith.addf %65, %64 : vector<2x128xf32>
    %67 = arith.divf %65, %66 : vector<2x128xf32>
    %68 = arith.mulf %59, %37 : vector<2x128xf32>
    %69 = arith.mulf %53, %61 : vector<2x128xf32>
    %70 = arith.addf %68, %69 : vector<2x128xf32>
    %71 = math.tanh %70 : vector<2x128xf32>
    %72 = arith.mulf %67, %71 : vector<2x128xf32>
    %c1 = arith.constant 1 : index
    %c0_23 = arith.constant 0 : index
    %c0_24 = arith.constant 0 : index
    %73 = vector.load %arg12[%c1, %c0_23, %c0_24] : memref<8x2x128xf32, #tpu.memory_space<vmem>>, vector<1x2x128xf32>
    %74 = vector.shape_cast %73 : vector<1x2x128xf32> to vector<2x128xf32>
    %75 = vector.shape_cast %72 : vector<2x128xf32> to vector<1x2x128xf32>
    tpu.vector_store %arg12[%c1, %c0_23, %c0_24], %75 {strides = array<i32>} : memref<8x2x128xf32, #tpu.memory_space<vmem>>, vector<1x2x128xf32>,
    %76 = vector.extract_strided_slice %7 {offsets = [0, 2, 0], sizes = [2, 1, 512], strides = [1, 1, 1]} : vector<2x8x512xf32> to vector<2x1x512xf32>
    %77 = vector.shape_cast %76 : vector<2x1x512xf32> to vector<2x512xf32>
    %c0_25 = arith.constant 0 : index
    %c0_26 = arith.constant 0 : index
    %78 = vector.load %arg2[%c0_25, %c0_26] : memref<128x512xf32, #tpu.memory_space<vmem>>, vector<128x512xf32>
    %cst_27 = arith.constant dense<0.000000e+00> : vector<2x512xf32>
    %79 = tpu.matmul %72, %78, %cst_27 {dimension_numbers = #tpu.dot_dimension_numbers<[1], [0], [0], [1], [0, 0, 1, 1], [], []>} : vector<2x128xf32>, vector<128x512xf32>, vector<2x512xf32> -> vector<2x512xf32>
    %80 = arith.addf %77, %79 : vector<2x512xf32>
    %81 = vector.extract_strided_slice %80 {offsets = [0, 0], sizes = [2, 128], strides = [1, 1]} : vector<2x512xf32> to vector<2x128xf32>
    %82 = arith.negf %81 : vector<2x128xf32>
    %83 = math.exp %82 : vector<2x128xf32>
    %cst_28 = arith.constant 1.000000e+00 : f32
    %84 = vector.broadcast %cst_28 : f32 to vector<2x128xf32>
    %85 = arith.addf %84, %83 : vector<2x128xf32>
    %86 = arith.divf %84, %85 : vector<2x128xf32>
    %87 = vector.extract_strided_slice %80 {offsets = [0, 128], sizes = [2, 128], strides = [1, 1]} : vector<2x512xf32> to vector<2x128xf32>
    %88 = arith.negf %87 : vector<2x128xf32>
    %89 = math.exp %88 : vector<2x128xf32>
    %cst_29 = arith.constant 1.000000e+00 : f32
    %90 = vector.broadcast %cst_29 : f32 to vector<2x128xf32>
    %91 = arith.addf %90, %89 : vector<2x128xf32>
    %92 = arith.divf %90, %91 : vector<2x128xf32>
    %93 = vector.extract_strided_slice %80 {offsets = [0, 256], sizes = [2, 128], strides = [1, 1]} : vector<2x512xf32> to vector<2x128xf32>
    %94 = math.tanh %93 : vector<2x128xf32>
    %95 = vector.extract_strided_slice %80 {offsets = [0, 384], sizes = [2, 128], strides = [1, 1]} : vector<2x512xf32> to vector<2x128xf32>
    %96 = arith.negf %95 : vector<2x128xf32>
    %97 = math.exp %96 : vector<2x128xf32>
    %cst_30 = arith.constant 1.000000e+00 : f32
    %98 = vector.broadcast %cst_30 : f32 to vector<2x128xf32>
    %99 = arith.addf %98, %97 : vector<2x128xf32>
    %100 = arith.divf %98, %99 : vector<2x128xf32>
    %101 = arith.mulf %92, %70 : vector<2x128xf32>
    %102 = arith.mulf %86, %94 : vector<2x128xf32>
    %103 = arith.addf %101, %102 : vector<2x128xf32>
    %104 = math.tanh %103 : vector<2x128xf32>
    %105 = arith.mulf %100, %104 : vector<2x128xf32>
    %c2 = arith.constant 2 : index
    %c0_31 = arith.constant 0 : index
    %c0_32 = arith.constant 0 : index
    %106 = vector.load %arg12[%c2, %c0_31, %c0_32] : memref<8x2x128xf32, #tpu.memory_space<vmem>>, vector<1x2x128xf32>
    %107 = vector.shape_cast %106 : vector<1x2x128xf32> to vector<2x128xf32>
    %108 = vector.shape_cast %105 : vector<2x128xf32> to vector<1x2x128xf32>
    tpu.vector_store %arg12[%c2, %c0_31, %c0_32], %108 {strides = array<i32>} : memref<8x2x128xf32, #tpu.memory_space<vmem>>, vector<1x2x128xf32>,
    %109 = vector.extract_strided_slice %7 {offsets = [0, 3, 0], sizes = [2, 1, 512], strides = [1, 1, 1]} : vector<2x8x512xf32> to vector<2x1x512xf32>
    %110 = vector.shape_cast %109 : vector<2x1x512xf32> to vector<2x512xf32>
    %c0_33 = arith.constant 0 : index
    %c0_34 = arith.constant 0 : index
    %111 = vector.load %arg2[%c0_33, %c0_34] : memref<128x512xf32, #tpu.memory_space<vmem>>, vector<128x512xf32>
    %cst_35 = arith.constant dense<0.000000e+00> : vector<2x512xf32>
    %112 = tpu.matmul %105, %111, %cst_35 {dimension_numbers = #tpu.dot_dimension_numbers<[1], [0], [0], [1], [0, 0, 1, 1], [], []>} : vector<2x128xf32>, vector<128x512xf32>, vector<2x512xf32> -> vector<2x512xf32>
    %113 = arith.addf %110, %112 : vector<2x512xf32>
    %114 = vector.extract_strided_slice %113 {offsets = [0, 0], sizes = [2, 128], strides = [1, 1]} : vector<2x512xf32> to vector<2x128xf32>
    %115 = arith.negf %114 : vector<2x128xf32>
    %116 = math.exp %115 : vector<2x128xf32>
    %cst_36 = arith.constant 1.000000e+00 : f32
    %117 = vector.broadcast %cst_36 : f32 to vector<2x128xf32>
    %118 = arith.addf %117, %116 : vector<2x128xf32>
    %119 = arith.divf %117, %118 : vector<2x128xf32>
    %120 = vector.extract_strided_slice %113 {offsets = [0, 128], sizes = [2, 128], strides = [1, 1]} : vector<2x512xf32> to vector<2x128xf32>
    %121 = arith.negf %120 : vector<2x128xf32>
    %122 = math.exp %121 : vector<2x128xf32>
    %cst_37 = arith.constant 1.000000e+00 : f32
    %123 = vector.broadcast %cst_37 : f32 to vector<2x128xf32>
    %124 = arith.addf %123, %122 : vector<2x128xf32>
    %125 = arith.divf %123, %124 : vector<2x128xf32>
    %126 = vector.extract_strided_slice %113 {offsets = [0, 256], sizes = [2, 128], strides = [1, 1]} : vector<2x512xf32> to vector<2x128xf32>
    %127 = math.tanh %126 : vector<2x128xf32>
    %128 = vector.extract_strided_slice %113 {offsets = [0, 384], sizes = [2, 128], strides = [1, 1]} : vector<2x512xf32> to vector<2x128xf32>
    %129 = arith.negf %128 : vector<2x128xf32>
    %130 = math.exp %129 : vector<2x128xf32>
    %cst_38 = arith.constant 1.000000e+00 : f32
    %131 = vector.broadcast %cst_38 : f32 to vector<2x128xf32>
    %132 = arith.addf %131, %130 : vector<2x128xf32>
    %133 = arith.divf %131, %132 : vector<2x128xf32>
    %134 = arith.mulf %125, %103 : vector<2x128xf32>
    %135 = arith.mulf %119, %127 : vector<2x128xf32>
    %136 = arith.addf %134, %135 : vector<2x128xf32>
    %137 = math.tanh %136 : vector<2x128xf32>
    %138 = arith.mulf %133, %137 : vector<2x128xf32>
    %c3 = arith.constant 3 : index
    %c0_39 = arith.constant 0 : index
    %c0_40 = arith.constant 0 : index
    %139 = vector.load %arg12[%c3, %c0_39, %c0_40] : memref<8x2x128xf32, #tpu.memory_space<vmem>>, vector<1x2x128xf32>
    %140 = vector.shape_cast %139 : vector<1x2x128xf32> to vector<2x128xf32>
    %141 = vector.shape_cast %138 : vector<2x128xf32> to vector<1x2x128xf32>
    tpu.vector_store %arg12[%c3, %c0_39, %c0_40], %141 {strides = array<i32>} : memref<8x2x128xf32, #tpu.memory_space<vmem>>, vector<1x2x128xf32>,
    %142 = vector.extract_strided_slice %7 {offsets = [0, 4, 0], sizes = [2, 1, 512], strides = [1, 1, 1]} : vector<2x8x512xf32> to vector<2x1x512xf32>
    %143 = vector.shape_cast %142 : vector<2x1x512xf32> to vector<2x512xf32>
    %c0_41 = arith.constant 0 : index
    %c0_42 = arith.constant 0 : index
    %144 = vector.load %arg2[%c0_41, %c0_42] : memref<128x512xf32, #tpu.memory_space<vmem>>, vector<128x512xf32>
    %cst_43 = arith.constant dense<0.000000e+00> : vector<2x512xf32>
    %145 = tpu.matmul %138, %144, %cst_43 {dimension_numbers = #tpu.dot_dimension_numbers<[1], [0], [0], [1], [0, 0, 1, 1], [], []>} : vector<2x128xf32>, vector<128x512xf32>, vector<2x512xf32> -> vector<2x512xf32>
    %146 = arith.addf %143, %145 : vector<2x512xf32>
    %147 = vector.extract_strided_slice %146 {offsets = [0, 0], sizes = [2, 128], strides = [1, 1]} : vector<2x512xf32> to vector<2x128xf32>
    %148 = arith.negf %147 : vector<2x128xf32>
    %149 = math.exp %148 : vector<2x128xf32>
    %cst_44 = arith.constant 1.000000e+00 : f32
    %150 = vector.broadcast %cst_44 : f32 to vector<2x128xf32>
    %151 = arith.addf %150, %149 : vector<2x128xf32>
    %152 = arith.divf %150, %151 : vector<2x128xf32>
    %153 = vector.extract_strided_slice %146 {offsets = [0, 128], sizes = [2, 128], strides = [1, 1]} : vector<2x512xf32> to vector<2x128xf32>
    %154 = arith.negf %153 : vector<2x128xf32>
    %155 = math.exp %154 : vector<2x128xf32>
    %cst_45 = arith.constant 1.000000e+00 : f32
    %156 = vector.broadcast %cst_45 : f32 to vector<2x128xf32>
    %157 = arith.addf %156, %155 : vector<2x128xf32>
    %158 = arith.divf %156, %157 : vector<2x128xf32>
    %159 = vector.extract_strided_slice %146 {offsets = [0, 256], sizes = [2, 128], strides = [1, 1]} : vector<2x512xf32> to vector<2x128xf32>
    %160 = math.tanh %159 : vector<2x128xf32>
    %161 = vector.extract_strided_slice %146 {offsets = [0, 384], sizes = [2, 128], strides = [1, 1]} : vector<2x512xf32> to vector<2x128xf32>
    %162 = arith.negf %161 : vector<2x128xf32>
    %163 = math.exp %162 : vector<2x128xf32>
    %cst_46 = arith.constant 1.000000e+00 : f32
    %164 = vector.broadcast %cst_46 : f32 to vector<2x128xf32>
    %165 = arith.addf %164, %163 : vector<2x128xf32>
    %166 = arith.divf %164, %165 : vector<2x128xf32>
    %167 = arith.mulf %158, %136 : vector<2x128xf32>
    %168 = arith.mulf %152, %160 : vector<2x128xf32>
    %169 = arith.addf %167, %168 : vector<2x128xf32>
    %170 = math.tanh %169 : vector<2x128xf32>
    %171 = arith.mulf %166, %170 : vector<2x128xf32>
    %c4 = arith.constant 4 : index
    %c0_47 = arith.constant 0 : index
    %c0_48 = arith.constant 0 : index
    %172 = vector.load %arg12[%c4, %c0_47, %c0_48] : memref<8x2x128xf32, #tpu.memory_space<vmem>>, vector<1x2x128xf32>
    %173 = vector.shape_cast %172 : vector<1x2x128xf32> to vector<2x128xf32>
    %174 = vector.shape_cast %171 : vector<2x128xf32> to vector<1x2x128xf32>
    tpu.vector_store %arg12[%c4, %c0_47, %c0_48], %174 {strides = array<i32>} : memref<8x2x128xf32, #tpu.memory_space<vmem>>, vector<1x2x128xf32>,
    %175 = vector.extract_strided_slice %7 {offsets = [0, 5, 0], sizes = [2, 1, 512], strides = [1, 1, 1]} : vector<2x8x512xf32> to vector<2x1x512xf32>
    %176 = vector.shape_cast %175 : vector<2x1x512xf32> to vector<2x512xf32>
    %c0_49 = arith.constant 0 : index
    %c0_50 = arith.constant 0 : index
    %177 = vector.load %arg2[%c0_49, %c0_50] : memref<128x512xf32, #tpu.memory_space<vmem>>, vector<128x512xf32>
    %cst_51 = arith.constant dense<0.000000e+00> : vector<2x512xf32>
    %178 = tpu.matmul %171, %177, %cst_51 {dimension_numbers = #tpu.dot_dimension_numbers<[1], [0], [0], [1], [0, 0, 1, 1], [], []>} : vector<2x128xf32>, vector<128x512xf32>, vector<2x512xf32> -> vector<2x512xf32>
    %179 = arith.addf %176, %178 : vector<2x512xf32>
    %180 = vector.extract_strided_slice %179 {offsets = [0, 0], sizes = [2, 128], strides = [1, 1]} : vector<2x512xf32> to vector<2x128xf32>
    %181 = arith.negf %180 : vector<2x128xf32>
    %182 = math.exp %181 : vector<2x128xf32>
    %cst_52 = arith.constant 1.000000e+00 : f32
    %183 = vector.broadcast %cst_52 : f32 to vector<2x128xf32>
    %184 = arith.addf %183, %182 : vector<2x128xf32>
    %185 = arith.divf %183, %184 : vector<2x128xf32>
    %186 = vector.extract_strided_slice %179 {offsets = [0, 128], sizes = [2, 128], strides = [1, 1]} : vector<2x512xf32> to vector<2x128xf32>
    %187 = arith.negf %186 : vector<2x128xf32>
    %188 = math.exp %187 : vector<2x128xf32>
    %cst_53 = arith.constant 1.000000e+00 : f32
    %189 = vector.broadcast %cst_53 : f32 to vector<2x128xf32>
    %190 = arith.addf %189, %188 : vector<2x128xf32>
    %191 = arith.divf %189, %190 : vector<2x128xf32>
    %192 = vector.extract_strided_slice %179 {offsets = [0, 256], sizes = [2, 128], strides = [1, 1]} : vector<2x512xf32> to vector<2x128xf32>
    %193 = math.tanh %192 : vector<2x128xf32>
    %194 = vector.extract_strided_slice %179 {offsets = [0, 384], sizes = [2, 128], strides = [1, 1]} : vector<2x512xf32> to vector<2x128xf32>
    %195 = arith.negf %194 : vector<2x128xf32>
    %196 = math.exp %195 : vector<2x128xf32>
    %cst_54 = arith.constant 1.000000e+00 : f32
    %197 = vector.broadcast %cst_54 : f32 to vector<2x128xf32>
    %198 = arith.addf %197, %196 : vector<2x128xf32>
    %199 = arith.divf %197, %198 : vector<2x128xf32>
    %200 = arith.mulf %191, %169 : vector<2x128xf32>
    %201 = arith.mulf %185, %193 : vector<2x128xf32>
    %202 = arith.addf %200, %201 : vector<2x128xf32>
    %203 = math.tanh %202 : vector<2x128xf32>
    %204 = arith.mulf %199, %203 : vector<2x128xf32>
    %c5 = arith.constant 5 : index
    %c0_55 = arith.constant 0 : index
    %c0_56 = arith.constant 0 : index
    %205 = vector.load %arg12[%c5, %c0_55, %c0_56] : memref<8x2x128xf32, #tpu.memory_space<vmem>>, vector<1x2x128xf32>
    %206 = vector.shape_cast %205 : vector<1x2x128xf32> to vector<2x128xf32>
    %207 = vector.shape_cast %204 : vector<2x128xf32> to vector<1x2x128xf32>
    tpu.vector_store %arg12[%c5, %c0_55, %c0_56], %207 {strides = array<i32>} : memref<8x2x128xf32, #tpu.memory_space<vmem>>, vector<1x2x128xf32>,
    %208 = vector.extract_strided_slice %7 {offsets = [0, 6, 0], sizes = [2, 1, 512], strides = [1, 1, 1]} : vector<2x8x512xf32> to vector<2x1x512xf32>
    %209 = vector.shape_cast %208 : vector<2x1x512xf32> to vector<2x512xf32>
    %c0_57 = arith.constant 0 : index
    %c0_58 = arith.constant 0 : index
    %210 = vector.load %arg2[%c0_57, %c0_58] : memref<128x512xf32, #tpu.memory_space<vmem>>, vector<128x512xf32>
    %cst_59 = arith.constant dense<0.000000e+00> : vector<2x512xf32>
    %211 = tpu.matmul %204, %210, %cst_59 {dimension_numbers = #tpu.dot_dimension_numbers<[1], [0], [0], [1], [0, 0, 1, 1], [], []>} : vector<2x128xf32>, vector<128x512xf32>, vector<2x512xf32> -> vector<2x512xf32>
    %212 = arith.addf %209, %211 : vector<2x512xf32>
    %213 = vector.extract_strided_slice %212 {offsets = [0, 0], sizes = [2, 128], strides = [1, 1]} : vector<2x512xf32> to vector<2x128xf32>
    %214 = arith.negf %213 : vector<2x128xf32>
    %215 = math.exp %214 : vector<2x128xf32>
    %cst_60 = arith.constant 1.000000e+00 : f32
    %216 = vector.broadcast %cst_60 : f32 to vector<2x128xf32>
    %217 = arith.addf %216, %215 : vector<2x128xf32>
    %218 = arith.divf %216, %217 : vector<2x128xf32>
    %219 = vector.extract_strided_slice %212 {offsets = [0, 128], sizes = [2, 128], strides = [1, 1]} : vector<2x512xf32> to vector<2x128xf32>
    %220 = arith.negf %219 : vector<2x128xf32>
    %221 = math.exp %220 : vector<2x128xf32>
    %cst_61 = arith.constant 1.000000e+00 : f32
    %222 = vector.broadcast %cst_61 : f32 to vector<2x128xf32>
    %223 = arith.addf %222, %221 : vector<2x128xf32>
    %224 = arith.divf %222, %223 : vector<2x128xf32>
    %225 = vector.extract_strided_slice %212 {offsets = [0, 256], sizes = [2, 128], strides = [1, 1]} : vector<2x512xf32> to vector<2x128xf32>
    %226 = math.tanh %225 : vector<2x128xf32>
    %227 = vector.extract_strided_slice %212 {offsets = [0, 384], sizes = [2, 128], strides = [1, 1]} : vector<2x512xf32> to vector<2x128xf32>
    %228 = arith.negf %227 : vector<2x128xf32>
    %229 = math.exp %228 : vector<2x128xf32>
    %cst_62 = arith.constant 1.000000e+00 : f32
    %230 = vector.broadcast %cst_62 : f32 to vector<2x128xf32>
    %231 = arith.addf %230, %229 : vector<2x128xf32>
    %232 = arith.divf %230, %231 : vector<2x128xf32>
    %233 = arith.mulf %224, %202 : vector<2x128xf32>
    %234 = arith.mulf %218, %226 : vector<2x128xf32>
    %235 = arith.addf %233, %234 : vector<2x128xf32>
    %236 = math.tanh %235 : vector<2x128xf32>
    %237 = arith.mulf %232, %236 : vector<2x128xf32>
    %c6 = arith.constant 6 : index
    %c0_63 = arith.constant 0 : index
    %c0_64 = arith.constant 0 : index
    %238 = vector.load %arg12[%c6, %c0_63, %c0_64] : memref<8x2x128xf32, #tpu.memory_space<vmem>>, vector<1x2x128xf32>
    %239 = vector.shape_cast %238 : vector<1x2x128xf32> to vector<2x128xf32>
    %240 = vector.shape_cast %237 : vector<2x128xf32> to vector<1x2x128xf32>
    tpu.vector_store %arg12[%c6, %c0_63, %c0_64], %240 {strides = array<i32>} : memref<8x2x128xf32, #tpu.memory_space<vmem>>, vector<1x2x128xf32>,
    %241 = vector.extract_strided_slice %7 {offsets = [0, 7, 0], sizes = [2, 1, 512], strides = [1, 1, 1]} : vector<2x8x512xf32> to vector<2x1x512xf32>
    %242 = vector.shape_cast %241 : vector<2x1x512xf32> to vector<2x512xf32>
    %c0_65 = arith.constant 0 : index
    %c0_66 = arith.constant 0 : index
    %243 = vector.load %arg2[%c0_65, %c0_66] : memref<128x512xf32, #tpu.memory_space<vmem>>, vector<128x512xf32>
    %cst_67 = arith.constant dense<0.000000e+00> : vector<2x512xf32>
    %244 = tpu.matmul %237, %243, %cst_67 {dimension_numbers = #tpu.dot_dimension_numbers<[1], [0], [0], [1], [0, 0, 1, 1], [], []>} : vector<2x128xf32>, vector<128x512xf32>, vector<2x512xf32> -> vector<2x512xf32>
    %245 = arith.addf %242, %244 : vector<2x512xf32>
    %246 = vector.extract_strided_slice %245 {offsets = [0, 0], sizes = [2, 128], strides = [1, 1]} : vector<2x512xf32> to vector<2x128xf32>
    %247 = arith.negf %246 : vector<2x128xf32>
    %248 = math.exp %247 : vector<2x128xf32>
    %cst_68 = arith.constant 1.000000e+00 : f32
    %249 = vector.broadcast %cst_68 : f32 to vector<2x128xf32>
    %250 = arith.addf %249, %248 : vector<2x128xf32>
    %251 = arith.divf %249, %250 : vector<2x128xf32>
    %252 = vector.extract_strided_slice %245 {offsets = [0, 128], sizes = [2, 128], strides = [1, 1]} : vector<2x512xf32> to vector<2x128xf32>
    %253 = arith.negf %252 : vector<2x128xf32>
    %254 = math.exp %253 : vector<2x128xf32>
    %cst_69 = arith.constant 1.000000e+00 : f32
    %255 = vector.broadcast %cst_69 : f32 to vector<2x128xf32>
    %256 = arith.addf %255, %254 : vector<2x128xf32>
    %257 = arith.divf %255, %256 : vector<2x128xf32>
    %258 = vector.extract_strided_slice %245 {offsets = [0, 256], sizes = [2, 128], strides = [1, 1]} : vector<2x512xf32> to vector<2x128xf32>
    %259 = math.tanh %258 : vector<2x128xf32>
    %260 = vector.extract_strided_slice %245 {offsets = [0, 384], sizes = [2, 128], strides = [1, 1]} : vector<2x512xf32> to vector<2x128xf32>
    %261 = arith.negf %260 : vector<2x128xf32>
    %262 = math.exp %261 : vector<2x128xf32>
    %cst_70 = arith.constant 1.000000e+00 : f32
    %263 = vector.broadcast %cst_70 : f32 to vector<2x128xf32>
    %264 = arith.addf %263, %262 : vector<2x128xf32>
    %265 = arith.divf %263, %264 : vector<2x128xf32>
    %266 = arith.mulf %257, %235 : vector<2x128xf32>
    %267 = arith.mulf %251, %259 : vector<2x128xf32>
    %268 = arith.addf %266, %267 : vector<2x128xf32>
    %269 = math.tanh %268 : vector<2x128xf32>
    %270 = arith.mulf %265, %269 : vector<2x128xf32>
    %c7 = arith.constant 7 : index
    %c0_71 = arith.constant 0 : index
    %c0_72 = arith.constant 0 : index
    %271 = vector.load %arg12[%c7, %c0_71, %c0_72] : memref<8x2x128xf32, #tpu.memory_space<vmem>>, vector<1x2x128xf32>
    %272 = vector.shape_cast %271 : vector<1x2x128xf32> to vector<2x128xf32>
    %273 = vector.shape_cast %270 : vector<2x128xf32> to vector<1x2x128xf32>
    tpu.vector_store %arg12[%c7, %c0_71, %c0_72], %273 {strides = array<i32>} : memref<8x2x128xf32, #tpu.memory_space<vmem>>, vector<1x2x128xf32>,
    %c0_73 = arith.constant 0 : index
    %c0_74 = arith.constant 0 : index
    %c0_75 = arith.constant 0 : index
    %274 = vector.load %arg12[%c0_73, %c0_74, %c0_75] : memref<8x2x128xf32, #tpu.memory_space<vmem>>, vector<8x2x128xf32>
    %275 = vector.shape_cast %274 : vector<8x2x128xf32> to vector<16x128xf32>
    %c0_76 = arith.constant 0 : index
    %c0_77 = arith.constant 0 : index
    %276 = vector.load %arg4[%c0_76, %c0_77] : memref<128x512xf32, #tpu.memory_space<vmem>>, vector<128x512xf32>
    %cst_78 = arith.constant dense<0.000000e+00> : vector<16x512xf32>
    %277 = tpu.matmul %275, %276, %cst_78 {dimension_numbers = #tpu.dot_dimension_numbers<[1], [0], [0], [1], [0, 0, 1, 1], [], []>} : vector<16x128xf32>, vector<128x512xf32>, vector<16x512xf32> -> vector<16x512xf32>
    %c0_79 = arith.constant 0 : index
    %c0_80 = arith.constant 0 : index
    %278 = vector.load %arg6[%c0_79, %c0_80] : memref<1x512xf32, #tpu.memory_space<vmem>>, vector<1x512xf32>
    %279 = vector.broadcast %278 : vector<1x512xf32> to vector<16x512xf32>
    %280 = arith.addf %277, %279 : vector<16x512xf32>
    %281 = vector.shape_cast %280 : vector<16x512xf32> to vector<8x2x512xf32>
    %cst_81 = arith.constant 0.000000e+00 : f32
    %282 = vector.broadcast %cst_81 : f32 to vector<2x128xf32>
    %cst_82 = arith.constant 0.000000e+00 : f32
    %283 = vector.broadcast %cst_82 : f32 to vector<2x128xf32>
    %284 = vector.extract_strided_slice %281 {offsets = [0, 0, 0], sizes = [1, 2, 512], strides = [1, 1, 1]} : vector<8x2x512xf32> to vector<1x2x512xf32>
    %285 = vector.shape_cast %284 : vector<1x2x512xf32> to vector<2x512xf32>
    %c0_83 = arith.constant 0 : index
    %c0_84 = arith.constant 0 : index
    %286 = vector.load %arg5[%c0_83, %c0_84] : memref<128x512xf32, #tpu.memory_space<vmem>>, vector<128x512xf32>
    %cst_85 = arith.constant dense<0.000000e+00> : vector<2x512xf32>
    %287 = tpu.matmul %282, %286, %cst_85 {dimension_numbers = #tpu.dot_dimension_numbers<[1], [0], [0], [1], [0, 0, 1, 1], [], []>} : vector<2x128xf32>, vector<128x512xf32>, vector<2x512xf32> -> vector<2x512xf32>
    %288 = arith.addf %285, %287 : vector<2x512xf32>
    %289 = vector.extract_strided_slice %288 {offsets = [0, 0], sizes = [2, 128], strides = [1, 1]} : vector<2x512xf32> to vector<2x128xf32>
    %290 = arith.negf %289 : vector<2x128xf32>
    %291 = math.exp %290 : vector<2x128xf32>
    %cst_86 = arith.constant 1.000000e+00 : f32
    %292 = vector.broadcast %cst_86 : f32 to vector<2x128xf32>
    %293 = arith.addf %292, %291 : vector<2x128xf32>
    %294 = arith.divf %292, %293 : vector<2x128xf32>
    %295 = vector.extract_strided_slice %288 {offsets = [0, 128], sizes = [2, 128], strides = [1, 1]} : vector<2x512xf32> to vector<2x128xf32>
    %296 = arith.negf %295 : vector<2x128xf32>
    %297 = math.exp %296 : vector<2x128xf32>
    %cst_87 = arith.constant 1.000000e+00 : f32
    %298 = vector.broadcast %cst_87 : f32 to vector<2x128xf32>
    %299 = arith.addf %298, %297 : vector<2x128xf32>
    %300 = arith.divf %298, %299 : vector<2x128xf32>
    %301 = vector.extract_strided_slice %288 {offsets = [0, 256], sizes = [2, 128], strides = [1, 1]} : vector<2x512xf32> to vector<2x128xf32>
    %302 = math.tanh %301 : vector<2x128xf32>
    %303 = vector.extract_strided_slice %288 {offsets = [0, 384], sizes = [2, 128], strides = [1, 1]} : vector<2x512xf32> to vector<2x128xf32>
    %304 = arith.negf %303 : vector<2x128xf32>
    %305 = math.exp %304 : vector<2x128xf32>
    %cst_88 = arith.constant 1.000000e+00 : f32
    %306 = vector.broadcast %cst_88 : f32 to vector<2x128xf32>
    %307 = arith.addf %306, %305 : vector<2x128xf32>
    %308 = arith.divf %306, %307 : vector<2x128xf32>
    %309 = arith.mulf %300, %283 : vector<2x128xf32>
    %310 = arith.mulf %294, %302 : vector<2x128xf32>
    %311 = arith.addf %309, %310 : vector<2x128xf32>
    %312 = math.tanh %311 : vector<2x128xf32>
    %313 = arith.mulf %308, %312 : vector<2x128xf32>
    %314 = vector.extract_strided_slice %281 {offsets = [1, 0, 0], sizes = [1, 2, 512], strides = [1, 1, 1]} : vector<8x2x512xf32> to vector<1x2x512xf32>
    %315 = vector.shape_cast %314 : vector<1x2x512xf32> to vector<2x512xf32>
    %c0_89 = arith.constant 0 : index
    %c0_90 = arith.constant 0 : index
    %316 = vector.load %arg5[%c0_89, %c0_90] : memref<128x512xf32, #tpu.memory_space<vmem>>, vector<128x512xf32>
    %cst_91 = arith.constant dense<0.000000e+00> : vector<2x512xf32>
    %317 = tpu.matmul %313, %316, %cst_91 {dimension_numbers = #tpu.dot_dimension_numbers<[1], [0], [0], [1], [0, 0, 1, 1], [], []>} : vector<2x128xf32>, vector<128x512xf32>, vector<2x512xf32> -> vector<2x512xf32>
    %318 = arith.addf %315, %317 : vector<2x512xf32>
    %319 = vector.extract_strided_slice %318 {offsets = [0, 0], sizes = [2, 128], strides = [1, 1]} : vector<2x512xf32> to vector<2x128xf32>
    %320 = arith.negf %319 : vector<2x128xf32>
    %321 = math.exp %320 : vector<2x128xf32>
    %cst_92 = arith.constant 1.000000e+00 : f32
    %322 = vector.broadcast %cst_92 : f32 to vector<2x128xf32>
    %323 = arith.addf %322, %321 : vector<2x128xf32>
    %324 = arith.divf %322, %323 : vector<2x128xf32>
    %325 = vector.extract_strided_slice %318 {offsets = [0, 128], sizes = [2, 128], strides = [1, 1]} : vector<2x512xf32> to vector<2x128xf32>
    %326 = arith.negf %325 : vector<2x128xf32>
    %327 = math.exp %326 : vector<2x128xf32>
    %cst_93 = arith.constant 1.000000e+00 : f32
    %328 = vector.broadcast %cst_93 : f32 to vector<2x128xf32>
    %329 = arith.addf %328, %327 : vector<2x128xf32>
    %330 = arith.divf %328, %329 : vector<2x128xf32>
    %331 = vector.extract_strided_slice %318 {offsets = [0, 256], sizes = [2, 128], strides = [1, 1]} : vector<2x512xf32> to vector<2x128xf32>
    %332 = math.tanh %331 : vector<2x128xf32>
    %333 = vector.extract_strided_slice %318 {offsets = [0, 384], sizes = [2, 128], strides = [1, 1]} : vector<2x512xf32> to vector<2x128xf32>
    %334 = arith.negf %333 : vector<2x128xf32>
    %335 = math.exp %334 : vector<2x128xf32>
    %cst_94 = arith.constant 1.000000e+00 : f32
    %336 = vector.broadcast %cst_94 : f32 to vector<2x128xf32>
    %337 = arith.addf %336, %335 : vector<2x128xf32>
    %338 = arith.divf %336, %337 : vector<2x128xf32>
    %339 = arith.mulf %330, %311 : vector<2x128xf32>
    %340 = arith.mulf %324, %332 : vector<2x128xf32>
    %341 = arith.addf %339, %340 : vector<2x128xf32>
    %342 = math.tanh %341 : vector<2x128xf32>
    %343 = arith.mulf %338, %342 : vector<2x128xf32>
    %344 = vector.extract_strided_slice %281 {offsets = [2, 0, 0], sizes = [1, 2, 512], strides = [1, 1, 1]} : vector<8x2x512xf32> to vector<1x2x512xf32>
    %345 = vector.shape_cast %344 : vector<1x2x512xf32> to vector<2x512xf32>
    %c0_95 = arith.constant 0 : index
    %c0_96 = arith.constant 0 : index
    %346 = vector.load %arg5[%c0_95, %c0_96] : memref<128x512xf32, #tpu.memory_space<vmem>>, vector<128x512xf32>
    %cst_97 = arith.constant dense<0.000000e+00> : vector<2x512xf32>
    %347 = tpu.matmul %343, %346, %cst_97 {dimension_numbers = #tpu.dot_dimension_numbers<[1], [0], [0], [1], [0, 0, 1, 1], [], []>} : vector<2x128xf32>, vector<128x512xf32>, vector<2x512xf32> -> vector<2x512xf32>
    %348 = arith.addf %345, %347 : vector<2x512xf32>
    %349 = vector.extract_strided_slice %348 {offsets = [0, 0], sizes = [2, 128], strides = [1, 1]} : vector<2x512xf32> to vector<2x128xf32>
    %350 = arith.negf %349 : vector<2x128xf32>
    %351 = math.exp %350 : vector<2x128xf32>
    %cst_98 = arith.constant 1.000000e+00 : f32
    %352 = vector.broadcast %cst_98 : f32 to vector<2x128xf32>
    %353 = arith.addf %352, %351 : vector<2x128xf32>
    %354 = arith.divf %352, %353 : vector<2x128xf32>
    %355 = vector.extract_strided_slice %348 {offsets = [0, 128], sizes = [2, 128], strides = [1, 1]} : vector<2x512xf32> to vector<2x128xf32>
    %356 = arith.negf %355 : vector<2x128xf32>
    %357 = math.exp %356 : vector<2x128xf32>
    %cst_99 = arith.constant 1.000000e+00 : f32
    %358 = vector.broadcast %cst_99 : f32 to vector<2x128xf32>
    %359 = arith.addf %358, %357 : vector<2x128xf32>
    %360 = arith.divf %358, %359 : vector<2x128xf32>
    %361 = vector.extract_strided_slice %348 {offsets = [0, 256], sizes = [2, 128], strides = [1, 1]} : vector<2x512xf32> to vector<2x128xf32>
    %362 = math.tanh %361 : vector<2x128xf32>
    %363 = vector.extract_strided_slice %348 {offsets = [0, 384], sizes = [2, 128], strides = [1, 1]} : vector<2x512xf32> to vector<2x128xf32>
    %364 = arith.negf %363 : vector<2x128xf32>
    %365 = math.exp %364 : vector<2x128xf32>
    %cst_100 = arith.constant 1.000000e+00 : f32
    %366 = vector.broadcast %cst_100 : f32 to vector<2x128xf32>
    %367 = arith.addf %366, %365 : vector<2x128xf32>
    %368 = arith.divf %366, %367 : vector<2x128xf32>
    %369 = arith.mulf %360, %341 : vector<2x128xf32>
    %370 = arith.mulf %354, %362 : vector<2x128xf32>
    %371 = arith.addf %369, %370 : vector<2x128xf32>
    %372 = math.tanh %371 : vector<2x128xf32>
    %373 = arith.mulf %368, %372 : vector<2x128xf32>
    %374 = vector.extract_strided_slice %281 {offsets = [3, 0, 0], sizes = [1, 2, 512], strides = [1, 1, 1]} : vector<8x2x512xf32> to vector<1x2x512xf32>
    %375 = vector.shape_cast %374 : vector<1x2x512xf32> to vector<2x512xf32>
    %c0_101 = arith.constant 0 : index
    %c0_102 = arith.constant 0 : index
    %376 = vector.load %arg5[%c0_101, %c0_102] : memref<128x512xf32, #tpu.memory_space<vmem>>, vector<128x512xf32>
    %cst_103 = arith.constant dense<0.000000e+00> : vector<2x512xf32>
    %377 = tpu.matmul %373, %376, %cst_103 {dimension_numbers = #tpu.dot_dimension_numbers<[1], [0], [0], [1], [0, 0, 1, 1], [], []>} : vector<2x128xf32>, vector<128x512xf32>, vector<2x512xf32> -> vector<2x512xf32>
    %378 = arith.addf %375, %377 : vector<2x512xf32>
    %379 = vector.extract_strided_slice %378 {offsets = [0, 0], sizes = [2, 128], strides = [1, 1]} : vector<2x512xf32> to vector<2x128xf32>
    %380 = arith.negf %379 : vector<2x128xf32>
    %381 = math.exp %380 : vector<2x128xf32>
    %cst_104 = arith.constant 1.000000e+00 : f32
    %382 = vector.broadcast %cst_104 : f32 to vector<2x128xf32>
    %383 = arith.addf %382, %381 : vector<2x128xf32>
    %384 = arith.divf %382, %383 : vector<2x128xf32>
    %385 = vector.extract_strided_slice %378 {offsets = [0, 128], sizes = [2, 128], strides = [1, 1]} : vector<2x512xf32> to vector<2x128xf32>
    %386 = arith.negf %385 : vector<2x128xf32>
    %387 = math.exp %386 : vector<2x128xf32>
    %cst_105 = arith.constant 1.000000e+00 : f32
    %388 = vector.broadcast %cst_105 : f32 to vector<2x128xf32>
    %389 = arith.addf %388, %387 : vector<2x128xf32>
    %390 = arith.divf %388, %389 : vector<2x128xf32>
    %391 = vector.extract_strided_slice %378 {offsets = [0, 256], sizes = [2, 128], strides = [1, 1]} : vector<2x512xf32> to vector<2x128xf32>
    %392 = math.tanh %391 : vector<2x128xf32>
    %393 = vector.extract_strided_slice %378 {offsets = [0, 384], sizes = [2, 128], strides = [1, 1]} : vector<2x512xf32> to vector<2x128xf32>
    %394 = arith.negf %393 : vector<2x128xf32>
    %395 = math.exp %394 : vector<2x128xf32>
    %cst_106 = arith.constant 1.000000e+00 : f32
    %396 = vector.broadcast %cst_106 : f32 to vector<2x128xf32>
    %397 = arith.addf %396, %395 : vector<2x128xf32>
    %398 = arith.divf %396, %397 : vector<2x128xf32>
    %399 = arith.mulf %390, %371 : vector<2x128xf32>
    %400 = arith.mulf %384, %392 : vector<2x128xf32>
    %401 = arith.addf %399, %400 : vector<2x128xf32>
    %402 = math.tanh %401 : vector<2x128xf32>
    %403 = arith.mulf %398, %402 : vector<2x128xf32>
    %404 = vector.extract_strided_slice %281 {offsets = [4, 0, 0], sizes = [1, 2, 512], strides = [1, 1, 1]} : vector<8x2x512xf32> to vector<1x2x512xf32>
    %405 = vector.shape_cast %404 : vector<1x2x512xf32> to vector<2x512xf32>
    %c0_107 = arith.constant 0 : index
    %c0_108 = arith.constant 0 : index
    %406 = vector.load %arg5[%c0_107, %c0_108] : memref<128x512xf32, #tpu.memory_space<vmem>>, vector<128x512xf32>
    %cst_109 = arith.constant dense<0.000000e+00> : vector<2x512xf32>
    %407 = tpu.matmul %403, %406, %cst_109 {dimension_numbers = #tpu.dot_dimension_numbers<[1], [0], [0], [1], [0, 0, 1, 1], [], []>} : vector<2x128xf32>, vector<128x512xf32>, vector<2x512xf32> -> vector<2x512xf32>
    %408 = arith.addf %405, %407 : vector<2x512xf32>
    %409 = vector.extract_strided_slice %408 {offsets = [0, 0], sizes = [2, 128], strides = [1, 1]} : vector<2x512xf32> to vector<2x128xf32>
    %410 = arith.negf %409 : vector<2x128xf32>
    %411 = math.exp %410 : vector<2x128xf32>
    %cst_110 = arith.constant 1.000000e+00 : f32
    %412 = vector.broadcast %cst_110 : f32 to vector<2x128xf32>
    %413 = arith.addf %412, %411 : vector<2x128xf32>
    %414 = arith.divf %412, %413 : vector<2x128xf32>
    %415 = vector.extract_strided_slice %408 {offsets = [0, 128], sizes = [2, 128], strides = [1, 1]} : vector<2x512xf32> to vector<2x128xf32>
    %416 = arith.negf %415 : vector<2x128xf32>
    %417 = math.exp %416 : vector<2x128xf32>
    %cst_111 = arith.constant 1.000000e+00 : f32
    %418 = vector.broadcast %cst_111 : f32 to vector<2x128xf32>
    %419 = arith.addf %418, %417 : vector<2x128xf32>
    %420 = arith.divf %418, %419 : vector<2x128xf32>
    %421 = vector.extract_strided_slice %408 {offsets = [0, 256], sizes = [2, 128], strides = [1, 1]} : vector<2x512xf32> to vector<2x128xf32>
    %422 = math.tanh %421 : vector<2x128xf32>
    %423 = vector.extract_strided_slice %408 {offsets = [0, 384], sizes = [2, 128], strides = [1, 1]} : vector<2x512xf32> to vector<2x128xf32>
    %424 = arith.negf %423 : vector<2x128xf32>
    %425 = math.exp %424 : vector<2x128xf32>
    %cst_112 = arith.constant 1.000000e+00 : f32
    %426 = vector.broadcast %cst_112 : f32 to vector<2x128xf32>
    %427 = arith.addf %426, %425 : vector<2x128xf32>
    %428 = arith.divf %426, %427 : vector<2x128xf32>
    %429 = arith.mulf %420, %401 : vector<2x128xf32>
    %430 = arith.mulf %414, %422 : vector<2x128xf32>
    %431 = arith.addf %429, %430 : vector<2x128xf32>
    %432 = math.tanh %431 : vector<2x128xf32>
    %433 = arith.mulf %428, %432 : vector<2x128xf32>
    %434 = vector.extract_strided_slice %281 {offsets = [5, 0, 0], sizes = [1, 2, 512], strides = [1, 1, 1]} : vector<8x2x512xf32> to vector<1x2x512xf32>
    %435 = vector.shape_cast %434 : vector<1x2x512xf32> to vector<2x512xf32>
    %c0_113 = arith.constant 0 : index
    %c0_114 = arith.constant 0 : index
    %436 = vector.load %arg5[%c0_113, %c0_114] : memref<128x512xf32, #tpu.memory_space<vmem>>, vector<128x512xf32>
    %cst_115 = arith.constant dense<0.000000e+00> : vector<2x512xf32>
    %437 = tpu.matmul %433, %436, %cst_115 {dimension_numbers = #tpu.dot_dimension_numbers<[1], [0], [0], [1], [0, 0, 1, 1], [], []>} : vector<2x128xf32>, vector<128x512xf32>, vector<2x512xf32> -> vector<2x512xf32>
    %438 = arith.addf %435, %437 : vector<2x512xf32>
    %439 = vector.extract_strided_slice %438 {offsets = [0, 0], sizes = [2, 128], strides = [1, 1]} : vector<2x512xf32> to vector<2x128xf32>
    %440 = arith.negf %439 : vector<2x128xf32>
    %441 = math.exp %440 : vector<2x128xf32>
    %cst_116 = arith.constant 1.000000e+00 : f32
    %442 = vector.broadcast %cst_116 : f32 to vector<2x128xf32>
    %443 = arith.addf %442, %441 : vector<2x128xf32>
    %444 = arith.divf %442, %443 : vector<2x128xf32>
    %445 = vector.extract_strided_slice %438 {offsets = [0, 128], sizes = [2, 128], strides = [1, 1]} : vector<2x512xf32> to vector<2x128xf32>
    %446 = arith.negf %445 : vector<2x128xf32>
    %447 = math.exp %446 : vector<2x128xf32>
    %cst_117 = arith.constant 1.000000e+00 : f32
    %448 = vector.broadcast %cst_117 : f32 to vector<2x128xf32>
    %449 = arith.addf %448, %447 : vector<2x128xf32>
    %450 = arith.divf %448, %449 : vector<2x128xf32>
    %451 = vector.extract_strided_slice %438 {offsets = [0, 256], sizes = [2, 128], strides = [1, 1]} : vector<2x512xf32> to vector<2x128xf32>
    %452 = math.tanh %451 : vector<2x128xf32>
    %453 = vector.extract_strided_slice %438 {offsets = [0, 384], sizes = [2, 128], strides = [1, 1]} : vector<2x512xf32> to vector<2x128xf32>
    %454 = arith.negf %453 : vector<2x128xf32>
    %455 = math.exp %454 : vector<2x128xf32>
    %cst_118 = arith.constant 1.000000e+00 : f32
    %456 = vector.broadcast %cst_118 : f32 to vector<2x128xf32>
    %457 = arith.addf %456, %455 : vector<2x128xf32>
    %458 = arith.divf %456, %457 : vector<2x128xf32>
    %459 = arith.mulf %450, %431 : vector<2x128xf32>
    %460 = arith.mulf %444, %452 : vector<2x128xf32>
    %461 = arith.addf %459, %460 : vector<2x128xf32>
    %462 = math.tanh %461 : vector<2x128xf32>
    %463 = arith.mulf %458, %462 : vector<2x128xf32>
    %464 = vector.extract_strided_slice %281 {offsets = [6, 0, 0], sizes = [1, 2, 512], strides = [1, 1, 1]} : vector<8x2x512xf32> to vector<1x2x512xf32>
    %465 = vector.shape_cast %464 : vector<1x2x512xf32> to vector<2x512xf32>
    %c0_119 = arith.constant 0 : index
    %c0_120 = arith.constant 0 : index
    %466 = vector.load %arg5[%c0_119, %c0_120] : memref<128x512xf32, #tpu.memory_space<vmem>>, vector<128x512xf32>
    %cst_121 = arith.constant dense<0.000000e+00> : vector<2x512xf32>
    %467 = tpu.matmul %463, %466, %cst_121 {dimension_numbers = #tpu.dot_dimension_numbers<[1], [0], [0], [1], [0, 0, 1, 1], [], []>} : vector<2x128xf32>, vector<128x512xf32>, vector<2x512xf32> -> vector<2x512xf32>
    %468 = arith.addf %465, %467 : vector<2x512xf32>
    %469 = vector.extract_strided_slice %468 {offsets = [0, 0], sizes = [2, 128], strides = [1, 1]} : vector<2x512xf32> to vector<2x128xf32>
    %470 = arith.negf %469 : vector<2x128xf32>
    %471 = math.exp %470 : vector<2x128xf32>
    %cst_122 = arith.constant 1.000000e+00 : f32
    %472 = vector.broadcast %cst_122 : f32 to vector<2x128xf32>
    %473 = arith.addf %472, %471 : vector<2x128xf32>
    %474 = arith.divf %472, %473 : vector<2x128xf32>
    %475 = vector.extract_strided_slice %468 {offsets = [0, 128], sizes = [2, 128], strides = [1, 1]} : vector<2x512xf32> to vector<2x128xf32>
    %476 = arith.negf %475 : vector<2x128xf32>
    %477 = math.exp %476 : vector<2x128xf32>
    %cst_123 = arith.constant 1.000000e+00 : f32
    %478 = vector.broadcast %cst_123 : f32 to vector<2x128xf32>
    %479 = arith.addf %478, %477 : vector<2x128xf32>
    %480 = arith.divf %478, %479 : vector<2x128xf32>
    %481 = vector.extract_strided_slice %468 {offsets = [0, 256], sizes = [2, 128], strides = [1, 1]} : vector<2x512xf32> to vector<2x128xf32>
    %482 = math.tanh %481 : vector<2x128xf32>
    %483 = vector.extract_strided_slice %468 {offsets = [0, 384], sizes = [2, 128], strides = [1, 1]} : vector<2x512xf32> to vector<2x128xf32>
    %484 = arith.negf %483 : vector<2x128xf32>
    %485 = math.exp %484 : vector<2x128xf32>
    %cst_124 = arith.constant 1.000000e+00 : f32
    %486 = vector.broadcast %cst_124 : f32 to vector<2x128xf32>
    %487 = arith.addf %486, %485 : vector<2x128xf32>
    %488 = arith.divf %486, %487 : vector<2x128xf32>
    %489 = arith.mulf %480, %461 : vector<2x128xf32>
    %490 = arith.mulf %474, %482 : vector<2x128xf32>
    %491 = arith.addf %489, %490 : vector<2x128xf32>
    %492 = math.tanh %491 : vector<2x128xf32>
    %493 = arith.mulf %488, %492 : vector<2x128xf32>
    %494 = vector.extract_strided_slice %281 {offsets = [7, 0, 0], sizes = [1, 2, 512], strides = [1, 1, 1]} : vector<8x2x512xf32> to vector<1x2x512xf32>
    %495 = vector.shape_cast %494 : vector<1x2x512xf32> to vector<2x512xf32>
    %c0_125 = arith.constant 0 : index
    %c0_126 = arith.constant 0 : index
    %496 = vector.load %arg5[%c0_125, %c0_126] : memref<128x512xf32, #tpu.memory_space<vmem>>, vector<128x512xf32>
    %cst_127 = arith.constant dense<0.000000e+00> : vector<2x512xf32>
    %497 = tpu.matmul %493, %496, %cst_127 {dimension_numbers = #tpu.dot_dimension_numbers<[1], [0], [0], [1], [0, 0, 1, 1], [], []>} : vector<2x128xf32>, vector<128x512xf32>, vector<2x512xf32> -> vector<2x512xf32>
    %498 = arith.addf %495, %497 : vector<2x512xf32>
    %499 = vector.extract_strided_slice %498 {offsets = [0, 0], sizes = [2, 128], strides = [1, 1]} : vector<2x512xf32> to vector<2x128xf32>
    %500 = arith.negf %499 : vector<2x128xf32>
    %501 = math.exp %500 : vector<2x128xf32>
    %cst_128 = arith.constant 1.000000e+00 : f32
    %502 = vector.broadcast %cst_128 : f32 to vector<2x128xf32>
    %503 = arith.addf %502, %501 : vector<2x128xf32>
    %504 = arith.divf %502, %503 : vector<2x128xf32>
    %505 = vector.extract_strided_slice %498 {offsets = [0, 128], sizes = [2, 128], strides = [1, 1]} : vector<2x512xf32> to vector<2x128xf32>
    %506 = arith.negf %505 : vector<2x128xf32>
    %507 = math.exp %506 : vector<2x128xf32>
    %cst_129 = arith.constant 1.000000e+00 : f32
    %508 = vector.broadcast %cst_129 : f32 to vector<2x128xf32>
    %509 = arith.addf %508, %507 : vector<2x128xf32>
    %510 = arith.divf %508, %509 : vector<2x128xf32>
    %511 = vector.extract_strided_slice %498 {offsets = [0, 256], sizes = [2, 128], strides = [1, 1]} : vector<2x512xf32> to vector<2x128xf32>
    %512 = math.tanh %511 : vector<2x128xf32>
    %513 = vector.extract_strided_slice %498 {offsets = [0, 384], sizes = [2, 128], strides = [1, 1]} : vector<2x512xf32> to vector<2x128xf32>
    %514 = arith.negf %513 : vector<2x128xf32>
    %515 = math.exp %514 : vector<2x128xf32>
    %cst_130 = arith.constant 1.000000e+00 : f32
    %516 = vector.broadcast %cst_130 : f32 to vector<2x128xf32>
    %517 = arith.addf %516, %515 : vector<2x128xf32>
    %518 = arith.divf %516, %517 : vector<2x128xf32>
    %519 = arith.mulf %510, %491 : vector<2x128xf32>
    %520 = arith.mulf %504, %512 : vector<2x128xf32>
    %521 = arith.addf %519, %520 : vector<2x128xf32>
    %522 = math.tanh %521 : vector<2x128xf32>
    %523 = arith.mulf %518, %522 : vector<2x128xf32>
    %cst_131 = arith.constant dense<0.000000e+00> : vector<128xf32>
    %524 = vector.multi_reduction <add>, %523, %cst_131 [0] : vector<2x128xf32> to vector<128xf32>
    %525 = vector.shape_cast %524 : vector<128xf32> to vector<1x128xf32>
    %cst_132 = arith.constant 2.000000e+00 : f32
    %526 = vector.broadcast %cst_132 : f32 to vector<1x128xf32>
    %527 = arith.divf %525, %526 : vector<1x128xf32>
    %528 = vector.broadcast %527 : vector<1x128xf32> to vector<2x128xf32>
    %529 = arith.subf %523, %528 : vector<2x128xf32>
    %530 = arith.mulf %529, %529 : vector<2x128xf32>
    %cst_133 = arith.constant dense<0.000000e+00> : vector<128xf32>
    %531 = vector.multi_reduction <add>, %530, %cst_133 [0] : vector<2x128xf32> to vector<128xf32>
    %532 = vector.shape_cast %531 : vector<128xf32> to vector<1x128xf32>
    %cst_134 = arith.constant 2.000000e+00 : f32
    %533 = vector.broadcast %cst_134 : f32 to vector<1x128xf32>
    %534 = arith.divf %532, %533 : vector<1x128xf32>
    %535 = vector.broadcast %527 : vector<1x128xf32> to vector<2x128xf32>
    %536 = arith.subf %523, %535 : vector<2x128xf32>
    %cst_135 = arith.constant 9.99999974E-6 : f32
    %537 = vector.broadcast %cst_135 : f32 to vector<1x128xf32>
    %538 = arith.addf %534, %537 : vector<1x128xf32>
    %539 = math.rsqrt %538 : vector<1x128xf32>
    %540 = vector.broadcast %539 : vector<1x128xf32> to vector<2x128xf32>
    %541 = arith.mulf %536, %540 : vector<2x128xf32>
    %c0_136 = arith.constant 0 : index
    %c0_137 = arith.constant 0 : index
    %542 = vector.load %arg7[%c0_136, %c0_137] : memref<1x128xf32, #tpu.memory_space<vmem>>, vector<1x128xf32>
    %543 = vector.broadcast %542 : vector<1x128xf32> to vector<2x128xf32>
    %544 = arith.mulf %541, %543 : vector<2x128xf32>
    %c0_138 = arith.constant 0 : index
    %c0_139 = arith.constant 0 : index
    %545 = vector.load %arg8[%c0_138, %c0_139] : memref<1x128xf32, #tpu.memory_space<vmem>>, vector<1x128xf32>
    %546 = vector.broadcast %545 : vector<1x128xf32> to vector<2x128xf32>
    %547 = arith.addf %544, %546 : vector<2x128xf32>
    %c0_140 = arith.constant 0 : index
    %c0_141 = arith.constant 0 : index
    %548 = vector.load %arg9[%c0_140, %c0_141] : memref<128x1xf32, #tpu.memory_space<vmem>>, vector<128x1xf32>
    %cst_142 = arith.constant dense<0.000000e+00> : vector<2x1xf32>
    %549 = tpu.matmul %547, %548, %cst_142 {dimension_numbers = #tpu.dot_dimension_numbers<[1], [0], [0], [1], [0, 0, 1, 1], [], []>} : vector<2x128xf32>, vector<128x1xf32>, vector<2x1xf32> -> vector<2x1xf32>
    %c0_143 = arith.constant 0 : index
    %c0_144 = arith.constant 0 : index
    %550 = vector.load %arg10[%c0_143, %c0_144] : memref<1x1xf32, #tpu.memory_space<vmem>>, vector<1x1xf32>
    %551 = vector.broadcast %550 : vector<1x1xf32> to vector<2x1xf32>
    %552 = arith.addf %549, %551 : vector<2x1xf32>
    %553 = arith.negf %552 : vector<2x1xf32>
    %554 = math.exp %553 : vector<2x1xf32>
    %cst_145 = arith.constant 1.000000e+00 : f32
    %555 = vector.broadcast %cst_145 : f32 to vector<2x1xf32>
    %556 = arith.addf %555, %554 : vector<2x1xf32>
    %557 = arith.divf %555, %556 : vector<2x1xf32>
    %c0_146 = arith.constant 0 : index
    %c0_147 = arith.constant 0 : index
    %558 = vector.load %arg11[%c0_146, %c0_147] : memref<2x1xf32, #tpu.memory_space<vmem>>, vector<2x1xf32>
    tpu.vector_store %arg11[%c0_146, %c0_147], %557 {strides = array<i32>} : memref<2x1xf32, #tpu.memory_space<vmem>>, vector<2x1xf32>,
    return
  }
}

</mosaic_0001>

<llo_original>
// kernel: lstm_classifier_forward.1
$region0: #{lstm_classifier_forward.1}
  #allocation0 [shape = 'u32[]', space=smem, size = 0x4, offset = 0x4, fixed_abs, tag = 'smem constant byte address 0x4 - core index']
  #allocation1 [shape = 'u32[144,128]{1,0:T(1,128)}', space=vmem, size = 0x12000, scoped, tag = 'internal scratch']
  #allocation2 [shape = 'f32[8,2,128]{2,1,0:T(2,128)}', space=vmem, size = 0x2000, scoped, tag = 'scratch operand']
  #allocation3 [shape = 'f32[1,1]{1,0:T(1,128)S(1)}', space=vmem, size = 0x200, scoped, tag = 'scoped memory for lstm_classifier_forward.1']
  %s0 = inlined_call_operand.vmem [shape: f32[2,8,13], index: 0, kind: input, shape index: {}]
  %s1 = inlined_call_operand.vmem [shape: f32[13,512], index: 1, kind: input, shape index: {}]
  %s2 = inlined_call_operand.hbm [shape: f32[128,512], index: 2, kind: input, shape index: {}]
  %s3 = inlined_call_operand.vmem [shape: f32[1,512], index: 3, kind: input, shape index: {}]
  %s4 = inlined_call_operand.hbm [shape: f32[128,512], index: 4, kind: input, shape index: {}]
  %s5 = inlined_call_operand.hbm [shape: f32[128,512], index: 5, kind: input, shape index: {}]
  %s6 = inlined_call_operand.vmem [shape: f32[1,512], index: 6, kind: input, shape index: {}]
  %s7 = inlined_call_operand.vmem [shape: f32[1,128], index: 7, kind: input, shape index: {}]
  %s8 = inlined_call_operand.vmem [shape: f32[1,128], index: 8, kind: input, shape index: {}]
  %s9 = inlined_call_operand.vmem [shape: f32[128,1], index: 9, kind: input, shape index: {}]
  %s10 = inlined_call_operand.<no memory space> [shape: f32[1,1], index: 10, kind: input, shape index: {}]
  %s11 = inlined_call_operand.vmem [shape: f32[2,1], index: 11, kind: output, shape index: {}]
  %s12 = sld [smem:[#allocation0]]
  $region66: #{lstm_classifier_forward.1} parent=0
    _
  %s14 = ssub.s32 1, %s12
  %s15 = scalar_select 0, %s14, %s12
  %v16 = vstv %s10
  %17 = vst [vmem:[#allocation3] sm:$0x1] %v16
  $region1: #{lstm_classifier_forward.1} parent=0
    #allocation4 [shape = 'u8[262144]{0}', space=vmem, size = 0x40000, scoped, tag = 'input window, operand 2, single buffered']
    #allocation5 [shape = 's32[1]{0}', space=sflag, size = 0x4, scoped, tag = 'scoped memory for lstm_classifier_forward.1']
    #allocation6 [shape = 'u8[262144]{0}', space=vmem, size = 0x40000, scoped, tag = 'input window, operand 4, single buffered']
    #allocation7 [shape = 's32[1]{0}', space=sflag, size = 0x4, scoped, tag = 'scoped memory for lstm_classifier_forward.1']
    #allocation8 [shape = 'u8[262144]{0}', space=vmem, size = 0x40000, scoped, tag = 'input window, operand 5, single buffered']
    %18 = vsyncpa [#allocation5], 0
    %19 = vsyncpa [#allocation7], 0
    // Predicated region
    $region2: #{lstm_classifier_forward.1} parent=1 // pred_check
      _
    $region3: #{lstm_classifier_forward.1} parent=1 // pred_check_branch
      %21 = sbr.rel (0) target = $region5
    $region4: #{lstm_classifier_forward.1} parent=1 // pred_region
      _
    $region5: #{lstm_classifier_forward.1} parent=1 // pred_fallthru
      _
    // Predicated region
    $region6: #{lstm_classifier_forward.1} parent=1 // pred_check
      _
    $region7: #{lstm_classifier_forward.1} parent=1 // pred_check_branch
      %23 = sbr.rel (0) target = $region9
    $region8: #{lstm_classifier_forward.1} parent=1 // pred_region
      _
    $region9: #{lstm_classifier_forward.1} parent=1 // pred_fallthru
      _
    // Predicated region
    $region10: #{lstm_classifier_forward.1} parent=1 // pred_check
      _
    $region11: #{lstm_classifier_forward.1} parent=1 // pred_check_branch
      %25 = sbr.rel (0) target = $region13
    $region12: #{lstm_classifier_forward.1} parent=1 // pred_region
      %s27 = ssub.s32 8192, 8192
      %28 = vsyncadd [#allocation5], %s27
      %s29 = sshll.u32 [#allocation4], 4
      %s30 = int_to_ptr.vmem [resolvable:$true] %s29
      %35 = dma.hbm_to_vmem [thread:$0]  %s2, 8192, %s30, [#allocation5], 512, 512, 32
    $region13: #{lstm_classifier_forward.1} parent=1 // pred_fallthru
      _
    // Predicated region
    $region14: #{lstm_classifier_forward.1} parent=1 // pred_check
      _
    $region15: #{lstm_classifier_forward.1} parent=1 // pred_check_branch
      %37 = sbr.rel (0) target = $region17
    $region16: #{lstm_classifier_forward.1} parent=1 // pred_region
      _
    $region17: #{lstm_classifier_forward.1} parent=1 // pred_fallthru
      _
    // Predicated region
    $region18: #{lstm_classifier_forward.1} parent=1 // pred_check
      _
    $region19: #{lstm_classifier_forward.1} parent=1 // pred_check_branch
      %39 = sbr.rel (0) target = $region21
    $region20: #{lstm_classifier_forward.1} parent=1 // pred_region
      %s41 = ssub.s32 8192, 8192
      %42 = vsyncadd [#allocation7], %s41
      %s43 = sshll.u32 [#allocation6], 4
      %s44 = int_to_ptr.vmem [resolvable:$true] %s43
      %49 = dma.hbm_to_vmem [thread:$0]  %s4, 8192, %s44, [#allocation7], 512, 512, 32
    $region21: #{lstm_classifier_forward.1} parent=1 // pred_fallthru
      _
    // Predicated region
    $region22: #{lstm_classifier_forward.1} parent=1 // pred_check
      _
    $region23: #{lstm_classifier_forward.1} parent=1 // pred_check_branch
      %51 = sbr.rel (0) target = $region25
    $region24: #{lstm_classifier_forward.1} parent=1 // pred_region
      %s53 = ssub.s32 8192, 8192
      %54 = vsyncadd [#allocation7], %s53
      %s55 = sshll.u32 [#allocation8], 4
      %s56 = int_to_ptr.vmem [resolvable:$true] %s55
      %61 = dma.hbm_to_vmem [thread:$0]  %s5, 8192, %s56, [#allocation7], 512, 512, 32
    $region25: #{lstm_classifier_forward.1} parent=1 // pred_fallthru
      _
    // Predicated region
    $region26: #{lstm_classifier_forward.1} parent=1 // pred_check
      _
    $region27: #{lstm_classifier_forward.1} parent=1 // pred_check_branch
      %63 = sbr.rel (0) target = $region29
    $region28: #{lstm_classifier_forward.1} parent=1 // pred_region
      _
    $region29: #{lstm_classifier_forward.1} parent=1 // pred_fallthru
      _
    // Predicated region
    $region30: #{lstm_classifier_forward.1} parent=1 // pred_check
      _
    $region31: #{lstm_classifier_forward.1} parent=1 // pred_check_branch
      %65 = sbr.rel (0) target = $region33
    $region32: #{lstm_classifier_forward.1} parent=1 // pred_region
      _
    $region33: #{lstm_classifier_forward.1} parent=1 // pred_fallthru
      _
    // Predicated region
    $region34: #{lstm_classifier_forward.1} parent=1 // pred_check
      _
    $region35: #{lstm_classifier_forward.1} parent=1 // pred_check_branch
      %67 = sbr.rel (0) target = $region37
    $region36: #{lstm_classifier_forward.1} parent=1 // pred_region
      _
    $region37: #{lstm_classifier_forward.1} parent=1 // pred_fallthru
      _
    // Predicated region
    $region38: #{lstm_classifier_forward.1} parent=1 // pred_check
      _
    $region39: #{lstm_classifier_forward.1} parent=1 // pred_check_branch
      %69 = sbr.rel (0) target = $region41
    $region40: #{lstm_classifier_forward.1} parent=1 // pred_region
      _
    $region41: #{lstm_classifier_forward.1} parent=1 // pred_fallthru
      _
    // Predicated region
    $region42: #{lstm_classifier_forward.1} parent=1 // pred_check
      _
    $region43: #{lstm_classifier_forward.1} parent=1 // pred_check_branch
      %71 = sbr.rel (0) target = $region45
    $region44: #{lstm_classifier_forward.1} parent=1 // pred_region
      _
    $region45: #{lstm_classifier_forward.1} parent=1 // pred_fallthru
      _
    // Predicated region
    $region46: #{lstm_classifier_forward.1} parent=1 // pred_check
      _
    $region47: #{lstm_classifier_forward.1} parent=1 // pred_check_branch
      %73 = sbr.rel (0) target = $region49
    $region48: #{lstm_classifier_forward.1} parent=1 // pred_region
      %74 = dma.done [#allocation5], 8192
    $region49: #{lstm_classifier_forward.1} parent=1 // pred_fallthru
      _
    // Predicated region
    $region50: #{lstm_classifier_forward.1} parent=1 // pred_check
      _
    $region51: #{lstm_classifier_forward.1} parent=1 // pred_check_branch
      %76 = sbr.rel (0) target = $region53
    $region52: #{lstm_classifier_forward.1} parent=1 // pred_region
      %77 = dma.done [#allocation7], 8192
    $region53: #{lstm_classifier_forward.1} parent=1 // pred_fallthru
      _
    // Predicated region
    $region54: #{lstm_classifier_forward.1} parent=1 // pred_check
      _
    $region55: #{lstm_classifier_forward.1} parent=1 // pred_check_branch
      %79 = sbr.rel (0) target = $region57
    $region56: #{lstm_classifier_forward.1} parent=1 // pred_region
      %80 = dma.done [#allocation7], 8192
    $region57: #{lstm_classifier_forward.1} parent=1 // pred_fallthru
      _
    %v81 = vld [vmem:[%s0] sm:$0xff]
    %v82 = vld [vmem:[%s0 + $0x8] sm:$0xff]
    %v83 = vld [vmem:[%s1] sm:$0xff]
    %v84 = vld [vmem:[%s1 + $0x8] sm:$0xff]
    %v85 = vld [vmem:[%s1 + $0x10] sm:$0xff]
    %v86 = vld [vmem:[%s1 + $0x18] sm:$0xff]
    %v87 = vld [vmem:[%s1 + $0x20] sm:$0x1f]
    %v88 = vld [vmem:[%s1 + $0x28] sm:$0x1f]
    %v89 = vld [vmem:[%s1 + $0x30] sm:$0x1f]
    %v90 = vld [vmem:[%s1 + $0x38] sm:$0x1f]
    %v91 = vld [vmem:[%s3] sm:$0xf]
    %v93 = vlaneseq
    %v94 = vshrl.u32 %v93, 7
    %v95 = vsub.s32 0, %v94
    %v96 = vrot.slane %v91, %v95
    %v97 = vlaneseq
    %v98 = vshrl.u32 %v97, 7
    %v99 = vsub.s32 1, %v98
    %v100 = vrot.slane %v91, %v99
    %v101 = vlaneseq
    %v102 = vshrl.u32 %v101, 7
    %v103 = vsub.s32 2, %v102
    %v104 = vrot.slane %v91, %v103
    %v105 = vlaneseq
    %v106 = vshrl.u32 %v105, 7
    %v107 = vsub.s32 3, %v106
    %v108 = vrot.slane %v91, %v107
    %vm113 = vcmask 105472
    %v115 = vsel %vm113, %v81, 0
    %v118 = vsel %vm113, %v82, 0
    %vm120 = vcmask 1044480
    %v122 = vsel %vm120, %v87, 0
    %v125 = vsel %vm120, %v88, 0
    %v128 = vsel %vm120, %v89, 0
    %v131 = vsel %vm120, %v90, 0
    %133 = vmatprep.subr.mxu0 %v84
    %134 = vmatpush1.msra.mxu0 %v83
    %135 = vmatprep.subr.mxu0 %v125
    %136 = vmatpush1.msra.mxu0 %v122
    %137 = vmatprep.subr.mxu0 0.0
    %138 = vmatpush1.msra.mxu0 0.0
    %139 = vmatprep.subr.mxu0 0.0
    %140 = vmatpush1.msra.mxu0 0.0
    %141 = vmatprep.subr.mxu0 0.0
    %142 = vmatpush1.msra.mxu0 0.0
    %143 = vmatprep.subr.mxu0 0.0
    %144 = vmatpush1.msra.mxu0 0.0
    %145 = vmatprep.subr.mxu0 0.0
    %146 = vmatpush1.msra.mxu0 0.0
    %147 = vmatprep.subr.mxu0 0.0
    %148 = vmatpush1.msra.mxu0 0.0
    %149 = vmatprep.subr.mxu0 0.0
    %150 = vmatpush1.msra.mxu0 0.0
    %151 = vmatprep.subr.mxu0 0.0
    %152 = vmatpush1.msra.mxu0 0.0
    %153 = vmatprep.subr.mxu0 0.0
    %154 = vmatpush1.msra.mxu0 0.0
    %155 = vmatprep.subr.mxu0 0.0
    %156 = vmatpush1.msra.mxu0 0.0
    %157 = vmatprep.subr.mxu0 0.0
    %158 = vmatpush1.msra.mxu0 0.0
    %159 = vmatprep.subr.mxu0 0.0
    %160 = vmatpush1.msra.mxu0 0.0
    %161 = vmatprep.subr.mxu0 0.0
    %162 = vmatpush1.msra.mxu0 0.0
    %163 = vmatprep.subr.mxu0 0.0
    %164 = vmatpush1.msra.mxu0 0.0
    %165 = vmatprep.subr.mxu0 0.0
    %166 = vmatpush1.msra.mxu0 0.0
    %167 = vmatprep.subr.mxu0 0.0
    %168 = vmatpush1.msra.mxu0 0.0
    %169 = vmatprep.subr.mxu0 0.0
    %170 = vmatpush1.msra.mxu0 0.0
    %171 = vmatprep.subr.mxu0 0.0
    %172 = vmatpush1.msra.mxu0 0.0
    %173 = vmatprep.subr.mxu0 0.0
    %174 = vmatpush1.msra.mxu0 0.0
    %175 = vmatprep.subr.mxu0 0.0
    %176 = vmatpush1.msra.mxu0 0.0
    %177 = vmatprep.subr.mxu0 0.0
    %178 = vmatpush1.msra.mxu0 0.0
    %179 = vmatprep.subr.mxu0 0.0
    %180 = vmatpush1.msra.mxu0 0.0
    %181 = vmatprep.subr.mxu0 0.0
    %182 = vmatpush1.msra.mxu0 0.0
    %183 = vmatprep.subr.mxu0 0.0
    %184 = vmatpush1.msra.mxu0 0.0
    %185 = vmatprep.subr.mxu0 0.0
    %186 = vmatpush1.msra.mxu0 0.0
    %187 = vmatprep.subr.mxu0 0.0
    %188 = vmatpush1.msra.mxu0 0.0
    %189 = vmatprep.subr.mxu0 0.0
    %190 = vmatpush1.msra.mxu0 0.0
    %191 = vmatprep.subr.mxu0 0.0
    %192 = vmatpush1.msra.mxu0 0.0
    %193 = vmatprep.subr.mxu0 0.0
    %194 = vmatpush1.msra.mxu0 0.0
    %195 = vmatprep.subr.mxu0 0.0
    %196 = vmatpush1.msra.mxu0 0.0
    %197 = vmatprep.mubr.f32.mxu0 0.0
    %198 = vmatmul.mubr.f32.gmra.mrb[0].mxu0 %v115
    %v199 = vpop.f32.mrb[0].mxu0
    %v200 = vadd.f32 %v96, %v199
    %v201 = vpop.f32.mrb[0].mxu0
    %v202 = vadd.f32 %v100, %v201
    %203 = vmatprep.mubr.f32.mxu0 0.0
    %204 = vmatmul.mubr.f32.gmra.mrb[0].mxu0 %v118
    %v205 = vpop.f32.mrb[0].mxu0
    %v206 = vadd.f32 %v96, %v205
    %v207 = vpop.f32.mrb[0].mxu0
    %v208 = vadd.f32 %v100, %v207
    %209 = vdwg.mxu0
    %210 = vmatprep.subr.mxu0 %v86
    %211 = vmatpush1.msra.mxu0 %v85
    %212 = vmatprep.subr.mxu0 %v131
    %213 = vmatpush1.msra.mxu0 %v128
    %214 = vmatprep.subr.mxu0 0.0
    %215 = vmatpush1.msra.mxu0 0.0
    %216 = vmatprep.subr.mxu0 0.0
    %217 = vmatpush1.msra.mxu0 0.0
    %218 = vmatprep.subr.mxu0 0.0
    %219 = vmatpush1.msra.mxu0 0.0
    %220 = vmatprep.subr.mxu0 0.0
    %221 = vmatpush1.msra.mxu0 0.0
    %222 = vmatprep.subr.mxu0 0.0
    %223 = vmatpush1.msra.mxu0 0.0
    %224 = vmatprep.subr.mxu0 0.0
    %225 = vmatpush1.msra.mxu0 0.0
    %226 = vmatprep.subr.mxu0 0.0
    %227 = vmatpush1.msra.mxu0 0.0
    %228 = vmatprep.subr.mxu0 0.0
    %229 = vmatpush1.msra.mxu0 0.0
    %230 = vmatprep.subr.mxu0 0.0
    %231 = vmatpush1.msra.mxu0 0.0
    %232 = vmatprep.subr.mxu0 0.0
    %233 = vmatpush1.msra.mxu0 0.0
    %234 = vmatprep.subr.mxu0 0.0
    %235 = vmatpush1.msra.mxu0 0.0
    %236 = vmatprep.subr.mxu0 0.0
    %237 = vmatpush1.msra.mxu0 0.0
    %238 = vmatprep.subr.mxu0 0.0
    %239 = vmatpush1.msra.mxu0 0.0
    %240 = vmatprep.subr.mxu0 0.0
    %241 = vmatpush1.msra.mxu0 0.0
    %242 = vmatprep.subr.mxu0 0.0
    %243 = vmatpush1.msra.mxu0 0.0
    %244 = vmatprep.subr.mxu0 0.0
    %245 = vmatpush1.msra.mxu0 0.0
    %246 = vmatprep.subr.mxu0 0.0
    %247 = vmatpush1.msra.mxu0 0.0
    %248 = vmatprep.subr.mxu0 0.0
    %249 = vmatpush1.msra.mxu0 0.0
    %250 = vmatprep.subr.mxu0 0.0
    %251 = vmatpush1.msra.mxu0 0.0
    %252 = vmatprep.subr.mxu0 0.0
    %253 = vmatpush1.msra.mxu0 0.0
    %254 = vmatprep.subr.mxu0 0.0
    %255 = vmatpush1.msra.mxu0 0.0
    %256 = vmatprep.subr.mxu0 0.0
    %257 = vmatpush1.msra.mxu0 0.0
    %258 = vmatprep.subr.mxu0 0.0
    %259 = vmatpush1.msra.mxu0 0.0
    %260 = vmatprep.subr.mxu0 0.0
    %261 = vmatpush1.msra.mxu0 0.0
    %262 = vmatprep.subr.mxu0 0.0
    %263 = vmatpush1.msra.mxu0 0.0
    %264 = vmatprep.subr.mxu0 0.0
    %265 = vmatpush1.msra.mxu0 0.0
    %266 = vmatprep.subr.mxu0 0.0
    %267 = vmatpush1.msra.mxu0 0.0
    %268 = vmatprep.subr.mxu0 0.0
    %269 = vmatpush1.msra.mxu0 0.0
    %270 = vmatprep.subr.mxu0 0.0
    %271 = vmatpush1.msra.mxu0 0.0
    %272 = vmatprep.subr.mxu0 0.0
    %273 = vmatpush1.msra.mxu0 0.0
    %274 = vmatprep.mubr.f32.mxu0 0.0
    %275 = vmatmul.mubr.f32.gmra.mrb[0].mxu0 %v115
    %v276 = vpop.f32.mrb[0].mxu0
    %v277 = vadd.f32 %v104, %v276
    %v278 = vpop.f32.mrb[0].mxu0
    %v279 = vadd.f32 %v108, %v278
    %280 = vmatprep.mubr.f32.mxu0 0.0
    %281 = vmatmul.mubr.f32.gmra.mrb[0].mxu0 %v118
    %v282 = vpop.f32.mrb[0].mxu0
    %v283 = vadd.f32 %v104, %v282
    %v284 = vpop.f32.mrb[0].mxu0
    %v285 = vadd.f32 %v108, %v284
    %286 = vdwg.mxu0
    %v287 = vld [vmem:[#allocation4] sm:$0xff]
    %v288 = vld [vmem:[#allocation4 + $0x8] sm:$0xff]
    %v289 = vld [vmem:[#allocation4 + $0x10] sm:$0xff]
    %v290 = vld [vmem:[#allocation4 + $0x18] sm:$0xff]
    %v291 = vld [vmem:[#allocation4 + $0x20] sm:$0xff]
    %v292 = vld [vmem:[#allocation4 + $0x28] sm:$0xff]
    %v293 = vld [vmem:[#allocation4 + $0x30] sm:$0xff]
    %v294 = vld [vmem:[#allocation4 + $0x38] sm:$0xff]
    %v295 = vld [vmem:[#allocation4 + $0x40] sm:$0xff]
    %v296 = vld [vmem:[#allocation4 + $0x48] sm:$0xff]
    %v297 = vld [vmem:[#allocation4 + $0x50] sm:$0xff]
    %v298 = vld [vmem:[#allocation4 + $0x58] sm:$0xff]
    %v299 = vld [vmem:[#allocation4 + $0x60] sm:$0xff]
    %v300 = vld [vmem:[#allocation4 + $0x68] sm:$0xff]
    %v301 = vld [vmem:[#allocation4 + $0x70] sm:$0xff]
    %v302 = vld [vmem:[#allocation4 + $0x78] sm:$0xff]
    %v303 = vld [vmem:[#allocation4 + $0x80] sm:$0xff]
    %v304 = vld [vmem:[#allocation4 + $0x88] sm:$0xff]
    %v305 = vld [vmem:[#allocation4 + $0x90] sm:$0xff]
    %v306 = vld [vmem:[#allocation4 + $0x98] sm:$0xff]
    %v307 = vld [vmem:[#allocation4 + $0xa0] sm:$0xff]
    %v308 = vld [vmem:[#allocation4 + $0xa8] sm:$0xff]
    %v309 = vld [vmem:[#allocation4 + $0xb0] sm:$0xff]
    %v310 = vld [vmem:[#allocation4 + $0xb8] sm:$0xff]
    %v311 = vld [vmem:[#allocation4 + $0xc0] sm:$0xff]
    %v312 = vld [vmem:[#allocation4 + $0xc8] sm:$0xff]
    %v313 = vld [vmem:[#allocation4 + $0xd0] sm:$0xff]
    %v314 = vld [vmem:[#allocation4 + $0xd8] sm:$0xff]
    %v315 = vld [vmem:[#allocation4 + $0xe0] sm:$0xff]
    %v316 = vld [vmem:[#allocation4 + $0xe8] sm:$0xff]
    %v317 = vld [vmem:[#allocation4 + $0xf0] sm:$0xff]
    %v318 = vld [vmem:[#allocation4 + $0xf8] sm:$0xff]
    %v319 = vld [vmem:[#allocation4 + $0x100] sm:$0xff]
    %v320 = vld [vmem:[#allocation4 + $0x108] sm:$0xff]
    %v321 = vld [vmem:[#allocation4 + $0x110] sm:$0xff]
    %v322 = vld [vmem:[#allocation4 + $0x118] sm:$0xff]
    %v323 = vld [vmem:[#allocation4 + $0x120] sm:$0xff]
    %v324 = vld [vmem:[#allocation4 + $0x128] sm:$0xff]
    %v325 = vld [vmem:[#allocation4 + $0x130] sm:$0xff]
    %v326 = vld [vmem:[#allocation4 + $0x138] sm:$0xff]
    %v327 = vld [vmem:[#allocation4 + $0x140] sm:$0xff]
    %v328 = vld [vmem:[#allocation4 + $0x148] sm:$0xff]
    %v329 = vld [vmem:[#allocation4 + $0x150] sm:$0xff]
    %v330 = vld [vmem:[#allocation4 + $0x158] sm:$0xff]
    %v331 = vld [vmem:[#allocation4 + $0x160] sm:$0xff]
    %v332 = vld [vmem:[#allocation4 + $0x168] sm:$0xff]
    %v333 = vld [vmem:[#allocation4 + $0x170] sm:$0xff]
    %v334 = vld [vmem:[#allocation4 + $0x178] sm:$0xff]
    %v335 = vld [vmem:[#allocation4 + $0x180] sm:$0xff]
    %v336 = vld [vmem:[#allocation4 + $0x188] sm:$0xff]
    %v337 = vld [vmem:[#allocation4 + $0x190] sm:$0xff]
    %v338 = vld [vmem:[#allocation4 + $0x198] sm:$0xff]
    %v339 = vld [vmem:[#allocation4 + $0x1a0] sm:$0xff]
    %v340 = vld [vmem:[#allocation4 + $0x1a8] sm:$0xff]
    %v341 = vld [vmem:[#allocation4 + $0x1b0] sm:$0xff]
    %v342 = vld [vmem:[#allocation4 + $0x1b8] sm:$0xff]
    %v343 = vld [vmem:[#allocation4 + $0x1c0] sm:$0xff]
    %v344 = vld [vmem:[#allocation4 + $0x1c8] sm:$0xff]
    %v345 = vld [vmem:[#allocation4 + $0x1d0] sm:$0xff]
    %v346 = vld [vmem:[#allocation4 + $0x1d8] sm:$0xff]
    %v347 = vld [vmem:[#allocation4 + $0x1e0] sm:$0xff]
    %v348 = vld [vmem:[#allocation4 + $0x1e8] sm:$0xff]
    %v349 = vld [vmem:[#allocation4 + $0x1f0] sm:$0xff]
    %v350 = vld [vmem:[#allocation4 + $0x1f8] sm:$0xff]
    %351 = vmatprep.subr.mxu0 %v288
    %352 = vmatpush1.msra.mxu0 %v287
    %353 = vmatprep.subr.mxu0 %v292
    %354 = vmatpush1.msra.mxu0 %v291
    %355 = vmatprep.subr.mxu0 %v296
    %356 = vmatpush1.msra.mxu0 %v295
    %357 = vmatprep.subr.mxu0 %v300
    %358 = vmatpush1.msra.mxu0 %v299
    %359 = vmatprep.subr.mxu0 %v304
    %360 = vmatpush1.msra.mxu0 %v303
    %361 = vmatprep.subr.mxu0 %v308
    %362 = vmatpush1.msra.mxu0 %v307
    %363 = vmatprep.subr.mxu0 %v312
    %364 = vmatpush1.msra.mxu0 %v311
    %365 = vmatprep.subr.mxu0 %v316
    %366 = vmatpush1.msra.mxu0 %v315
    %367 = vmatprep.subr.mxu0 %v320
    %368 = vmatpush1.msra.mxu0 %v319
    %369 = vmatprep.subr.mxu0 %v324
    %370 = vmatpush1.msra.mxu0 %v323
    %371 = vmatprep.subr.mxu0 %v328
    %372 = vmatpush1.msra.mxu0 %v327
    %373 = vmatprep.subr.mxu0 %v332
    %374 = vmatpush1.msra.mxu0 %v331
    %375 = vmatprep.subr.mxu0 %v336
    %376 = vmatpush1.msra.mxu0 %v335
    %377 = vmatprep.subr.mxu0 %v340
    %378 = vmatpush1.msra.mxu0 %v339
    %379 = vmatprep.subr.mxu0 %v344
    %380 = vmatpush1.msra.mxu0 %v343
    %381 = vmatprep.subr.mxu0 %v348
    %382 = vmatpush1.msra.mxu0 %v347
    %383 = vmatprep.subr.mxu0 0.0
    %384 = vmatpush1.msra.mxu0 0.0
    %385 = vmatprep.subr.mxu0 0.0
    %386 = vmatpush1.msra.mxu0 0.0
    %387 = vmatprep.subr.mxu0 0.0
    %388 = vmatpush1.msra.mxu0 0.0
    %389 = vmatprep.subr.mxu0 0.0
    %390 = vmatpush1.msra.mxu0 0.0
    %391 = vmatprep.subr.mxu0 0.0
    %392 = vmatpush1.msra.mxu0 0.0
    %393 = vmatprep.subr.mxu0 0.0
    %394 = vmatpush1.msra.mxu0 0.0
    %395 = vmatprep.subr.mxu0 0.0
    %396 = vmatpush1.msra.mxu0 0.0
    %397 = vmatprep.subr.mxu0 0.0
    %398 = vmatpush1.msra.mxu0 0.0
    %399 = vmatprep.subr.mxu0 0.0
    %400 = vmatpush1.msra.mxu0 0.0
    %401 = vmatprep.subr.mxu0 0.0
    %402 = vmatpush1.msra.mxu0 0.0
    %403 = vmatprep.subr.mxu0 0.0
    %404 = vmatpush1.msra.mxu0 0.0
    %405 = vmatprep.subr.mxu0 0.0
    %406 = vmatpush1.msra.mxu0 0.0
    %407 = vmatprep.subr.mxu0 0.0
    %408 = vmatpush1.msra.mxu0 0.0
    %409 = vmatprep.subr.mxu0 0.0
    %410 = vmatpush1.msra.mxu0 0.0
    %411 = vmatprep.subr.mxu0 0.0
    %412 = vmatpush1.msra.mxu0 0.0
    %413 = vmatprep.subr.mxu0 0.0
    %414 = vmatpush1.msra.mxu0 0.0
    %415 = vmatprep.mubr.f32.mxu0 0.0
    %416 = vmatmul.mubr.f32.gmra.mrb[0].mxu0 0.0
    %v417 = vpop.f32.mrb[0].mxu0
    %v418 = vadd.f32 0.0, %v417
    %v419 = vpop.f32.mrb[0].mxu0
    %v420 = vadd.f32 0.0, %v419
    %421 = vdwg.mxu0
    %422 = vmatprep.subr.mxu0 %v290
    %423 = vmatpush1.msra.mxu0 %v289
    %424 = vmatprep.subr.mxu0 %v294
    %425 = vmatpush1.msra.mxu0 %v293
    %426 = vmatprep.subr.mxu0 %v298
    %427 = vmatpush1.msra.mxu0 %v297
    %428 = vmatprep.subr.mxu0 %v302
    %429 = vmatpush1.msra.mxu0 %v301
    %430 = vmatprep.subr.mxu0 %v306
    %431 = vmatpush1.msra.mxu0 %v305
    %432 = vmatprep.subr.mxu0 %v310
    %433 = vmatpush1.msra.mxu0 %v309
    %434 = vmatprep.subr.mxu0 %v314
    %435 = vmatpush1.msra.mxu0 %v313
    %436 = vmatprep.subr.mxu0 %v318
    %437 = vmatpush1.msra.mxu0 %v317
    %438 = vmatprep.subr.mxu0 %v322
    %439 = vmatpush1.msra.mxu0 %v321
    %440 = vmatprep.subr.mxu0 %v326
    %441 = vmatpush1.msra.mxu0 %v325
    %442 = vmatprep.subr.mxu0 %v330
    %443 = vmatpush1.msra.mxu0 %v329
    %444 = vmatprep.subr.mxu0 %v334
    %445 = vmatpush1.msra.mxu0 %v333
    %446 = vmatprep.subr.mxu0 %v338
    %447 = vmatpush1.msra.mxu0 %v337
    %448 = vmatprep.subr.mxu0 %v342
    %449 = vmatpush1.msra.mxu0 %v341
    %450 = vmatprep.subr.mxu0 %v346
    %451 = vmatpush1.msra.mxu0 %v345
    %452 = vmatprep.subr.mxu0 %v350
    %453 = vmatpush1.msra.mxu0 %v349
    %454 = vmatprep.subr.mxu0 0.0
    %455 = vmatpush1.msra.mxu0 0.0
    %456 = vmatprep.subr.mxu0 0.0
    %457 = vmatpush1.msra.mxu0 0.0
    %458 = vmatprep.subr.mxu0 0.0
    %459 = vmatpush1.msra.mxu0 0.0
    %460 = vmatprep.subr.mxu0 0.0
    %461 = vmatpush1.msra.mxu0 0.0
    %462 = vmatprep.subr.mxu0 0.0
    %463 = vmatpush1.msra.mxu0 0.0
    %464 = vmatprep.subr.mxu0 0.0
    %465 = vmatpush1.msra.mxu0 0.0
    %466 = vmatprep.subr.mxu0 0.0
    %467 = vmatpush1.msra.mxu0 0.0
    %468 = vmatprep.subr.mxu0 0.0
    %469 = vmatpush1.msra.mxu0 0.0
    %470 = vmatprep.subr.mxu0 0.0
    %471 = vmatpush1.msra.mxu0 0.0
    %472 = vmatprep.subr.mxu0 0.0
    %473 = vmatpush1.msra.mxu0 0.0
    %474 = vmatprep.subr.mxu0 0.0
    %475 = vmatpush1.msra.mxu0 0.0
    %476 = vmatprep.subr.mxu0 0.0
    %477 = vmatpush1.msra.mxu0 0.0
    %478 = vmatprep.subr.mxu0 0.0
    %479 = vmatpush1.msra.mxu0 0.0
    %480 = vmatprep.subr.mxu0 0.0
    %481 = vmatpush1.msra.mxu0 0.0
    %482 = vmatprep.subr.mxu0 0.0
    %483 = vmatpush1.msra.mxu0 0.0
    %484 = vmatprep.subr.mxu0 0.0
    %485 = vmatpush1.msra.mxu0 0.0
    %486 = vmatprep.mubr.f32.mxu0 0.0
    %487 = vmatmul.mubr.f32.gmra.mrb[0].mxu0 0.0
    %v488 = vpop.f32.mrb[0].mxu0
    %v489 = vadd.f32 0.0, %v488
    %v490 = vpop.f32.mrb[0].mxu0
    %v491 = vadd.f32 0.0, %v490
    %492 = vdwg.mxu0
    %v497 = vrot.slane %v418, 1
    %v498 = vrot.slane %v420, 1
    %v499 = vrot.slane %v489, 1
    %v500 = vrot.slane %v491, 1
    %v509 = vadd.f32 %v200, %v418
    %v510 = vadd.f32 %v202, %v420
    %v511 = vadd.f32 %v277, %v489
    %v512 = vadd.f32 %v279, %v491
    %v513 = vadd.f32 %v206, %v497
    %v514 = vadd.f32 %v208, %v498
    %v515 = vadd.f32 %v283, %v499
    %v516 = vadd.f32 %v285, %v500
    %v517 = vxor.u32 %v509, 2147483648
    %v518 = vxor.u32 %v513, 2147483648
    %v519 = vmul.f32 %v517, 1.442695
    %v520 = vpow.pop %v519
    %v521 = vmul.f32 %v518, 1.442695
    %v522 = vpow.pop %v521
    %v523 = vadd.f32 %v520, 1.0
    %v524 = vadd.f32 %v522, 1.0
    %v525 = vrcp.pop %v523
    %v526 = vmul.f32 1.0, %v525
    %v527 = vrcp.pop %v524
    %v528 = vmul.f32 1.0, %v527
    %v529 = vxor.u32 %v510, 2147483648
    %v530 = vxor.u32 %v514, 2147483648
    %v531 = vmul.f32 %v529, 1.442695
    %v532 = vpow.pop %v531
    %v533 = vmul.f32 %v530, 1.442695
    %v534 = vpow.pop %v533
    %v535 = vadd.f32 %v532, 1.0
    %v536 = vadd.f32 %v534, 1.0
    %v537 = vrcp.pop %v535
    %v538 = vmul.f32 1.0, %v537
    %v539 = vrcp.pop %v536
    %v540 = vmul.f32 1.0, %v539
    %v541 = vtanh.pop %v511
    %v542 = vtanh.pop %v515
    %v543 = vxor.u32 %v512, 2147483648
    %v544 = vxor.u32 %v516, 2147483648
    %v545 = vmul.f32 %v543, 1.442695
    %v546 = vpow.pop %v545
    %v547 = vmul.f32 %v544, 1.442695
    %v548 = vpow.pop %v547
    %v549 = vadd.f32 %v546, 1.0
    %v550 = vadd.f32 %v548, 1.0
    %v551 = vrcp.pop %v549
    %v552 = vmul.f32 1.0, %v551
    %v553 = vrcp.pop %v550
    %v554 = vmul.f32 1.0, %v553
    %v555 = vmul.f32 %v538, 0.0
    %v556 = vmul.f32 %v540, 0.0
    %v557 = vmul.f32 %v526, %v541
    %v558 = vmul.f32 %v528, %v542
    %v559 = vadd.f32 %v555, %v557
    %v560 = vadd.f32 %v556, %v558
    %v561 = vtanh.pop %v559
    %v562 = vtanh.pop %v560
    %v563 = vmul.f32 %v552, %v561
    %v564 = vmul.f32 %v554, %v562
    %v567 = vrot.slane %v564, 7
    %vm568 = vcmask 1041409
    %v569 = vsel %vm568, %v567, %v563
    %571 = vst [vmem:[#allocation2] sm:$0x3] %v569
    %v572 = vld [vmem:[#allocation4] sm:$0xff]
    %v573 = vld [vmem:[#allocation4 + $0x8] sm:$0xff]
    %v574 = vld [vmem:[#allocation4 + $0x10] sm:$0xff]
    %v575 = vld [vmem:[#allocation4 + $0x18] sm:$0xff]
    %v576 = vld [vmem:[#allocation4 + $0x20] sm:$0xff]
    %v577 = vld [vmem:[#allocation4 + $0x28] sm:$0xff]
    %v578 = vld [vmem:[#allocation4 + $0x30] sm:$0xff]
    %v579 = vld [vmem:[#allocation4 + $0x38] sm:$0xff]
    %v580 = vld [vmem:[#allocation4 + $0x40] sm:$0xff]
    %v581 = vld [vmem:[#allocation4 + $0x48] sm:$0xff]
    %v582 = vld [vmem:[#allocation4 + $0x50] sm:$0xff]
    %v583 = vld [vmem:[#allocation4 + $0x58] sm:$0xff]
    %v584 = vld [vmem:[#allocation4 + $0x60] sm:$0xff]
    %v585 = vld [vmem:[#allocation4 + $0x68] sm:$0xff]
    %v586 = vld [vmem:[#allocation4 + $0x70] sm:$0xff]
    %v587 = vld [vmem:[#allocation4 + $0x78] sm:$0xff]
    %v588 = vld [vmem:[#allocation4 + $0x80] sm:$0xff]
    %v589 = vld [vmem:[#allocation4 + $0x88] sm:$0xff]
    %v590 = vld [vmem:[#allocation4 + $0x90] sm:$0xff]
    %v591 = vld [vmem:[#allocation4 + $0x98] sm:$0xff]
    %v592 = vld [vmem:[#allocation4 + $0xa0] sm:$0xff]
    %v593 = vld [vmem:[#allocation4 + $0xa8] sm:$0xff]
    %v594 = vld [vmem:[#allocation4 + $0xb0] sm:$0xff]
    %v595 = vld [vmem:[#allocation4 + $0xb8] sm:$0xff]
    %v596 = vld [vmem:[#allocation4 + $0xc0] sm:$0xff]
    %v597 = vld [vmem:[#allocation4 + $0xc8] sm:$0xff]
    %v598 = vld [vmem:[#allocation4 + $0xd0] sm:$0xff]
    %v599 = vld [vmem:[#allocation4 + $0xd8] sm:$0xff]
    %v600 = vld [vmem:[#allocation4 + $0xe0] sm:$0xff]
    %v601 = vld [vmem:[#allocation4 + $0xe8] sm:$0xff]
    %v602 = vld [vmem:[#allocation4 + $0xf0] sm:$0xff]
    %v603 = vld [vmem:[#allocation4 + $0xf8] sm:$0xff]
    %v604 = vld [vmem:[#allocation4 + $0x100] sm:$0xff]
    %v605 = vld [vmem:[#allocation4 + $0x108] sm:$0xff]
    %v606 = vld [vmem:[#allocation4 + $0x110] sm:$0xff]
    %v607 = vld [vmem:[#allocation4 + $0x118] sm:$0xff]
    %v608 = vld [vmem:[#allocation4 + $0x120] sm:$0xff]
    %v609 = vld [vmem:[#allocation4 + $0x128] sm:$0xff]
    %v610 = vld [vmem:[#allocation4 + $0x130] sm:$0xff]
    %v611 = vld [vmem:[#allocation4 + $0x138] sm:$0xff]
    %v612 = vld [vmem:[#allocation4 + $0x140] sm:$0xff]
    %v613 = vld [vmem:[#allocation4 + $0x148] sm:$0xff]
    %v614 = vld [vmem:[#allocation4 + $0x150] sm:$0xff]
    %v615 = vld [vmem:[#allocation4 + $0x158] sm:$0xff]
    %v616 = vld [vmem:[#allocation4 + $0x160] sm:$0xff]
    %v617 = vld [vmem:[#allocation4 + $0x168] sm:$0xff]
    %v618 = vld [vmem:[#allocation4 + $0x170] sm:$0xff]
    %v619 = vld [vmem:[#allocation4 + $0x178] sm:$0xff]
    %v620 = vld [vmem:[#allocation4 + $0x180] sm:$0xff]
    %v621 = vld [vmem:[#allocation4 + $0x188] sm:$0xff]
    %v622 = vld [vmem:[#allocation4 + $0x190] sm:$0xff]
    %v623 = vld [vmem:[#allocation4 + $0x198] sm:$0xff]
    %v624 = vld [vmem:[#allocation4 + $0x1a0] sm:$0xff]
    %v625 = vld [vmem:[#allocation4 + $0x1a8] sm:$0xff]
    %v626 = vld [vmem:[#allocation4 + $0x1b0] sm:$0xff]
    %v627 = vld [vmem:[#allocation4 + $0x1b8] sm:$0xff]
    %v628 = vld [vmem:[#allocation4 + $0x1c0] sm:$0xff]
    %v629 = vld [vmem:[#allocation4 + $0x1c8] sm:$0xff]
    %v630 = vld [vmem:[#allocation4 + $0x1d0] sm:$0xff]
    %v631 = vld [vmem:[#allocation4 + $0x1d8] sm:$0xff]
    %v632 = vld [vmem:[#allocation4 + $0x1e0] sm:$0xff]
    %v633 = vld [vmem:[#allocation4 + $0x1e8] sm:$0xff]
    %v634 = vld [vmem:[#allocation4 + $0x1f0] sm:$0xff]
    %v635 = vld [vmem:[#allocation4 + $0x1f8] sm:$0xff]
    %636 = vmatprep.subr.mxu0 %v573
    %637 = vmatpush1.msra.mxu0 %v572
    %638 = vmatprep.subr.mxu0 %v577
    %639 = vmatpush1.msra.mxu0 %v576
    %640 = vmatprep.subr.mxu0 %v581
    %641 = vmatpush1.msra.mxu0 %v580
    %642 = vmatprep.subr.mxu0 %v585
    %643 = vmatpush1.msra.mxu0 %v584
    %644 = vmatprep.subr.mxu0 %v589
    %645 = vmatpush1.msra.mxu0 %v588
    %646 = vmatprep.subr.mxu0 %v593
    %647 = vmatpush1.msra.mxu0 %v592
    %648 = vmatprep.subr.mxu0 %v597
    %649 = vmatpush1.msra.mxu0 %v596
    %650 = vmatprep.subr.mxu0 %v601
    %651 = vmatpush1.msra.mxu0 %v600
    %652 = vmatprep.subr.mxu0 %v605
    %653 = vmatpush1.msra.mxu0 %v604
    %654 = vmatprep.subr.mxu0 %v609
    %655 = vmatpush1.msra.mxu0 %v608
    %656 = vmatprep.subr.mxu0 %v613
    %657 = vmatpush1.msra.mxu0 %v612
    %658 = vmatprep.subr.mxu0 %v617
    %659 = vmatpush1.msra.mxu0 %v616
    %660 = vmatprep.subr.mxu0 %v621
    %661 = vmatpush1.msra.mxu0 %v620
    %662 = vmatprep.subr.mxu0 %v625
    %663 = vmatpush1.msra.mxu0 %v624
    %664 = vmatprep.subr.mxu0 %v629
    %665 = vmatpush1.msra.mxu0 %v628
    %666 = vmatprep.subr.mxu0 %v633
    %667 = vmatpush1.msra.mxu0 %v632
    %668 = vmatprep.subr.mxu0 0.0
    %669 = vmatpush1.msra.mxu0 0.0
    %670 = vmatprep.subr.mxu0 0.0
    %671 = vmatpush1.msra.mxu0 0.0
    %672 = vmatprep.subr.mxu0 0.0
    %673 = vmatpush1.msra.mxu0 0.0
    %674 = vmatprep.subr.mxu0 0.0
    %675 = vmatpush1.msra.mxu0 0.0
    %676 = vmatprep.subr.mxu0 0.0
    %677 = vmatpush1.msra.mxu0 0.0
    %678 = vmatprep.subr.mxu0 0.0
    %679 = vmatpush1.msra.mxu0 0.0
    %680 = vmatprep.subr.mxu0 0.0
    %681 = vmatpush1.msra.mxu0 0.0
    %682 = vmatprep.subr.mxu0 0.0
    %683 = vmatpush1.msra.mxu0 0.0
    %684 = vmatprep.subr.mxu0 0.0
    %685 = vmatpush1.msra.mxu0 0.0
    %686 = vmatprep.subr.mxu0 0.0
    %687 = vmatpush1.msra.mxu0 0.0
    %688 = vmatprep.subr.mxu0 0.0
    %689 = vmatpush1.msra.mxu0 0.0
    %690 = vmatprep.subr.mxu0 0.0
    %691 = vmatpush1.msra.mxu0 0.0
    %692 = vmatprep.subr.mxu0 0.0
    %693 = vmatpush1.msra.mxu0 0.0
    %694 = vmatprep.subr.mxu0 0.0
    %695 = vmatpush1.msra.mxu0 0.0
    %696 = vmatprep.subr.mxu0 0.0
    %697 = vmatpush1.msra.mxu0 0.0
    %698 = vmatprep.subr.mxu0 0.0
    %699 = vmatpush1.msra.mxu0 0.0
    %700 = vmatprep.mubr.f32.mxu0 0.0
    %701 = vmatmul.mubr.f32.gmra.mrb[0].mxu0 %v569
    %v702 = vpop.f32.mrb[0].mxu0
    %v703 = vadd.f32 0.0, %v702
    %v704 = vpop.f32.mrb[0].mxu0
    %v705 = vadd.f32 0.0, %v704
    %706 = vdwg.mxu0
    %707 = vmatprep.subr.mxu0 %v575
    %708 = vmatpush1.msra.mxu0 %v574
    %709 = vmatprep.subr.mxu0 %v579
    %710 = vmatpush1.msra.mxu0 %v578
    %711 = vmatprep.subr.mxu0 %v583
    %712 = vmatpush1.msra.mxu0 %v582
    %713 = vmatprep.subr.mxu0 %v587
    %714 = vmatpush1.msra.mxu0 %v586
    %715 = vmatprep.subr.mxu0 %v591
    %716 = vmatpush1.msra.mxu0 %v590
    %717 = vmatprep.subr.mxu0 %v595
    %718 = vmatpush1.msra.mxu0 %v594
    %719 = vmatprep.subr.mxu0 %v599
    %720 = vmatpush1.msra.mxu0 %v598
    %721 = vmatprep.subr.mxu0 %v603
    %722 = vmatpush1.msra.mxu0 %v602
    %723 = vmatprep.subr.mxu0 %v607
    %724 = vmatpush1.msra.mxu0 %v606
    %725 = vmatprep.subr.mxu0 %v611
    %726 = vmatpush1.msra.mxu0 %v610
    %727 = vmatprep.subr.mxu0 %v615
    %728 = vmatpush1.msra.mxu0 %v614
    %729 = vmatprep.subr.mxu0 %v619
    %730 = vmatpush1.msra.mxu0 %v618
    %731 = vmatprep.subr.mxu0 %v623
    %732 = vmatpush1.msra.mxu0 %v622
    %733 = vmatprep.subr.mxu0 %v627
    %734 = vmatpush1.msra.mxu0 %v626
    %735 = vmatprep.subr.mxu0 %v631
    %736 = vmatpush1.msra.mxu0 %v630
    %737 = vmatprep.subr.mxu0 %v635
    %738 = vmatpush1.msra.mxu0 %v634
    %739 = vmatprep.subr.mxu0 0.0
    %740 = vmatpush1.msra.mxu0 0.0
    %741 = vmatprep.subr.mxu0 0.0
    %742 = vmatpush1.msra.mxu0 0.0
    %743 = vmatprep.subr.mxu0 0.0
    %744 = vmatpush1.msra.mxu0 0.0
    %745 = vmatprep.subr.mxu0 0.0
    %746 = vmatpush1.msra.mxu0 0.0
    %747 = vmatprep.subr.mxu0 0.0
    %748 = vmatpush1.msra.mxu0 0.0
    %749 = vmatprep.subr.mxu0 0.0
    %750 = vmatpush1.msra.mxu0 0.0
    %751 = vmatprep.subr.mxu0 0.0
    %752 = vmatpush1.msra.mxu0 0.0
    %753 = vmatprep.subr.mxu0 0.0
    %754 = vmatpush1.msra.mxu0 0.0
    %755 = vmatprep.subr.mxu0 0.0
    %756 = vmatpush1.msra.mxu0 0.0
    %757 = vmatprep.subr.mxu0 0.0
    %758 = vmatpush1.msra.mxu0 0.0
    %759 = vmatprep.subr.mxu0 0.0
    %760 = vmatpush1.msra.mxu0 0.0
    %761 = vmatprep.subr.mxu0 0.0
    %762 = vmatpush1.msra.mxu0 0.0
    %763 = vmatprep.subr.mxu0 0.0
    %764 = vmatpush1.msra.mxu0 0.0
    %765 = vmatprep.subr.mxu0 0.0
    %766 = vmatpush1.msra.mxu0 0.0
    %767 = vmatprep.subr.mxu0 0.0
    %768 = vmatpush1.msra.mxu0 0.0
    %769 = vmatprep.subr.mxu0 0.0
    %770 = vmatpush1.msra.mxu0 0.0
    %771 = vmatprep.mubr.f32.mxu0 0.0
    %772 = vmatmul.mubr.f32.gmra.mrb[0].mxu0 %v569
    %v773 = vpop.f32.mrb[0].mxu0
    %v774 = vadd.f32 0.0, %v773
    %v775 = vpop.f32.mrb[0].mxu0
    %v776 = vadd.f32 0.0, %v775
    %777 = vdwg.mxu0
    %v782 = vrot.slane %v703, 7
    %v783 = vrot.slane %v705, 7
    %v784 = vrot.slane %v774, 7
    %v785 = vrot.slane %v776, 7
    %v794 = vadd.f32 %v200, %v782
    %v795 = vadd.f32 %v202, %v783
    %v796 = vadd.f32 %v277, %v784
    %v797 = vadd.f32 %v279, %v785
    %v798 = vadd.f32 %v206, %v703
    %v799 = vadd.f32 %v208, %v705
    %v800 = vadd.f32 %v283, %v774
    %v801 = vadd.f32 %v285, %v776
    %v802 = vxor.u32 %v794, 2147483648
    %v803 = vxor.u32 %v798, 2147483648
    %v804 = vmul.f32 %v802, 1.442695
    %v805 = vpow.pop %v804
    %v806 = vmul.f32 %v803, 1.442695
    %v807 = vpow.pop %v806
    %v808 = vadd.f32 %v805, 1.0
    %v809 = vadd.f32 %v807, 1.0
    %v810 = vrcp.pop %v808
    %v811 = vmul.f32 1.0, %v810
    %v812 = vrcp.pop %v809
    %v813 = vmul.f32 1.0, %v812
    %v814 = vxor.u32 %v795, 2147483648
    %v815 = vxor.u32 %v799, 2147483648
    %v816 = vmul.f32 %v814, 1.442695
    %v817 = vpow.pop %v816
    %v818 = vmul.f32 %v815, 1.442695
    %v819 = vpow.pop %v818
    %v820 = vadd.f32 %v817, 1.0
    %v821 = vadd.f32 %v819, 1.0
    %v822 = vrcp.pop %v820
    %v823 = vmul.f32 1.0, %v822
    %v824 = vrcp.pop %v821
    %v825 = vmul.f32 1.0, %v824
    %v826 = vtanh.pop %v796
    %v827 = vtanh.pop %v800
    %v828 = vxor.u32 %v797, 2147483648
    %v829 = vxor.u32 %v801, 2147483648
    %v830 = vmul.f32 %v828, 1.442695
    %v831 = vpow.pop %v830
    %v832 = vmul.f32 %v829, 1.442695
    %v833 = vpow.pop %v832
    %v834 = vadd.f32 %v831, 1.0
    %v835 = vadd.f32 %v833, 1.0
    %v836 = vrcp.pop %v834
    %v837 = vmul.f32 1.0, %v836
    %v838 = vrcp.pop %v835
    %v839 = vmul.f32 1.0, %v838
    %v842 = vrot.slane %v559, 7
    %v843 = vrot.slane %v560, 7
    %v846 = vmul.f32 %v823, %v842
    %v847 = vmul.f32 %v825, %v843
    %v848 = vmul.f32 %v811, %v826
    %v849 = vmul.f32 %v813, %v827
    %v850 = vadd.f32 %v846, %v848
    %v851 = vadd.f32 %v847, %v849
    %v852 = vtanh.pop %v850
    %v853 = vtanh.pop %v851
    %v854 = vmul.f32 %v837, %v852
    %v855 = vmul.f32 %v839, %v853
    %v858 = vrot.slane %v855, 7
    %vm859 = vcmask 1042434
    %v860 = vsel %vm859, %v858, %v854
    %s862 = scalar_lea.vmem [#allocation2], 2
    %863 = vst [vmem:[%s862 - $0x1] sm:$0x6] %v860
    %v864 = vld [vmem:[#allocation4] sm:$0xff]
    %v865 = vld [vmem:[#allocation4 + $0x8] sm:$0xff]
    %v866 = vld [vmem:[#allocation4 + $0x10] sm:$0xff]
    %v867 = vld [vmem:[#allocation4 + $0x18] sm:$0xff]
    %v868 = vld [vmem:[#allocation4 + $0x20] sm:$0xff]
    %v869 = vld [vmem:[#allocation4 + $0x28] sm:$0xff]
    %v870 = vld [vmem:[#allocation4 + $0x30] sm:$0xff]
    %v871 = vld [vmem:[#allocation4 + $0x38] sm:$0xff]
    %v872 = vld [vmem:[#allocation4 + $0x40] sm:$0xff]
    %v873 = vld [vmem:[#allocation4 + $0x48] sm:$0xff]
    %v874 = vld [vmem:[#allocation4 + $0x50] sm:$0xff]
    %v875 = vld [vmem:[#allocation4 + $0x58] sm:$0xff]
    %v876 = vld [vmem:[#allocation4 + $0x60] sm:$0xff]
    %v877 = vld [vmem:[#allocation4 + $0x68] sm:$0xff]
    %v878 = vld [vmem:[#allocation4 + $0x70] sm:$0xff]
    %v879 = vld [vmem:[#allocation4 + $0x78] sm:$0xff]
    %v880 = vld [vmem:[#allocation4 + $0x80] sm:$0xff]
    %v881 = vld [vmem:[#allocation4 + $0x88] sm:$0xff]
    %v882 = vld [vmem:[#allocation4 + $0x90] sm:$0xff]
    %v883 = vld [vmem:[#allocation4 + $0x98] sm:$0xff]
    %v884 = vld [vmem:[#allocation4 + $0xa0] sm:$0xff]
    %v885 = vld [vmem:[#allocation4 + $0xa8] sm:$0xff]
    %v886 = vld [vmem:[#allocation4 + $0xb0] sm:$0xff]
    %v887 = vld [vmem:[#allocation4 + $0xb8] sm:$0xff]
    %v888 = vld [vmem:[#allocation4 + $0xc0] sm:$0xff]
    %v889 = vld [vmem:[#allocation4 + $0xc8] sm:$0xff]
    %v890 = vld [vmem:[#allocation4 + $0xd0] sm:$0xff]
    %v891 = vld [vmem:[#allocation4 + $0xd8] sm:$0xff]
    %v892 = vld [vmem:[#allocation4 + $0xe0] sm:$0xff]
    %v893 = vld [vmem:[#allocation4 + $0xe8] sm:$0xff]
    %v894 = vld [vmem:[#allocation4 + $0xf0] sm:$0xff]
    %v895 = vld [vmem:[#allocation4 + $0xf8] sm:$0xff]
    %v896 = vld [vmem:[#allocation4 + $0x100] sm:$0xff]
    %v897 = vld [vmem:[#allocation4 + $0x108] sm:$0xff]
    %v898 = vld [vmem:[#allocation4 + $0x110] sm:$0xff]
    %v899 = vld [vmem:[#allocation4 + $0x118] sm:$0xff]
    %v900 = vld [vmem:[#allocation4 + $0x120] sm:$0xff]
    %v901 = vld [vmem:[#allocation4 + $0x128] sm:$0xff]
    %v902 = vld [vmem:[#allocation4 + $0x130] sm:$0xff]
    %v903 = vld [vmem:[#allocation4 + $0x138] sm:$0xff]
    %v904 = vld [vmem:[#allocation4 + $0x140] sm:$0xff]
    %v905 = vld [vmem:[#allocation4 + $0x148] sm:$0xff]
    %v906 = vld [vmem:[#allocation4 + $0x150] sm:$0xff]
    %v907 = vld [vmem:[#allocation4 + $0x158] sm:$0xff]
    %v908 = vld [vmem:[#allocation4 + $0x160] sm:$0xff]
    %v909 = vld [vmem:[#allocation4 + $0x168] sm:$0xff]
    %v910 = vld [vmem:[#allocation4 + $0x170] sm:$0xff]
    %v911 = vld [vmem:[#allocation4 + $0x178] sm:$0xff]
    %v912 = vld [vmem:[#allocation4 + $0x180] sm:$0xff]
    %v913 = vld [vmem:[#allocation4 + $0x188] sm:$0xff]
    %v914 = vld [vmem:[#allocation4 + $0x190] sm:$0xff]
    %v915 = vld [vmem:[#allocation4 + $0x198] sm:$0xff]
    %v916 = vld [vmem:[#allocation4 + $0x1a0] sm:$0xff]
    %v917 = vld [vmem:[#allocation4 + $0x1a8] sm:$0xff]
    %v918 = vld [vmem:[#allocation4 + $0x1b0] sm:$0xff]
    %v919 = vld [vmem:[#allocation4 + $0x1b8] sm:$0xff]
    %v920 = vld [vmem:[#allocation4 + $0x1c0] sm:$0xff]
    %v921 = vld [vmem:[#allocation4 + $0x1c8] sm:$0xff]
    %v922 = vld [vmem:[#allocation4 + $0x1d0] sm:$0xff]
    %v923 = vld [vmem:[#allocation4 + $0x1d8] sm:$0xff]
    %v924 = vld [vmem:[#allocation4 + $0x1e0] sm:$0xff]
    %v925 = vld [vmem:[#allocation4 + $0x1e8] sm:$0xff]
    %v926 = vld [vmem:[#allocation4 + $0x1f0] sm:$0xff]
    %v927 = vld [vmem:[#allocation4 + $0x1f8] sm:$0xff]
    %v928 = vrot.slane %v854, 1
    %v929 = vsel %vm568, %v855, %v928
    %931 = vmatprep.subr.mxu0 %v865
    %932 = vmatpush1.msra.mxu0 %v864
    %933 = vmatprep.subr.mxu0 %v869
    %934 = vmatpush1.msra.mxu0 %v868
    %935 = vmatprep.subr.mxu0 %v873
    %936 = vmatpush1.msra.mxu0 %v872
    %937 = vmatprep.subr.mxu0 %v877
    %938 = vmatpush1.msra.mxu0 %v876
    %939 = vmatprep.subr.mxu0 %v881
    %940 = vmatpush1.msra.mxu0 %v880
    %941 = vmatprep.subr.mxu0 %v885
    %942 = vmatpush1.msra.mxu0 %v884
    %943 = vmatprep.subr.mxu0 %v889
    %944 = vmatpush1.msra.mxu0 %v888
    %945 = vmatprep.subr.mxu0 %v893
    %946 = vmatpush1.msra.mxu0 %v892
    %947 = vmatprep.subr.mxu0 %v897
    %948 = vmatpush1.msra.mxu0 %v896
    %949 = vmatprep.subr.mxu0 %v901
    %950 = vmatpush1.msra.mxu0 %v900
    %951 = vmatprep.subr.mxu0 %v905
    %952 = vmatpush1.msra.mxu0 %v904
    %953 = vmatprep.subr.mxu0 %v909
    %954 = vmatpush1.msra.mxu0 %v908
    %955 = vmatprep.subr.mxu0 %v913
    %956 = vmatpush1.msra.mxu0 %v912
    %957 = vmatprep.subr.mxu0 %v917
    %958 = vmatpush1.msra.mxu0 %v916
    %959 = vmatprep.subr.mxu0 %v921
    %960 = vmatpush1.msra.mxu0 %v920
    %961 = vmatprep.subr.mxu0 %v925
    %962 = vmatpush1.msra.mxu0 %v924
    %963 = vmatprep.subr.mxu0 0.0
    %964 = vmatpush1.msra.mxu0 0.0
    %965 = vmatprep.subr.mxu0 0.0
    %966 = vmatpush1.msra.mxu0 0.0
    %967 = vmatprep.subr.mxu0 0.0
    %968 = vmatpush1.msra.mxu0 0.0
    %969 = vmatprep.subr.mxu0 0.0
    %970 = vmatpush1.msra.mxu0 0.0
    %971 = vmatprep.subr.mxu0 0.0
    %972 = vmatpush1.msra.mxu0 0.0
    %973 = vmatprep.subr.mxu0 0.0
    %974 = vmatpush1.msra.mxu0 0.0
    %975 = vmatprep.subr.mxu0 0.0
    %976 = vmatpush1.msra.mxu0 0.0
    %977 = vmatprep.subr.mxu0 0.0
    %978 = vmatpush1.msra.mxu0 0.0
    %979 = vmatprep.subr.mxu0 0.0
    %980 = vmatpush1.msra.mxu0 0.0
    %981 = vmatprep.subr.mxu0 0.0
    %982 = vmatpush1.msra.mxu0 0.0
    %983 = vmatprep.subr.mxu0 0.0
    %984 = vmatpush1.msra.mxu0 0.0
    %985 = vmatprep.subr.mxu0 0.0
    %986 = vmatpush1.msra.mxu0 0.0
    %987 = vmatprep.subr.mxu0 0.0
    %988 = vmatpush1.msra.mxu0 0.0
    %989 = vmatprep.subr.mxu0 0.0
    %990 = vmatpush1.msra.mxu0 0.0
    %991 = vmatprep.subr.mxu0 0.0
    %992 = vmatpush1.msra.mxu0 0.0
    %993 = vmatprep.subr.mxu0 0.0
    %994 = vmatpush1.msra.mxu0 0.0
    %995 = vmatprep.mubr.f32.mxu0 0.0
    %996 = vmatmul.mubr.f32.gmra.mrb[0].mxu0 %v929
    %v997 = vpop.f32.mrb[0].mxu0
    %v998 = vadd.f32 0.0, %v997
    %v999 = vpop.f32.mrb[0].mxu0
    %v1000 = vadd.f32 0.0, %v999
    %1001 = vdwg.mxu0
    %1002 = vmatprep.subr.mxu0 %v867
    %1003 = vmatpush1.msra.mxu0 %v866
    %1004 = vmatprep.subr.mxu0 %v871
    %1005 = vmatpush1.msra.mxu0 %v870
    %1006 = vmatprep.subr.mxu0 %v875
    %1007 = vmatpush1.msra.mxu0 %v874
    %1008 = vmatprep.subr.mxu0 %v879
    %1009 = vmatpush1.msra.mxu0 %v878
    %1010 = vmatprep.subr.mxu0 %v883
    %1011 = vmatpush1.msra.mxu0 %v882
    %1012 = vmatprep.subr.mxu0 %v887
    %1013 = vmatpush1.msra.mxu0 %v886
    %1014 = vmatprep.subr.mxu0 %v891
    %1015 = vmatpush1.msra.mxu0 %v890
    %1016 = vmatprep.subr.mxu0 %v895
    %1017 = vmatpush1.msra.mxu0 %v894
    %1018 = vmatprep.subr.mxu0 %v899
    %1019 = vmatpush1.msra.mxu0 %v898
    %1020 = vmatprep.subr.mxu0 %v903
    %1021 = vmatpush1.msra.mxu0 %v902
    %1022 = vmatprep.subr.mxu0 %v907
    %1023 = vmatpush1.msra.mxu0 %v906
    %1024 = vmatprep.subr.mxu0 %v911
    %1025 = vmatpush1.msra.mxu0 %v910
    %1026 = vmatprep.subr.mxu0 %v915
    %1027 = vmatpush1.msra.mxu0 %v914
    %1028 = vmatprep.subr.mxu0 %v919
    %1029 = vmatpush1.msra.mxu0 %v918
    %1030 = vmatprep.subr.mxu0 %v923
    %1031 = vmatpush1.msra.mxu0 %v922
    %1032 = vmatprep.subr.mxu0 %v927
    %1033 = vmatpush1.msra.mxu0 %v926
    %1034 = vmatprep.subr.mxu0 0.0
    %1035 = vmatpush1.msra.mxu0 0.0
    %1036 = vmatprep.subr.mxu0 0.0
    %1037 = vmatpush1.msra.mxu0 0.0
    %1038 = vmatprep.subr.mxu0 0.0
    %1039 = vmatpush1.msra.mxu0 0.0
    %1040 = vmatprep.subr.mxu0 0.0
    %1041 = vmatpush1.msra.mxu0 0.0
    %1042 = vmatprep.subr.mxu0 0.0
    %1043 = vmatpush1.msra.mxu0 0.0
    %1044 = vmatprep.subr.mxu0 0.0
    %1045 = vmatpush1.msra.mxu0 0.0
    %1046 = vmatprep.subr.mxu0 0.0
    %1047 = vmatpush1.msra.mxu0 0.0
    %1048 = vmatprep.subr.mxu0 0.0
    %1049 = vmatpush1.msra.mxu0 0.0
    %1050 = vmatprep.subr.mxu0 0.0
    %1051 = vmatpush1.msra.mxu0 0.0
    %1052 = vmatprep.subr.mxu0 0.0
    %1053 = vmatpush1.msra.mxu0 0.0
    %1054 = vmatprep.subr.mxu0 0.0
    %1055 = vmatpush1.msra.mxu0 0.0
    %1056 = vmatprep.subr.mxu0 0.0
    %1057 = vmatpush1.msra.mxu0 0.0
    %1058 = vmatprep.subr.mxu0 0.0
    %1059 = vmatpush1.msra.mxu0 0.0
    %1060 = vmatprep.subr.mxu0 0.0
    %1061 = vmatpush1.msra.mxu0 0.0
    %1062 = vmatprep.subr.mxu0 0.0
    %1063 = vmatpush1.msra.mxu0 0.0
    %1064 = vmatprep.subr.mxu0 0.0
    %1065 = vmatpush1.msra.mxu0 0.0
    %1066 = vmatprep.mubr.f32.mxu0 0.0
    %1067 = vmatmul.mubr.f32.gmra.mrb[0].mxu0 %v929
    %v1068 = vpop.f32.mrb[0].mxu0
    %v1069 = vadd.f32 0.0, %v1068
    %v1070 = vpop.f32.mrb[0].mxu0
    %v1071 = vadd.f32 0.0, %v1070
    %1072 = vdwg.mxu0
    %v1077 = vrot.slane %v998, 6
    %v1078 = vrot.slane %v1000, 6
    %v1079 = vrot.slane %v1069, 6
    %v1080 = vrot.slane %v1071, 6
    %v1081 = vrot.slane %v998, 7
    %v1082 = vrot.slane %v1000, 7
    %v1083 = vrot.slane %v1069, 7
    %v1084 = vrot.slane %v1071, 7
    %v1093 = vadd.f32 %v200, %v1077
    %v1094 = vadd.f32 %v202, %v1078
    %v1095 = vadd.f32 %v277, %v1079
    %v1096 = vadd.f32 %v279, %v1080
    %v1097 = vadd.f32 %v206, %v1081
    %v1098 = vadd.f32 %v208, %v1082
    %v1099 = vadd.f32 %v283, %v1083
    %v1100 = vadd.f32 %v285, %v1084
    %v1101 = vxor.u32 %v1093, 2147483648
    %v1102 = vxor.u32 %v1097, 2147483648
    %v1103 = vmul.f32 %v1101, 1.442695
    %v1104 = vpow.pop %v1103
    %v1105 = vmul.f32 %v1102, 1.442695
    %v1106 = vpow.pop %v1105
    %v1107 = vadd.f32 %v1104, 1.0
    %v1108 = vadd.f32 %v1106, 1.0
    %v1109 = vrcp.pop %v1107
    %v1110 = vmul.f32 1.0, %v1109
    %v1111 = vrcp.pop %v1108
    %v1112 = vmul.f32 1.0, %v1111
    %v1113 = vxor.u32 %v1094, 2147483648
    %v1114 = vxor.u32 %v1098, 2147483648
    %v1115 = vmul.f32 %v1113, 1.442695
    %v1116 = vpow.pop %v1115
    %v1117 = vmul.f32 %v1114, 1.442695
    %v1118 = vpow.pop %v1117
    %v1119 = vadd.f32 %v1116, 1.0
    %v1120 = vadd.f32 %v1118, 1.0
    %v1121 = vrcp.pop %v1119
    %v1122 = vmul.f32 1.0, %v1121
    %v1123 = vrcp.pop %v1120
    %v1124 = vmul.f32 1.0, %v1123
    %v1125 = vtanh.pop %v1095
    %v1126 = vtanh.pop %v1099
    %v1127 = vxor.u32 %v1096, 2147483648
    %v1128 = vxor.u32 %v1100, 2147483648
    %v1129 = vmul.f32 %v1127, 1.442695
    %v1130 = vpow.pop %v1129
    %v1131 = vmul.f32 %v1128, 1.442695
    %v1132 = vpow.pop %v1131
    %v1133 = vadd.f32 %v1130, 1.0
    %v1134 = vadd.f32 %v1132, 1.0
    %v1135 = vrcp.pop %v1133
    %v1136 = vmul.f32 1.0, %v1135
    %v1137 = vrcp.pop %v1134
    %v1138 = vmul.f32 1.0, %v1137
    %v1141 = vrot.slane %v850, 7
    %v1142 = vrot.slane %v851, 7
    %v1145 = vmul.f32 %v1122, %v1141
    %v1146 = vmul.f32 %v1124, %v1142
    %v1147 = vmul.f32 %v1110, %v1125
    %v1148 = vmul.f32 %v1112, %v1126
    %v1149 = vadd.f32 %v1145, %v1147
    %v1150 = vadd.f32 %v1146, %v1148
    %v1151 = vtanh.pop %v1149
    %v1152 = vtanh.pop %v1150
    %v1153 = vmul.f32 %v1136, %v1151
    %v1154 = vmul.f32 %v1138, %v1152
    %v1157 = vrot.slane %v1154, 7
    %vm1158 = vcmask 1043459
    %v1159 = vsel %vm1158, %v1157, %v1153
    %s1161 = scalar_lea.vmem [#allocation2], 4
    %1162 = vst [vmem:[%s1161 - $0x2] sm:$0xc] %v1159
    %v1163 = vld [vmem:[#allocation4] sm:$0xff]
    %v1164 = vld [vmem:[#allocation4 + $0x8] sm:$0xff]
    %v1165 = vld [vmem:[#allocation4 + $0x10] sm:$0xff]
    %v1166 = vld [vmem:[#allocation4 + $0x18] sm:$0xff]
    %v1167 = vld [vmem:[#allocation4 + $0x20] sm:$0xff]
    %v1168 = vld [vmem:[#allocation4 + $0x28] sm:$0xff]
    %v1169 = vld [vmem:[#allocation4 + $0x30] sm:$0xff]
    %v1170 = vld [vmem:[#allocation4 + $0x38] sm:$0xff]
    %v1171 = vld [vmem:[#allocation4 + $0x40] sm:$0xff]
    %v1172 = vld [vmem:[#allocation4 + $0x48] sm:$0xff]
    %v1173 = vld [vmem:[#allocation4 + $0x50] sm:$0xff]
    %v1174 = vld [vmem:[#allocation4 + $0x58] sm:$0xff]
    %v1175 = vld [vmem:[#allocation4 + $0x60] sm:$0xff]
    %v1176 = vld [vmem:[#allocation4 + $0x68] sm:$0xff]
    %v1177 = vld [vmem:[#allocation4 + $0x70] sm:$0xff]
    %v1178 = vld [vmem:[#allocation4 + $0x78] sm:$0xff]
    %v1179 = vld [vmem:[#allocation4 + $0x80] sm:$0xff]
    %v1180 = vld [vmem:[#allocation4 + $0x88] sm:$0xff]
    %v1181 = vld [vmem:[#allocation4 + $0x90] sm:$0xff]
    %v1182 = vld [vmem:[#allocation4 + $0x98] sm:$0xff]
    %v1183 = vld [vmem:[#allocation4 + $0xa0] sm:$0xff]
    %v1184 = vld [vmem:[#allocation4 + $0xa8] sm:$0xff]
    %v1185 = vld [vmem:[#allocation4 + $0xb0] sm:$0xff]
    %v1186 = vld [vmem:[#allocation4 + $0xb8] sm:$0xff]
    %v1187 = vld [vmem:[#allocation4 + $0xc0] sm:$0xff]
    %v1188 = vld [vmem:[#allocation4 + $0xc8] sm:$0xff]
    %v1189 = vld [vmem:[#allocation4 + $0xd0] sm:$0xff]
    %v1190 = vld [vmem:[#allocation4 + $0xd8] sm:$0xff]
    %v1191 = vld [vmem:[#allocation4 + $0xe0] sm:$0xff]
    %v1192 = vld [vmem:[#allocation4 + $0xe8] sm:$0xff]
    %v1193 = vld [vmem:[#allocation4 + $0xf0] sm:$0xff]
    %v1194 = vld [vmem:[#allocation4 + $0xf8] sm:$0xff]
    %v1195 = vld [vmem:[#allocation4 + $0x100] sm:$0xff]
    %v1196 = vld [vmem:[#allocation4 + $0x108] sm:$0xff]
    %v1197 = vld [vmem:[#allocation4 + $0x110] sm:$0xff]
    %v1198 = vld [vmem:[#allocation4 + $0x118] sm:$0xff]
    %v1199 = vld [vmem:[#allocation4 + $0x120] sm:$0xff]
    %v1200 = vld [vmem:[#allocation4 + $0x128] sm:$0xff]
    %v1201 = vld [vmem:[#allocation4 + $0x130] sm:$0xff]
    %v1202 = vld [vmem:[#allocation4 + $0x138] sm:$0xff]
    %v1203 = vld [vmem:[#allocation4 + $0x140] sm:$0xff]
    %v1204 = vld [vmem:[#allocation4 + $0x148] sm:$0xff]
    %v1205 = vld [vmem:[#allocation4 + $0x150] sm:$0xff]
    %v1206 = vld [vmem:[#allocation4 + $0x158] sm:$0xff]
    %v1207 = vld [vmem:[#allocation4 + $0x160] sm:$0xff]
    %v1208 = vld [vmem:[#allocation4 + $0x168] sm:$0xff]
    %v1209 = vld [vmem:[#allocation4 + $0x170] sm:$0xff]
    %v1210 = vld [vmem:[#allocation4 + $0x178] sm:$0xff]
    %v1211 = vld [vmem:[#allocation4 + $0x180] sm:$0xff]
    %v1212 = vld [vmem:[#allocation4 + $0x188] sm:$0xff]
    %v1213 = vld [vmem:[#allocation4 + $0x190] sm:$0xff]
    %v1214 = vld [vmem:[#allocation4 + $0x198] sm:$0xff]
    %v1215 = vld [vmem:[#allocation4 + $0x1a0] sm:$0xff]
    %v1216 = vld [vmem:[#allocation4 + $0x1a8] sm:$0xff]
    %v1217 = vld [vmem:[#allocation4 + $0x1b0] sm:$0xff]
    %v1218 = vld [vmem:[#allocation4 + $0x1b8] sm:$0xff]
    %v1219 = vld [vmem:[#allocation4 + $0x1c0] sm:$0xff]
    %v1220 = vld [vmem:[#allocation4 + $0x1c8] sm:$0xff]
    %v1221 = vld [vmem:[#allocation4 + $0x1d0] sm:$0xff]
    %v1222 = vld [vmem:[#allocation4 + $0x1d8] sm:$0xff]
    %v1223 = vld [vmem:[#allocation4 + $0x1e0] sm:$0xff]
    %v1224 = vld [vmem:[#allocation4 + $0x1e8] sm:$0xff]
    %v1225 = vld [vmem:[#allocation4 + $0x1f0] sm:$0xff]
    %v1226 = vld [vmem:[#allocation4 + $0x1f8] sm:$0xff]
    %v1227 = vrot.slane %v1153, 2
    %v1228 = vrot.slane %v1154, 1
    %v1229 = vsel %vm568, %v1228, %v1227
    %1231 = vmatprep.subr.mxu0 %v1164
    %1232 = vmatpush1.msra.mxu0 %v1163
    %1233 = vmatprep.subr.mxu0 %v1168
    %1234 = vmatpush1.msra.mxu0 %v1167
    %1235 = vmatprep.subr.mxu0 %v1172
    %1236 = vmatpush1.msra.mxu0 %v1171
    %1237 = vmatprep.subr.mxu0 %v1176
    %1238 = vmatpush1.msra.mxu0 %v1175
    %1239 = vmatprep.subr.mxu0 %v1180
    %1240 = vmatpush1.msra.mxu0 %v1179
    %1241 = vmatprep.subr.mxu0 %v1184
    %1242 = vmatpush1.msra.mxu0 %v1183
    %1243 = vmatprep.subr.mxu0 %v1188
    %1244 = vmatpush1.msra.mxu0 %v1187
    %1245 = vmatprep.subr.mxu0 %v1192
    %1246 = vmatpush1.msra.mxu0 %v1191
    %1247 = vmatprep.subr.mxu0 %v1196
    %1248 = vmatpush1.msra.mxu0 %v1195
    %1249 = vmatprep.subr.mxu0 %v1200
    %1250 = vmatpush1.msra.mxu0 %v1199
    %1251 = vmatprep.subr.mxu0 %v1204
    %1252 = vmatpush1.msra.mxu0 %v1203
    %1253 = vmatprep.subr.mxu0 %v1208
    %1254 = vmatpush1.msra.mxu0 %v1207
    %1255 = vmatprep.subr.mxu0 %v1212
    %1256 = vmatpush1.msra.mxu0 %v1211
    %1257 = vmatprep.subr.mxu0 %v1216
    %1258 = vmatpush1.msra.mxu0 %v1215
    %1259 = vmatprep.subr.mxu0 %v1220
    %1260 = vmatpush1.msra.mxu0 %v1219
    %1261 = vmatprep.subr.mxu0 %v1224
    %1262 = vmatpush1.msra.mxu0 %v1223
    %1263 = vmatprep.subr.mxu0 0.0
    %1264 = vmatpush1.msra.mxu0 0.0
    %1265 = vmatprep.subr.mxu0 0.0
    %1266 = vmatpush1.msra.mxu0 0.0
    %1267 = vmatprep.subr.mxu0 0.0
    %1268 = vmatpush1.msra.mxu0 0.0
    %1269 = vmatprep.subr.mxu0 0.0
    %1270 = vmatpush1.msra.mxu0 0.0
    %1271 = vmatprep.subr.mxu0 0.0
    %1272 = vmatpush1.msra.mxu0 0.0
    %1273 = vmatprep.subr.mxu0 0.0
    %1274 = vmatpush1.msra.mxu0 0.0
    %1275 = vmatprep.subr.mxu0 0.0
    %1276 = vmatpush1.msra.mxu0 0.0
    %1277 = vmatprep.subr.mxu0 0.0
    %1278 = vmatpush1.msra.mxu0 0.0
    %1279 = vmatprep.subr.mxu0 0.0
    %1280 = vmatpush1.msra.mxu0 0.0
    %1281 = vmatprep.subr.mxu0 0.0
    %1282 = vmatpush1.msra.mxu0 0.0
    %1283 = vmatprep.subr.mxu0 0.0
    %1284 = vmatpush1.msra.mxu0 0.0
    %1285 = vmatprep.subr.mxu0 0.0
    %1286 = vmatpush1.msra.mxu0 0.0
    %1287 = vmatprep.subr.mxu0 0.0
    %1288 = vmatpush1.msra.mxu0 0.0
    %1289 = vmatprep.subr.mxu0 0.0
    %1290 = vmatpush1.msra.mxu0 0.0
    %1291 = vmatprep.subr.mxu0 0.0
    %1292 = vmatpush1.msra.mxu0 0.0
    %1293 = vmatprep.subr.mxu0 0.0
    %1294 = vmatpush1.msra.mxu0 0.0
    %1295 = vmatprep.mubr.f32.mxu0 0.0
    %1296 = vmatmul.mubr.f32.gmra.mrb[0].mxu0 %v1229
    %v1297 = vpop.f32.mrb[0].mxu0
    %v1298 = vadd.f32 0.0, %v1297
    %v1299 = vpop.f32.mrb[0].mxu0
    %v1300 = vadd.f32 0.0, %v1299
    %1301 = vdwg.mxu0
    %1302 = vmatprep.subr.mxu0 %v1166
    %1303 = vmatpush1.msra.mxu0 %v1165
    %1304 = vmatprep.subr.mxu0 %v1170
    %1305 = vmatpush1.msra.mxu0 %v1169
    %1306 = vmatprep.subr.mxu0 %v1174
    %1307 = vmatpush1.msra.mxu0 %v1173
    %1308 = vmatprep.subr.mxu0 %v1178
    %1309 = vmatpush1.msra.mxu0 %v1177
    %1310 = vmatprep.subr.mxu0 %v1182
    %1311 = vmatpush1.msra.mxu0 %v1181
    %1312 = vmatprep.subr.mxu0 %v1186
    %1313 = vmatpush1.msra.mxu0 %v1185
    %1314 = vmatprep.subr.mxu0 %v1190
    %1315 = vmatpush1.msra.mxu0 %v1189
    %1316 = vmatprep.subr.mxu0 %v1194
    %1317 = vmatpush1.msra.mxu0 %v1193
    %1318 = vmatprep.subr.mxu0 %v1198
    %1319 = vmatpush1.msra.mxu0 %v1197
    %1320 = vmatprep.subr.mxu0 %v1202
    %1321 = vmatpush1.msra.mxu0 %v1201
    %1322 = vmatprep.subr.mxu0 %v1206
    %1323 = vmatpush1.msra.mxu0 %v1205
    %1324 = vmatprep.subr.mxu0 %v1210
    %1325 = vmatpush1.msra.mxu0 %v1209
    %1326 = vmatprep.subr.mxu0 %v1214
    %1327 = vmatpush1.msra.mxu0 %v1213
    %1328 = vmatprep.subr.mxu0 %v1218
    %1329 = vmatpush1.msra.mxu0 %v1217
    %1330 = vmatprep.subr.mxu0 %v1222
    %1331 = vmatpush1.msra.mxu0 %v1221
    %1332 = vmatprep.subr.mxu0 %v1226
    %1333 = vmatpush1.msra.mxu0 %v1225
    %1334 = vmatprep.subr.mxu0 0.0
    %1335 = vmatpush1.msra.mxu0 0.0
    %1336 = vmatprep.subr.mxu0 0.0
    %1337 = vmatpush1.msra.mxu0 0.0
    %1338 = vmatprep.subr.mxu0 0.0
    %1339 = vmatpush1.msra.mxu0 0.0
    %1340 = vmatprep.subr.mxu0 0.0
    %1341 = vmatpush1.msra.mxu0 0.0
    %1342 = vmatprep.subr.mxu0 0.0
    %1343 = vmatpush1.msra.mxu0 0.0
    %1344 = vmatprep.subr.mxu0 0.0
    %1345 = vmatpush1.msra.mxu0 0.0
    %1346 = vmatprep.subr.mxu0 0.0
    %1347 = vmatpush1.msra.mxu0 0.0
    %1348 = vmatprep.subr.mxu0 0.0
    %1349 = vmatpush1.msra.mxu0 0.0
    %1350 = vmatprep.subr.mxu0 0.0
    %1351 = vmatpush1.msra.mxu0 0.0
    %1352 = vmatprep.subr.mxu0 0.0
    %1353 = vmatpush1.msra.mxu0 0.0
    %1354 = vmatprep.subr.mxu0 0.0
    %1355 = vmatpush1.msra.mxu0 0.0
    %1356 = vmatprep.subr.mxu0 0.0
    %1357 = vmatpush1.msra.mxu0 0.0
    %1358 = vmatprep.subr.mxu0 0.0
    %1359 = vmatpush1.msra.mxu0 0.0
    %1360 = vmatprep.subr.mxu0 0.0
    %1361 = vmatpush1.msra.mxu0 0.0
    %1362 = vmatprep.subr.mxu0 0.0
    %1363 = vmatpush1.msra.mxu0 0.0
    %1364 = vmatprep.subr.mxu0 0.0
    %1365 = vmatpush1.msra.mxu0 0.0
    %1366 = vmatprep.mubr.f32.mxu0 0.0
    %1367 = vmatmul.mubr.f32.gmra.mrb[0].mxu0 %v1229
    %v1368 = vpop.f32.mrb[0].mxu0
    %v1369 = vadd.f32 0.0, %v1368
    %v1370 = vpop.f32.mrb[0].mxu0
    %v1371 = vadd.f32 0.0, %v1370
    %1372 = vdwg.mxu0
    %v1377 = vrot.slane %v1298, 5
    %v1378 = vrot.slane %v1300, 5
    %v1379 = vrot.slane %v1369, 5
    %v1380 = vrot.slane %v1371, 5
    %v1381 = vrot.slane %v1298, 6
    %v1382 = vrot.slane %v1300, 6
    %v1383 = vrot.slane %v1369, 6
    %v1384 = vrot.slane %v1371, 6
    %v1393 = vadd.f32 %v200, %v1377
    %v1394 = vadd.f32 %v202, %v1378
    %v1395 = vadd.f32 %v277, %v1379
    %v1396 = vadd.f32 %v279, %v1380
    %v1397 = vadd.f32 %v206, %v1381
    %v1398 = vadd.f32 %v208, %v1382
    %v1399 = vadd.f32 %v283, %v1383
    %v1400 = vadd.f32 %v285, %v1384
    %v1401 = vxor.u32 %v1393, 2147483648
    %v1402 = vxor.u32 %v1397, 2147483648
    %v1403 = vmul.f32 %v1401, 1.442695
    %v1404 = vpow.pop %v1403
    %v1405 = vmul.f32 %v1402, 1.442695
    %v1406 = vpow.pop %v1405
    %v1407 = vadd.f32 %v1404, 1.0
    %v1408 = vadd.f32 %v1406, 1.0
    %v1409 = vrcp.pop %v1407
    %v1410 = vmul.f32 1.0, %v1409
    %v1411 = vrcp.pop %v1408
    %v1412 = vmul.f32 1.0, %v1411
    %v1413 = vxor.u32 %v1394, 2147483648
    %v1414 = vxor.u32 %v1398, 2147483648
    %v1415 = vmul.f32 %v1413, 1.442695
    %v1416 = vpow.pop %v1415
    %v1417 = vmul.f32 %v1414, 1.442695
    %v1418 = vpow.pop %v1417
    %v1419 = vadd.f32 %v1416, 1.0
    %v1420 = vadd.f32 %v1418, 1.0
    %v1421 = vrcp.pop %v1419
    %v1422 = vmul.f32 1.0, %v1421
    %v1423 = vrcp.pop %v1420
    %v1424 = vmul.f32 1.0, %v1423
    %v1425 = vtanh.pop %v1395
    %v1426 = vtanh.pop %v1399
    %v1427 = vxor.u32 %v1396, 2147483648
    %v1428 = vxor.u32 %v1400, 2147483648
    %v1429 = vmul.f32 %v1427, 1.442695
    %v1430 = vpow.pop %v1429
    %v1431 = vmul.f32 %v1428, 1.442695
    %v1432 = vpow.pop %v1431
    %v1433 = vadd.f32 %v1430, 1.0
    %v1434 = vadd.f32 %v1432, 1.0
    %v1435 = vrcp.pop %v1433
    %v1436 = vmul.f32 1.0, %v1435
    %v1437 = vrcp.pop %v1434
    %v1438 = vmul.f32 1.0, %v1437
    %v1441 = vrot.slane %v1149, 7
    %v1442 = vrot.slane %v1150, 7
    %v1445 = vmul.f32 %v1422, %v1441
    %v1446 = vmul.f32 %v1424, %v1442
    %v1447 = vmul.f32 %v1410, %v1425
    %v1448 = vmul.f32 %v1412, %v1426
    %v1449 = vadd.f32 %v1445, %v1447
    %v1450 = vadd.f32 %v1446, %v1448
    %v1451 = vtanh.pop %v1449
    %v1452 = vtanh.pop %v1450
    %v1453 = vmul.f32 %v1436, %v1451
    %v1454 = vmul.f32 %v1438, %v1452
    %v1457 = vrot.slane %v1454, 7
    %vm1458 = vcmask 1044484
    %v1459 = vsel %vm1458, %v1457, %v1453
    %s1461 = scalar_lea.vmem [#allocation2], 6
    %1462 = vst [vmem:[%s1461 - $0x3] sm:$0x18] %v1459
    %v1463 = vld [vmem:[#allocation4] sm:$0xff]
    %v1464 = vld [vmem:[#allocation4 + $0x8] sm:$0xff]
    %v1465 = vld [vmem:[#allocation4 + $0x10] sm:$0xff]
    %v1466 = vld [vmem:[#allocation4 + $0x18] sm:$0xff]
    %v1467 = vld [vmem:[#allocation4 + $0x20] sm:$0xff]
    %v1468 = vld [vmem:[#allocation4 + $0x28] sm:$0xff]
    %v1469 = vld [vmem:[#allocation4 + $0x30] sm:$0xff]
    %v1470 = vld [vmem:[#allocation4 + $0x38] sm:$0xff]
    %v1471 = vld [vmem:[#allocation4 + $0x40] sm:$0xff]
    %v1472 = vld [vmem:[#allocation4 + $0x48] sm:$0xff]
    %v1473 = vld [vmem:[#allocation4 + $0x50] sm:$0xff]
    %v1474 = vld [vmem:[#allocation4 + $0x58] sm:$0xff]
    %v1475 = vld [vmem:[#allocation4 + $0x60] sm:$0xff]
    %v1476 = vld [vmem:[#allocation4 + $0x68] sm:$0xff]
    %v1477 = vld [vmem:[#allocation4 + $0x70] sm:$0xff]
    %v1478 = vld [vmem:[#allocation4 + $0x78] sm:$0xff]
    %v1479 = vld [vmem:[#allocation4 + $0x80] sm:$0xff]
    %v1480 = vld [vmem:[#allocation4 + $0x88] sm:$0xff]
    %v1481 = vld [vmem:[#allocation4 + $0x90] sm:$0xff]
    %v1482 = vld [vmem:[#allocation4 + $0x98] sm:$0xff]
    %v1483 = vld [vmem:[#allocation4 + $0xa0] sm:$0xff]
    %v1484 = vld [vmem:[#allocation4 + $0xa8] sm:$0xff]
    %v1485 = vld [vmem:[#allocation4 + $0xb0] sm:$0xff]
    %v1486 = vld [vmem:[#allocation4 + $0xb8] sm:$0xff]
    %v1487 = vld [vmem:[#allocation4 + $0xc0] sm:$0xff]
    %v1488 = vld [vmem:[#allocation4 + $0xc8] sm:$0xff]
    %v1489 = vld [vmem:[#allocation4 + $0xd0] sm:$0xff]
    %v1490 = vld [vmem:[#allocation4 + $0xd8] sm:$0xff]
    %v1491 = vld [vmem:[#allocation4 + $0xe0] sm:$0xff]
    %v1492 = vld [vmem:[#allocation4 + $0xe8] sm:$0xff]
    %v1493 = vld [vmem:[#allocation4 + $0xf0] sm:$0xff]
    %v1494 = vld [vmem:[#allocation4 + $0xf8] sm:$0xff]
    %v1495 = vld [vmem:[#allocation4 + $0x100] sm:$0xff]
    %v1496 = vld [vmem:[#allocation4 + $0x108] sm:$0xff]
    %v1497 = vld [vmem:[#allocation4 + $0x110] sm:$0xff]
    %v1498 = vld [vmem:[#allocation4 + $0x118] sm:$0xff]
    %v1499 = vld [vmem:[#allocation4 + $0x120] sm:$0xff]
    %v1500 = vld [vmem:[#allocation4 + $0x128] sm:$0xff]
    %v1501 = vld [vmem:[#allocation4 + $0x130] sm:$0xff]
    %v1502 = vld [vmem:[#allocation4 + $0x138] sm:$0xff]
    %v1503 = vld [vmem:[#allocation4 + $0x140] sm:$0xff]
    %v1504 = vld [vmem:[#allocation4 + $0x148] sm:$0xff]
    %v1505 = vld [vmem:[#allocation4 + $0x150] sm:$0xff]
    %v1506 = vld [vmem:[#allocation4 + $0x158] sm:$0xff]
    %v1507 = vld [vmem:[#allocation4 + $0x160] sm:$0xff]
    %v1508 = vld [vmem:[#allocation4 + $0x168] sm:$0xff]
    %v1509 = vld [vmem:[#allocation4 + $0x170] sm:$0xff]
    %v1510 = vld [vmem:[#allocation4 + $0x178] sm:$0xff]
    %v1511 = vld [vmem:[#allocation4 + $0x180] sm:$0xff]
    %v1512 = vld [vmem:[#allocation4 + $0x188] sm:$0xff]
    %v1513 = vld [vmem:[#allocation4 + $0x190] sm:$0xff]
    %v1514 = vld [vmem:[#allocation4 + $0x198] sm:$0xff]
    %v1515 = vld [vmem:[#allocation4 + $0x1a0] sm:$0xff]
    %v1516 = vld [vmem:[#allocation4 + $0x1a8] sm:$0xff]
    %v1517 = vld [vmem:[#allocation4 + $0x1b0] sm:$0xff]
    %v1518 = vld [vmem:[#allocation4 + $0x1b8] sm:$0xff]
    %v1519 = vld [vmem:[#allocation4 + $0x1c0] sm:$0xff]
    %v1520 = vld [vmem:[#allocation4 + $0x1c8] sm:$0xff]
    %v1521 = vld [vmem:[#allocation4 + $0x1d0] sm:$0xff]
    %v1522 = vld [vmem:[#allocation4 + $0x1d8] sm:$0xff]
    %v1523 = vld [vmem:[#allocation4 + $0x1e0] sm:$0xff]
    %v1524 = vld [vmem:[#allocation4 + $0x1e8] sm:$0xff]
    %v1525 = vld [vmem:[#allocation4 + $0x1f0] sm:$0xff]
    %v1526 = vld [vmem:[#allocation4 + $0x1f8] sm:$0xff]
    %v1527 = vrot.slane %v1453, 3
    %v1528 = vrot.slane %v1454, 2
    %v1529 = vsel %vm568, %v1528, %v1527
    %1531 = vmatprep.subr.mxu0 %v1464
    %1532 = vmatpush1.msra.mxu0 %v1463
    %1533 = vmatprep.subr.mxu0 %v1468
    %1534 = vmatpush1.msra.mxu0 %v1467
    %1535 = vmatprep.subr.mxu0 %v1472
    %1536 = vmatpush1.msra.mxu0 %v1471
    %1537 = vmatprep.subr.mxu0 %v1476
    %1538 = vmatpush1.msra.mxu0 %v1475
    %1539 = vmatprep.subr.mxu0 %v1480
    %1540 = vmatpush1.msra.mxu0 %v1479
    %1541 = vmatprep.subr.mxu0 %v1484
    %1542 = vmatpush1.msra.mxu0 %v1483
    %1543 = vmatprep.subr.mxu0 %v1488
    %1544 = vmatpush1.msra.mxu0 %v1487
    %1545 = vmatprep.subr.mxu0 %v1492
    %1546 = vmatpush1.msra.mxu0 %v1491
    %1547 = vmatprep.subr.mxu0 %v1496
    %1548 = vmatpush1.msra.mxu0 %v1495
    %1549 = vmatprep.subr.mxu0 %v1500
    %1550 = vmatpush1.msra.mxu0 %v1499
    %1551 = vmatprep.subr.mxu0 %v1504
    %1552 = vmatpush1.msra.mxu0 %v1503
    %1553 = vmatprep.subr.mxu0 %v1508
    %1554 = vmatpush1.msra.mxu0 %v1507
    %1555 = vmatprep.subr.mxu0 %v1512
    %1556 = vmatpush1.msra.mxu0 %v1511
    %1557 = vmatprep.subr.mxu0 %v1516
    %1558 = vmatpush1.msra.mxu0 %v1515
    %1559 = vmatprep.subr.mxu0 %v1520
    %1560 = vmatpush1.msra.mxu0 %v1519
    %1561 = vmatprep.subr.mxu0 %v1524
    %1562 = vmatpush1.msra.mxu0 %v1523
    %1563 = vmatprep.subr.mxu0 0.0
    %1564 = vmatpush1.msra.mxu0 0.0
    %1565 = vmatprep.subr.mxu0 0.0
    %1566 = vmatpush1.msra.mxu0 0.0
    %1567 = vmatprep.subr.mxu0 0.0
    %1568 = vmatpush1.msra.mxu0 0.0
    %1569 = vmatprep.subr.mxu0 0.0
    %1570 = vmatpush1.msra.mxu0 0.0
    %1571 = vmatprep.subr.mxu0 0.0
    %1572 = vmatpush1.msra.mxu0 0.0
    %1573 = vmatprep.subr.mxu0 0.0
    %1574 = vmatpush1.msra.mxu0 0.0
    %1575 = vmatprep.subr.mxu0 0.0
    %1576 = vmatpush1.msra.mxu0 0.0
    %1577 = vmatprep.subr.mxu0 0.0
    %1578 = vmatpush1.msra.mxu0 0.0
    %1579 = vmatprep.subr.mxu0 0.0
    %1580 = vmatpush1.msra.mxu0 0.0
    %1581 = vmatprep.subr.mxu0 0.0
    %1582 = vmatpush1.msra.mxu0 0.0
    %1583 = vmatprep.subr.mxu0 0.0
    %1584 = vmatpush1.msra.mxu0 0.0
    %1585 = vmatprep.subr.mxu0 0.0
    %1586 = vmatpush1.msra.mxu0 0.0
    %1587 = vmatprep.subr.mxu0 0.0
    %1588 = vmatpush1.msra.mxu0 0.0
    %1589 = vmatprep.subr.mxu0 0.0
    %1590 = vmatpush1.msra.mxu0 0.0
    %1591 = vmatprep.subr.mxu0 0.0
    %1592 = vmatpush1.msra.mxu0 0.0
    %1593 = vmatprep.subr.mxu0 0.0
    %1594 = vmatpush1.msra.mxu0 0.0
    %1595 = vmatprep.mubr.f32.mxu0 0.0
    %1596 = vmatmul.mubr.f32.gmra.mrb[0].mxu0 %v1529
    %v1597 = vpop.f32.mrb[0].mxu0
    %v1598 = vadd.f32 0.0, %v1597
    %v1599 = vpop.f32.mrb[0].mxu0
    %v1600 = vadd.f32 0.0, %v1599
    %1601 = vdwg.mxu0
    %1602 = vmatprep.subr.mxu0 %v1466
    %1603 = vmatpush1.msra.mxu0 %v1465
    %1604 = vmatprep.subr.mxu0 %v1470
    %1605 = vmatpush1.msra.mxu0 %v1469
    %1606 = vmatprep.subr.mxu0 %v1474
    %1607 = vmatpush1.msra.mxu0 %v1473
    %1608 = vmatprep.subr.mxu0 %v1478
    %1609 = vmatpush1.msra.mxu0 %v1477
    %1610 = vmatprep.subr.mxu0 %v1482
    %1611 = vmatpush1.msra.mxu0 %v1481
    %1612 = vmatprep.subr.mxu0 %v1486
    %1613 = vmatpush1.msra.mxu0 %v1485
    %1614 = vmatprep.subr.mxu0 %v1490
    %1615 = vmatpush1.msra.mxu0 %v1489
    %1616 = vmatprep.subr.mxu0 %v1494
    %1617 = vmatpush1.msra.mxu0 %v1493
    %1618 = vmatprep.subr.mxu0 %v1498
    %1619 = vmatpush1.msra.mxu0 %v1497
    %1620 = vmatprep.subr.mxu0 %v1502
    %1621 = vmatpush1.msra.mxu0 %v1501
    %1622 = vmatprep.subr.mxu0 %v1506
    %1623 = vmatpush1.msra.mxu0 %v1505
    %1624 = vmatprep.subr.mxu0 %v1510
    %1625 = vmatpush1.msra.mxu0 %v1509
    %1626 = vmatprep.subr.mxu0 %v1514
    %1627 = vmatpush1.msra.mxu0 %v1513
    %1628 = vmatprep.subr.mxu0 %v1518
    %1629 = vmatpush1.msra.mxu0 %v1517
    %1630 = vmatprep.subr.mxu0 %v1522
    %1631 = vmatpush1.msra.mxu0 %v1521
    %1632 = vmatprep.subr.mxu0 %v1526
    %1633 = vmatpush1.msra.mxu0 %v1525
    %1634 = vmatprep.subr.mxu0 0.0
    %1635 = vmatpush1.msra.mxu0 0.0
    %1636 = vmatprep.subr.mxu0 0.0
    %1637 = vmatpush1.msra.mxu0 0.0
    %1638 = vmatprep.subr.mxu0 0.0
    %1639 = vmatpush1.msra.mxu0 0.0
    %1640 = vmatprep.subr.mxu0 0.0
    %1641 = vmatpush1.msra.mxu0 0.0
    %1642 = vmatprep.subr.mxu0 0.0
    %1643 = vmatpush1.msra.mxu0 0.0
    %1644 = vmatprep.subr.mxu0 0.0
    %1645 = vmatpush1.msra.mxu0 0.0
    %1646 = vmatprep.subr.mxu0 0.0
    %1647 = vmatpush1.msra.mxu0 0.0
    %1648 = vmatprep.subr.mxu0 0.0
    %1649 = vmatpush1.msra.mxu0 0.0
    %1650 = vmatprep.subr.mxu0 0.0
    %1651 = vmatpush1.msra.mxu0 0.0
    %1652 = vmatprep.subr.mxu0 0.0
    %1653 = vmatpush1.msra.mxu0 0.0
    %1654 = vmatprep.subr.mxu0 0.0
    %1655 = vmatpush1.msra.mxu0 0.0
    %1656 = vmatprep.subr.mxu0 0.0
    %1657 = vmatpush1.msra.mxu0 0.0
    %1658 = vmatprep.subr.mxu0 0.0
    %1659 = vmatpush1.msra.mxu0 0.0
    %1660 = vmatprep.subr.mxu0 0.0
    %1661 = vmatpush1.msra.mxu0 0.0
    %1662 = vmatprep.subr.mxu0 0.0
    %1663 = vmatpush1.msra.mxu0 0.0
    %1664 = vmatprep.subr.mxu0 0.0
    %1665 = vmatpush1.msra.mxu0 0.0
    %1666 = vmatprep.mubr.f32.mxu0 0.0
    %1667 = vmatmul.mubr.f32.gmra.mrb[0].mxu0 %v1529
    %v1668 = vpop.f32.mrb[0].mxu0
    %v1669 = vadd.f32 0.0, %v1668
    %v1670 = vpop.f32.mrb[0].mxu0
    %v1671 = vadd.f32 0.0, %v1670
    %1672 = vdwg.mxu0
    %v1677 = vrot.slane %v1598, 4
    %v1678 = vrot.slane %v1600, 4
    %v1679 = vrot.slane %v1669, 4
    %v1680 = vrot.slane %v1671, 4
    %v1681 = vrot.slane %v1598, 5
    %v1682 = vrot.slane %v1600, 5
    %v1683 = vrot.slane %v1669, 5
    %v1684 = vrot.slane %v1671, 5
    %v1693 = vadd.f32 %v200, %v1677
    %v1694 = vadd.f32 %v202, %v1678
    %v1695 = vadd.f32 %v277, %v1679
    %v1696 = vadd.f32 %v279, %v1680
    %v1697 = vadd.f32 %v206, %v1681
    %v1698 = vadd.f32 %v208, %v1682
    %v1699 = vadd.f32 %v283, %v1683
    %v1700 = vadd.f32 %v285, %v1684
    %v1701 = vxor.u32 %v1693, 2147483648
    %v1702 = vxor.u32 %v1697, 2147483648
    %v1703 = vmul.f32 %v1701, 1.442695
    %v1704 = vpow.pop %v1703
    %v1705 = vmul.f32 %v1702, 1.442695
    %v1706 = vpow.pop %v1705
    %v1707 = vadd.f32 %v1704, 1.0
    %v1708 = vadd.f32 %v1706, 1.0
    %v1709 = vrcp.pop %v1707
    %v1710 = vmul.f32 1.0, %v1709
    %v1711 = vrcp.pop %v1708
    %v1712 = vmul.f32 1.0, %v1711
    %v1713 = vxor.u32 %v1694, 2147483648
    %v1714 = vxor.u32 %v1698, 2147483648
    %v1715 = vmul.f32 %v1713, 1.442695
    %v1716 = vpow.pop %v1715
    %v1717 = vmul.f32 %v1714, 1.442695
    %v1718 = vpow.pop %v1717
    %v1719 = vadd.f32 %v1716, 1.0
    %v1720 = vadd.f32 %v1718, 1.0
    %v1721 = vrcp.pop %v1719
    %v1722 = vmul.f32 1.0, %v1721
    %v1723 = vrcp.pop %v1720
    %v1724 = vmul.f32 1.0, %v1723
    %v1725 = vtanh.pop %v1695
    %v1726 = vtanh.pop %v1699
    %v1727 = vxor.u32 %v1696, 2147483648
    %v1728 = vxor.u32 %v1700, 2147483648
    %v1729 = vmul.f32 %v1727, 1.442695
    %v1730 = vpow.pop %v1729
    %v1731 = vmul.f32 %v1728, 1.442695
    %v1732 = vpow.pop %v1731
    %v1733 = vadd.f32 %v1730, 1.0
    %v1734 = vadd.f32 %v1732, 1.0
    %v1735 = vrcp.pop %v1733
    %v1736 = vmul.f32 1.0, %v1735
    %v1737 = vrcp.pop %v1734
    %v1738 = vmul.f32 1.0, %v1737
    %v1741 = vrot.slane %v1449, 7
    %v1742 = vrot.slane %v1450, 7
    %v1745 = vmul.f32 %v1722, %v1741
    %v1746 = vmul.f32 %v1724, %v1742
    %v1747 = vmul.f32 %v1710, %v1725
    %v1748 = vmul.f32 %v1712, %v1726
    %v1749 = vadd.f32 %v1745, %v1747
    %v1750 = vadd.f32 %v1746, %v1748
    %v1751 = vtanh.pop %v1749
    %v1752 = vtanh.pop %v1750
    %v1753 = vmul.f32 %v1736, %v1751
    %v1754 = vmul.f32 %v1738, %v1752
    %v1757 = vrot.slane %v1754, 7
    %vm1758 = vcmask 1045509
    %v1759 = vsel %vm1758, %v1757, %v1753
    %s1761 = scalar_lea.vmem [#allocation2], 8
    %1762 = vst [vmem:[%s1761 - $0x4] sm:$0x30] %v1759
    %v1763 = vld [vmem:[#allocation4] sm:$0xff]
    %v1764 = vld [vmem:[#allocation4 + $0x8] sm:$0xff]
    %v1765 = vld [vmem:[#allocation4 + $0x10] sm:$0xff]
    %v1766 = vld [vmem:[#allocation4 + $0x18] sm:$0xff]
    %v1767 = vld [vmem:[#allocation4 + $0x20] sm:$0xff]
    %v1768 = vld [vmem:[#allocation4 + $0x28] sm:$0xff]
    %v1769 = vld [vmem:[#allocation4 + $0x30] sm:$0xff]
    %v1770 = vld [vmem:[#allocation4 + $0x38] sm:$0xff]
    %v1771 = vld [vmem:[#allocation4 + $0x40] sm:$0xff]
    %v1772 = vld [vmem:[#allocation4 + $0x48] sm:$0xff]
    %v1773 = vld [vmem:[#allocation4 + $0x50] sm:$0xff]
    %v1774 = vld [vmem:[#allocation4 + $0x58] sm:$0xff]
    %v1775 = vld [vmem:[#allocation4 + $0x60] sm:$0xff]
    %v1776 = vld [vmem:[#allocation4 + $0x68] sm:$0xff]
    %v1777 = vld [vmem:[#allocation4 + $0x70] sm:$0xff]
    %v1778 = vld [vmem:[#allocation4 + $0x78] sm:$0xff]
    %v1779 = vld [vmem:[#allocation4 + $0x80] sm:$0xff]
    %v1780 = vld [vmem:[#allocation4 + $0x88] sm:$0xff]
    %v1781 = vld [vmem:[#allocation4 + $0x90] sm:$0xff]
    %v1782 = vld [vmem:[#allocation4 + $0x98] sm:$0xff]
    %v1783 = vld [vmem:[#allocation4 + $0xa0] sm:$0xff]
    %v1784 = vld [vmem:[#allocation4 + $0xa8] sm:$0xff]
    %v1785 = vld [vmem:[#allocation4 + $0xb0] sm:$0xff]
    %v1786 = vld [vmem:[#allocation4 + $0xb8] sm:$0xff]
    %v1787 = vld [vmem:[#allocation4 + $0xc0] sm:$0xff]
    %v1788 = vld [vmem:[#allocation4 + $0xc8] sm:$0xff]
    %v1789 = vld [vmem:[#allocation4 + $0xd0] sm:$0xff]
    %v1790 = vld [vmem:[#allocation4 + $0xd8] sm:$0xff]
    %v1791 = vld [vmem:[#allocation4 + $0xe0] sm:$0xff]
    %v1792 = vld [vmem:[#allocation4 + $0xe8] sm:$0xff]
    %v1793 = vld [vmem:[#allocation4 + $0xf0] sm:$0xff]
    %v1794 = vld [vmem:[#allocation4 + $0xf8] sm:$0xff]
    %v1795 = vld [vmem:[#allocation4 + $0x100] sm:$0xff]
    %v1796 = vld [vmem:[#allocation4 + $0x108] sm:$0xff]
    %v1797 = vld [vmem:[#allocation4 + $0x110] sm:$0xff]
    %v1798 = vld [vmem:[#allocation4 + $0x118] sm:$0xff]
    %v1799 = vld [vmem:[#allocation4 + $0x120] sm:$0xff]
    %v1800 = vld [vmem:[#allocation4 + $0x128] sm:$0xff]
    %v1801 = vld [vmem:[#allocation4 + $0x130] sm:$0xff]
    %v1802 = vld [vmem:[#allocation4 + $0x138] sm:$0xff]
    %v1803 = vld [vmem:[#allocation4 + $0x140] sm:$0xff]
    %v1804 = vld [vmem:[#allocation4 + $0x148] sm:$0xff]
    %v1805 = vld [vmem:[#allocation4 + $0x150] sm:$0xff]
    %v1806 = vld [vmem:[#allocation4 + $0x158] sm:$0xff]
    %v1807 = vld [vmem:[#allocation4 + $0x160] sm:$0xff]
    %v1808 = vld [vmem:[#allocation4 + $0x168] sm:$0xff]
    %v1809 = vld [vmem:[#allocation4 + $0x170] sm:$0xff]
    %v1810 = vld [vmem:[#allocation4 + $0x178] sm:$0xff]
    %v1811 = vld [vmem:[#allocation4 + $0x180] sm:$0xff]
    %v1812 = vld [vmem:[#allocation4 + $0x188] sm:$0xff]
    %v1813 = vld [vmem:[#allocation4 + $0x190] sm:$0xff]
    %v1814 = vld [vmem:[#allocation4 + $0x198] sm:$0xff]
    %v1815 = vld [vmem:[#allocation4 + $0x1a0] sm:$0xff]
    %v1816 = vld [vmem:[#allocation4 + $0x1a8] sm:$0xff]
    %v1817 = vld [vmem:[#allocation4 + $0x1b0] sm:$0xff]
    %v1818 = vld [vmem:[#allocation4 + $0x1b8] sm:$0xff]
    %v1819 = vld [vmem:[#allocation4 + $0x1c0] sm:$0xff]
    %v1820 = vld [vmem:[#allocation4 + $0x1c8] sm:$0xff]
    %v1821 = vld [vmem:[#allocation4 + $0x1d0] sm:$0xff]
    %v1822 = vld [vmem:[#allocation4 + $0x1d8] sm:$0xff]
    %v1823 = vld [vmem:[#allocation4 + $0x1e0] sm:$0xff]
    %v1824 = vld [vmem:[#allocation4 + $0x1e8] sm:$0xff]
    %v1825 = vld [vmem:[#allocation4 + $0x1f0] sm:$0xff]
    %v1826 = vld [vmem:[#allocation4 + $0x1f8] sm:$0xff]
    %v1827 = vrot.slane %v1753, 4
    %v1828 = vrot.slane %v1754, 3
    %v1829 = vsel %vm568, %v1828, %v1827
    %1831 = vmatprep.subr.mxu0 %v1764
    %1832 = vmatpush1.msra.mxu0 %v1763
    %1833 = vmatprep.subr.mxu0 %v1768
    %1834 = vmatpush1.msra.mxu0 %v1767
    %1835 = vmatprep.subr.mxu0 %v1772
    %1836 = vmatpush1.msra.mxu0 %v1771
    %1837 = vmatprep.subr.mxu0 %v1776
    %1838 = vmatpush1.msra.mxu0 %v1775
    %1839 = vmatprep.subr.mxu0 %v1780
    %1840 = vmatpush1.msra.mxu0 %v1779
    %1841 = vmatprep.subr.mxu0 %v1784
    %1842 = vmatpush1.msra.mxu0 %v1783
    %1843 = vmatprep.subr.mxu0 %v1788
    %1844 = vmatpush1.msra.mxu0 %v1787
    %1845 = vmatprep.subr.mxu0 %v1792
    %1846 = vmatpush1.msra.mxu0 %v1791
    %1847 = vmatprep.subr.mxu0 %v1796
    %1848 = vmatpush1.msra.mxu0 %v1795
    %1849 = vmatprep.subr.mxu0 %v1800
    %1850 = vmatpush1.msra.mxu0 %v1799
    %1851 = vmatprep.subr.mxu0 %v1804
    %1852 = vmatpush1.msra.mxu0 %v1803
    %1853 = vmatprep.subr.mxu0 %v1808
    %1854 = vmatpush1.msra.mxu0 %v1807
    %1855 = vmatprep.subr.mxu0 %v1812
    %1856 = vmatpush1.msra.mxu0 %v1811
    %1857 = vmatprep.subr.mxu0 %v1816
    %1858 = vmatpush1.msra.mxu0 %v1815
    %1859 = vmatprep.subr.mxu0 %v1820
    %1860 = vmatpush1.msra.mxu0 %v1819
    %1861 = vmatprep.subr.mxu0 %v1824
    %1862 = vmatpush1.msra.mxu0 %v1823
    %1863 = vmatprep.subr.mxu0 0.0
    %1864 = vmatpush1.msra.mxu0 0.0
    %1865 = vmatprep.subr.mxu0 0.0
    %1866 = vmatpush1.msra.mxu0 0.0
    %1867 = vmatprep.subr.mxu0 0.0
    %1868 = vmatpush1.msra.mxu0 0.0
    %1869 = vmatprep.subr.mxu0 0.0
    %1870 = vmatpush1.msra.mxu0 0.0
    %1871 = vmatprep.subr.mxu0 0.0
    %1872 = vmatpush1.msra.mxu0 0.0
    %1873 = vmatprep.subr.mxu0 0.0
    %1874 = vmatpush1.msra.mxu0 0.0
    %1875 = vmatprep.subr.mxu0 0.0
    %1876 = vmatpush1.msra.mxu0 0.0
    %1877 = vmatprep.subr.mxu0 0.0
    %1878 = vmatpush1.msra.mxu0 0.0
    %1879 = vmatprep.subr.mxu0 0.0
    %1880 = vmatpush1.msra.mxu0 0.0
    %1881 = vmatprep.subr.mxu0 0.0
    %1882 = vmatpush1.msra.mxu0 0.0
    %1883 = vmatprep.subr.mxu0 0.0
    %1884 = vmatpush1.msra.mxu0 0.0
    %1885 = vmatprep.subr.mxu0 0.0
    %1886 = vmatpush1.msra.mxu0 0.0
    %1887 = vmatprep.subr.mxu0 0.0
    %1888 = vmatpush1.msra.mxu0 0.0
    %1889 = vmatprep.subr.mxu0 0.0
    %1890 = vmatpush1.msra.mxu0 0.0
    %1891 = vmatprep.subr.mxu0 0.0
    %1892 = vmatpush1.msra.mxu0 0.0
    %1893 = vmatprep.subr.mxu0 0.0
    %1894 = vmatpush1.msra.mxu0 0.0
    %1895 = vmatprep.mubr.f32.mxu0 0.0
    %1896 = vmatmul.mubr.f32.gmra.mrb[0].mxu0 %v1829
    %v1897 = vpop.f32.mrb[0].mxu0
    %v1898 = vadd.f32 0.0, %v1897
    %v1899 = vpop.f32.mrb[0].mxu0
    %v1900 = vadd.f32 0.0, %v1899
    %1901 = vdwg.mxu0
    %1902 = vmatprep.subr.mxu0 %v1766
    %1903 = vmatpush1.msra.mxu0 %v1765
    %1904 = vmatprep.subr.mxu0 %v1770
    %1905 = vmatpush1.msra.mxu0 %v1769
    %1906 = vmatprep.subr.mxu0 %v1774
    %1907 = vmatpush1.msra.mxu0 %v1773
    %1908 = vmatprep.subr.mxu0 %v1778
    %1909 = vmatpush1.msra.mxu0 %v1777
    %1910 = vmatprep.subr.mxu0 %v1782
    %1911 = vmatpush1.msra.mxu0 %v1781
    %1912 = vmatprep.subr.mxu0 %v1786
    %1913 = vmatpush1.msra.mxu0 %v1785
    %1914 = vmatprep.subr.mxu0 %v1790
    %1915 = vmatpush1.msra.mxu0 %v1789
    %1916 = vmatprep.subr.mxu0 %v1794
    %1917 = vmatpush1.msra.mxu0 %v1793
    %1918 = vmatprep.subr.mxu0 %v1798
    %1919 = vmatpush1.msra.mxu0 %v1797
    %1920 = vmatprep.subr.mxu0 %v1802
    %1921 = vmatpush1.msra.mxu0 %v1801
    %1922 = vmatprep.subr.mxu0 %v1806
    %1923 = vmatpush1.msra.mxu0 %v1805
    %1924 = vmatprep.subr.mxu0 %v1810
    %1925 = vmatpush1.msra.mxu0 %v1809
    %1926 = vmatprep.subr.mxu0 %v1814
    %1927 = vmatpush1.msra.mxu0 %v1813
    %1928 = vmatprep.subr.mxu0 %v1818
    %1929 = vmatpush1.msra.mxu0 %v1817
    %1930 = vmatprep.subr.mxu0 %v1822
    %1931 = vmatpush1.msra.mxu0 %v1821
    %1932 = vmatprep.subr.mxu0 %v1826
    %1933 = vmatpush1.msra.mxu0 %v1825
    %1934 = vmatprep.subr.mxu0 0.0
    %1935 = vmatpush1.msra.mxu0 0.0
    %1936 = vmatprep.subr.mxu0 0.0
    %1937 = vmatpush1.msra.mxu0 0.0
    %1938 = vmatprep.subr.mxu0 0.0
    %1939 = vmatpush1.msra.mxu0 0.0
    %1940 = vmatprep.subr.mxu0 0.0
    %1941 = vmatpush1.msra.mxu0 0.0
    %1942 = vmatprep.subr.mxu0 0.0
    %1943 = vmatpush1.msra.mxu0 0.0
    %1944 = vmatprep.subr.mxu0 0.0
    %1945 = vmatpush1.msra.mxu0 0.0
    %1946 = vmatprep.subr.mxu0 0.0
    %1947 = vmatpush1.msra.mxu0 0.0
    %1948 = vmatprep.subr.mxu0 0.0
    %1949 = vmatpush1.msra.mxu0 0.0
    %1950 = vmatprep.subr.mxu0 0.0
    %1951 = vmatpush1.msra.mxu0 0.0
    %1952 = vmatprep.subr.mxu0 0.0
    %1953 = vmatpush1.msra.mxu0 0.0
    %1954 = vmatprep.subr.mxu0 0.0
    %1955 = vmatpush1.msra.mxu0 0.0
    %1956 = vmatprep.subr.mxu0 0.0
    %1957 = vmatpush1.msra.mxu0 0.0
    %1958 = vmatprep.subr.mxu0 0.0
    %1959 = vmatpush1.msra.mxu0 0.0
    %1960 = vmatprep.subr.mxu0 0.0
    %1961 = vmatpush1.msra.mxu0 0.0
    %1962 = vmatprep.subr.mxu0 0.0
    %1963 = vmatpush1.msra.mxu0 0.0
    %1964 = vmatprep.subr.mxu0 0.0
    %1965 = vmatpush1.msra.mxu0 0.0
    %1966 = vmatprep.mubr.f32.mxu0 0.0
    %1967 = vmatmul.mubr.f32.gmra.mrb[0].mxu0 %v1829
    %v1968 = vpop.f32.mrb[0].mxu0
    %v1969 = vadd.f32 0.0, %v1968
    %v1970 = vpop.f32.mrb[0].mxu0
    %v1971 = vadd.f32 0.0, %v1970
    %1972 = vdwg.mxu0
    %v1977 = vrot.slane %v1898, 3
    %v1978 = vrot.slane %v1900, 3
    %v1979 = vrot.slane %v1969, 3
    %v1980 = vrot.slane %v1971, 3
    %v1981 = vrot.slane %v1898, 4
    %v1982 = vrot.slane %v1900, 4
    %v1983 = vrot.slane %v1969, 4
    %v1984 = vrot.slane %v1971, 4
    %v1993 = vadd.f32 %v200, %v1977
    %v1994 = vadd.f32 %v202, %v1978
    %v1995 = vadd.f32 %v277, %v1979
    %v1996 = vadd.f32 %v279, %v1980
    %v1997 = vadd.f32 %v206, %v1981
    %v1998 = vadd.f32 %v208, %v1982
    %v1999 = vadd.f32 %v283, %v1983
    %v2000 = vadd.f32 %v285, %v1984
    %v2001 = vxor.u32 %v1993, 2147483648
    %v2002 = vxor.u32 %v1997, 2147483648
    %v2003 = vmul.f32 %v2001, 1.442695
    %v2004 = vpow.pop %v2003
    %v2005 = vmul.f32 %v2002, 1.442695
    %v2006 = vpow.pop %v2005
    %v2007 = vadd.f32 %v2004, 1.0
    %v2008 = vadd.f32 %v2006, 1.0
    %v2009 = vrcp.pop %v2007
    %v2010 = vmul.f32 1.0, %v2009
    %v2011 = vrcp.pop %v2008
    %v2012 = vmul.f32 1.0, %v2011
    %v2013 = vxor.u32 %v1994, 2147483648
    %v2014 = vxor.u32 %v1998, 2147483648
    %v2015 = vmul.f32 %v2013, 1.442695
    %v2016 = vpow.pop %v2015
    %v2017 = vmul.f32 %v2014, 1.442695
    %v2018 = vpow.pop %v2017
    %v2019 = vadd.f32 %v2016, 1.0
    %v2020 = vadd.f32 %v2018, 1.0
    %v2021 = vrcp.pop %v2019
    %v2022 = vmul.f32 1.0, %v2021
    %v2023 = vrcp.pop %v2020
    %v2024 = vmul.f32 1.0, %v2023
    %v2025 = vtanh.pop %v1995
    %v2026 = vtanh.pop %v1999
    %v2027 = vxor.u32 %v1996, 2147483648
    %v2028 = vxor.u32 %v2000, 2147483648
    %v2029 = vmul.f32 %v2027, 1.442695
    %v2030 = vpow.pop %v2029
    %v2031 = vmul.f32 %v2028, 1.442695
    %v2032 = vpow.pop %v2031
    %v2033 = vadd.f32 %v2030, 1.0
    %v2034 = vadd.f32 %v2032, 1.0
    %v2035 = vrcp.pop %v2033
    %v2036 = vmul.f32 1.0, %v2035
    %v2037 = vrcp.pop %v2034
    %v2038 = vmul.f32 1.0, %v2037
    %v2041 = vrot.slane %v1749, 7
    %v2042 = vrot.slane %v1750, 7
    %v2045 = vmul.f32 %v2022, %v2041
    %v2046 = vmul.f32 %v2024, %v2042
    %v2047 = vmul.f32 %v2010, %v2025
    %v2048 = vmul.f32 %v2012, %v2026
    %v2049 = vadd.f32 %v2045, %v2047
    %v2050 = vadd.f32 %v2046, %v2048
    %v2051 = vtanh.pop %v2049
    %v2052 = vtanh.pop %v2050
    %v2053 = vmul.f32 %v2036, %v2051
    %v2054 = vmul.f32 %v2038, %v2052
    %v2057 = vrot.slane %v2054, 7
    %vm2058 = vcmask 1046534
    %v2059 = vsel %vm2058, %v2057, %v2053
    %s2061 = scalar_lea.vmem [#allocation2], 10
    %2062 = vst [vmem:[%s2061 - $0x5] sm:$0x60] %v2059
    %v2063 = vld [vmem:[#allocation4] sm:$0xff]
    %v2064 = vld [vmem:[#allocation4 + $0x8] sm:$0xff]
    %v2065 = vld [vmem:[#allocation4 + $0x10] sm:$0xff]
    %v2066 = vld [vmem:[#allocation4 + $0x18] sm:$0xff]
    %v2067 = vld [vmem:[#allocation4 + $0x20] sm:$0xff]
    %v2068 = vld [vmem:[#allocation4 + $0x28] sm:$0xff]
    %v2069 = vld [vmem:[#allocation4 + $0x30] sm:$0xff]
    %v2070 = vld [vmem:[#allocation4 + $0x38] sm:$0xff]
    %v2071 = vld [vmem:[#allocation4 + $0x40] sm:$0xff]
    %v2072 = vld [vmem:[#allocation4 + $0x48] sm:$0xff]
    %v2073 = vld [vmem:[#allocation4 + $0x50] sm:$0xff]
    %v2074 = vld [vmem:[#allocation4 + $0x58] sm:$0xff]
    %v2075 = vld [vmem:[#allocation4 + $0x60] sm:$0xff]
    %v2076 = vld [vmem:[#allocation4 + $0x68] sm:$0xff]
    %v2077 = vld [vmem:[#allocation4 + $0x70] sm:$0xff]
    %v2078 = vld [vmem:[#allocation4 + $0x78] sm:$0xff]
    %v2079 = vld [vmem:[#allocation4 + $0x80] sm:$0xff]
    %v2080 = vld [vmem:[#allocation4 + $0x88] sm:$0xff]
    %v2081 = vld [vmem:[#allocation4 + $0x90] sm:$0xff]
    %v2082 = vld [vmem:[#allocation4 + $0x98] sm:$0xff]
    %v2083 = vld [vmem:[#allocation4 + $0xa0] sm:$0xff]
    %v2084 = vld [vmem:[#allocation4 + $0xa8] sm:$0xff]
    %v2085 = vld [vmem:[#allocation4 + $0xb0] sm:$0xff]
    %v2086 = vld [vmem:[#allocation4 + $0xb8] sm:$0xff]
    %v2087 = vld [vmem:[#allocation4 + $0xc0] sm:$0xff]
    %v2088 = vld [vmem:[#allocation4 + $0xc8] sm:$0xff]
    %v2089 = vld [vmem:[#allocation4 + $0xd0] sm:$0xff]
    %v2090 = vld [vmem:[#allocation4 + $0xd8] sm:$0xff]
    %v2091 = vld [vmem:[#allocation4 + $0xe0] sm:$0xff]
    %v2092 = vld [vmem:[#allocation4 + $0xe8] sm:$0xff]
    %v2093 = vld [vmem:[#allocation4 + $0xf0] sm:$0xff]
    %v2094 = vld [vmem:[#allocation4 + $0xf8] sm:$0xff]
    %v2095 = vld [vmem:[#allocation4 + $0x100] sm:$0xff]
    %v2096 = vld [vmem:[#allocation4 + $0x108] sm:$0xff]
    %v2097 = vld [vmem:[#allocation4 + $0x110] sm:$0xff]
    %v2098 = vld [vmem:[#allocation4 + $0x118] sm:$0xff]
    %v2099 = vld [vmem:[#allocation4 + $0x120] sm:$0xff]
    %v2100 = vld [vmem:[#allocation4 + $0x128] sm:$0xff]
    %v2101 = vld [vmem:[#allocation4 + $0x130] sm:$0xff]
    %v2102 = vld [vmem:[#allocation4 + $0x138] sm:$0xff]
    %v2103 = vld [vmem:[#allocation4 + $0x140] sm:$0xff]
    %v2104 = vld [vmem:[#allocation4 + $0x148] sm:$0xff]
    %v2105 = vld [vmem:[#allocation4 + $0x150] sm:$0xff]
    %v2106 = vld [vmem:[#allocation4 + $0x158] sm:$0xff]
    %v2107 = vld [vmem:[#allocation4 + $0x160] sm:$0xff]
    %v2108 = vld [vmem:[#allocation4 + $0x168] sm:$0xff]
    %v2109 = vld [vmem:[#allocation4 + $0x170] sm:$0xff]
    %v2110 = vld [vmem:[#allocation4 + $0x178] sm:$0xff]
    %v2111 = vld [vmem:[#allocation4 + $0x180] sm:$0xff]
    %v2112 = vld [vmem:[#allocation4 + $0x188] sm:$0xff]
    %v2113 = vld [vmem:[#allocation4 + $0x190] sm:$0xff]
    %v2114 = vld [vmem:[#allocation4 + $0x198] sm:$0xff]
    %v2115 = vld [vmem:[#allocation4 + $0x1a0] sm:$0xff]
    %v2116 = vld [vmem:[#allocation4 + $0x1a8] sm:$0xff]
    %v2117 = vld [vmem:[#allocation4 + $0x1b0] sm:$0xff]
    %v2118 = vld [vmem:[#allocation4 + $0x1b8] sm:$0xff]
    %v2119 = vld [vmem:[#allocation4 + $0x1c0] sm:$0xff]
    %v2120 = vld [vmem:[#allocation4 + $0x1c8] sm:$0xff]
    %v2121 = vld [vmem:[#allocation4 + $0x1d0] sm:$0xff]
    %v2122 = vld [vmem:[#allocation4 + $0x1d8] sm:$0xff]
    %v2123 = vld [vmem:[#allocation4 + $0x1e0] sm:$0xff]
    %v2124 = vld [vmem:[#allocation4 + $0x1e8] sm:$0xff]
    %v2125 = vld [vmem:[#allocation4 + $0x1f0] sm:$0xff]
    %v2126 = vld [vmem:[#allocation4 + $0x1f8] sm:$0xff]
    %v2127 = vrot.slane %v2053, 5
    %v2128 = vrot.slane %v2054, 4
    %v2129 = vsel %vm568, %v2128, %v2127
    %2131 = vmatprep.subr.mxu0 %v2064
    %2132 = vmatpush1.msra.mxu0 %v2063
    %2133 = vmatprep.subr.mxu0 %v2068
    %2134 = vmatpush1.msra.mxu0 %v2067
    %2135 = vmatprep.subr.mxu0 %v2072
    %2136 = vmatpush1.msra.mxu0 %v2071
    %2137 = vmatprep.subr.mxu0 %v2076
    %2138 = vmatpush1.msra.mxu0 %v2075
    %2139 = vmatprep.subr.mxu0 %v2080
    %2140 = vmatpush1.msra.mxu0 %v2079
    %2141 = vmatprep.subr.mxu0 %v2084
    %2142 = vmatpush1.msra.mxu0 %v2083
    %2143 = vmatprep.subr.mxu0 %v2088
    %2144 = vmatpush1.msra.mxu0 %v2087
    %2145 = vmatprep.subr.mxu0 %v2092
    %2146 = vmatpush1.msra.mxu0 %v2091
    %2147 = vmatprep.subr.mxu0 %v2096
    %2148 = vmatpush1.msra.mxu0 %v2095
    %2149 = vmatprep.subr.mxu0 %v2100
    %2150 = vmatpush1.msra.mxu0 %v2099
    %2151 = vmatprep.subr.mxu0 %v2104
    %2152 = vmatpush1.msra.mxu0 %v2103
    %2153 = vmatprep.subr.mxu0 %v2108
    %2154 = vmatpush1.msra.mxu0 %v2107
    %2155 = vmatprep.subr.mxu0 %v2112
    %2156 = vmatpush1.msra.mxu0 %v2111
    %2157 = vmatprep.subr.mxu0 %v2116
    %2158 = vmatpush1.msra.mxu0 %v2115
    %2159 = vmatprep.subr.mxu0 %v2120
    %2160 = vmatpush1.msra.mxu0 %v2119
    %2161 = vmatprep.subr.mxu0 %v2124
    %2162 = vmatpush1.msra.mxu0 %v2123
    %2163 = vmatprep.subr.mxu0 0.0
    %2164 = vmatpush1.msra.mxu0 0.0
    %2165 = vmatprep.subr.mxu0 0.0
    %2166 = vmatpush1.msra.mxu0 0.0
    %2167 = vmatprep.subr.mxu0 0.0
    %2168 = vmatpush1.msra.mxu0 0.0
    %2169 = vmatprep.subr.mxu0 0.0
    %2170 = vmatpush1.msra.mxu0 0.0
    %2171 = vmatprep.subr.mxu0 0.0
    %2172 = vmatpush1.msra.mxu0 0.0
    %2173 = vmatprep.subr.mxu0 0.0
    %2174 = vmatpush1.msra.mxu0 0.0
    %2175 = vmatprep.subr.mxu0 0.0
    %2176 = vmatpush1.msra.mxu0 0.0
    %2177 = vmatprep.subr.mxu0 0.0
    %2178 = vmatpush1.msra.mxu0 0.0
    %2179 = vmatprep.subr.mxu0 0.0
    %2180 = vmatpush1.msra.mxu0 0.0
    %2181 = vmatprep.subr.mxu0 0.0
    %2182 = vmatpush1.msra.mxu0 0.0
    %2183 = vmatprep.subr.mxu0 0.0
    %2184 = vmatpush1.msra.mxu0 0.0
    %2185 = vmatprep.subr.mxu0 0.0
    %2186 = vmatpush1.msra.mxu0 0.0
    %2187 = vmatprep.subr.mxu0 0.0
    %2188 = vmatpush1.msra.mxu0 0.0
    %2189 = vmatprep.subr.mxu0 0.0
    %2190 = vmatpush1.msra.mxu0 0.0
    %2191 = vmatprep.subr.mxu0 0.0
    %2192 = vmatpush1.msra.mxu0 0.0
    %2193 = vmatprep.subr.mxu0 0.0
    %2194 = vmatpush1.msra.mxu0 0.0
    %2195 = vmatprep.mubr.f32.mxu0 0.0
    %2196 = vmatmul.mubr.f32.gmra.mrb[0].mxu0 %v2129
    %v2197 = vpop.f32.mrb[0].mxu0
    %v2198 = vadd.f32 0.0, %v2197
    %v2199 = vpop.f32.mrb[0].mxu0
    %v2200 = vadd.f32 0.0, %v2199
    %2201 = vdwg.mxu0
    %2202 = vmatprep.subr.mxu0 %v2066
    %2203 = vmatpush1.msra.mxu0 %v2065
    %2204 = vmatprep.subr.mxu0 %v2070
    %2205 = vmatpush1.msra.mxu0 %v2069
    %2206 = vmatprep.subr.mxu0 %v2074
    %2207 = vmatpush1.msra.mxu0 %v2073
    %2208 = vmatprep.subr.mxu0 %v2078
    %2209 = vmatpush1.msra.mxu0 %v2077
    %2210 = vmatprep.subr.mxu0 %v2082
    %2211 = vmatpush1.msra.mxu0 %v2081
    %2212 = vmatprep.subr.mxu0 %v2086
    %2213 = vmatpush1.msra.mxu0 %v2085
    %2214 = vmatprep.subr.mxu0 %v2090
    %2215 = vmatpush1.msra.mxu0 %v2089
    %2216 = vmatprep.subr.mxu0 %v2094
    %2217 = vmatpush1.msra.mxu0 %v2093
    %2218 = vmatprep.subr.mxu0 %v2098
    %2219 = vmatpush1.msra.mxu0 %v2097
    %2220 = vmatprep.subr.mxu0 %v2102
    %2221 = vmatpush1.msra.mxu0 %v2101
    %2222 = vmatprep.subr.mxu0 %v2106
    %2223 = vmatpush1.msra.mxu0 %v2105
    %2224 = vmatprep.subr.mxu0 %v2110
    %2225 = vmatpush1.msra.mxu0 %v2109
    %2226 = vmatprep.subr.mxu0 %v2114
    %2227 = vmatpush1.msra.mxu0 %v2113
    %2228 = vmatprep.subr.mxu0 %v2118
    %2229 = vmatpush1.msra.mxu0 %v2117
    %2230 = vmatprep.subr.mxu0 %v2122
    %2231 = vmatpush1.msra.mxu0 %v2121
    %2232 = vmatprep.subr.mxu0 %v2126
    %2233 = vmatpush1.msra.mxu0 %v2125
    %2234 = vmatprep.subr.mxu0 0.0
    %2235 = vmatpush1.msra.mxu0 0.0
    %2236 = vmatprep.subr.mxu0 0.0
    %2237 = vmatpush1.msra.mxu0 0.0
    %2238 = vmatprep.subr.mxu0 0.0
    %2239 = vmatpush1.msra.mxu0 0.0
    %2240 = vmatprep.subr.mxu0 0.0
    %2241 = vmatpush1.msra.mxu0 0.0
    %2242 = vmatprep.subr.mxu0 0.0
    %2243 = vmatpush1.msra.mxu0 0.0
    %2244 = vmatprep.subr.mxu0 0.0
    %2245 = vmatpush1.msra.mxu0 0.0
    %2246 = vmatprep.subr.mxu0 0.0
    %2247 = vmatpush1.msra.mxu0 0.0
    %2248 = vmatprep.subr.mxu0 0.0
    %2249 = vmatpush1.msra.mxu0 0.0
    %2250 = vmatprep.subr.mxu0 0.0
    %2251 = vmatpush1.msra.mxu0 0.0
    %2252 = vmatprep.subr.mxu0 0.0
    %2253 = vmatpush1.msra.mxu0 0.0
    %2254 = vmatprep.subr.mxu0 0.0
    %2255 = vmatpush1.msra.mxu0 0.0
    %2256 = vmatprep.subr.mxu0 0.0
    %2257 = vmatpush1.msra.mxu0 0.0
    %2258 = vmatprep.subr.mxu0 0.0
    %2259 = vmatpush1.msra.mxu0 0.0
    %2260 = vmatprep.subr.mxu0 0.0
    %2261 = vmatpush1.msra.mxu0 0.0
    %2262 = vmatprep.subr.mxu0 0.0
    %2263 = vmatpush1.msra.mxu0 0.0
    %2264 = vmatprep.subr.mxu0 0.0
    %2265 = vmatpush1.msra.mxu0 0.0
    %2266 = vmatprep.mubr.f32.mxu0 0.0
    %2267 = vmatmul.mubr.f32.gmra.mrb[0].mxu0 %v2129
    %v2268 = vpop.f32.mrb[0].mxu0
    %v2269 = vadd.f32 0.0, %v2268
    %v2270 = vpop.f32.mrb[0].mxu0
    %v2271 = vadd.f32 0.0, %v2270
    %2272 = vdwg.mxu0
    %v2277 = vrot.slane %v2198, 2
    %v2278 = vrot.slane %v2200, 2
    %v2279 = vrot.slane %v2269, 2
    %v2280 = vrot.slane %v2271, 2
    %v2281 = vrot.slane %v2198, 3
    %v2282 = vrot.slane %v2200, 3
    %v2283 = vrot.slane %v2269, 3
    %v2284 = vrot.slane %v2271, 3
    %v2293 = vadd.f32 %v200, %v2277
    %v2294 = vadd.f32 %v202, %v2278
    %v2295 = vadd.f32 %v277, %v2279
    %v2296 = vadd.f32 %v279, %v2280
    %v2297 = vadd.f32 %v206, %v2281
    %v2298 = vadd.f32 %v208, %v2282
    %v2299 = vadd.f32 %v283, %v2283
    %v2300 = vadd.f32 %v285, %v2284
    %v2301 = vxor.u32 %v2293, 2147483648
    %v2302 = vxor.u32 %v2297, 2147483648
    %v2303 = vmul.f32 %v2301, 1.442695
    %v2304 = vpow.pop %v2303
    %v2305 = vmul.f32 %v2302, 1.442695
    %v2306 = vpow.pop %v2305
    %v2307 = vadd.f32 %v2304, 1.0
    %v2308 = vadd.f32 %v2306, 1.0
    %v2309 = vrcp.pop %v2307
    %v2310 = vmul.f32 1.0, %v2309
    %v2311 = vrcp.pop %v2308
    %v2312 = vmul.f32 1.0, %v2311
    %v2313 = vxor.u32 %v2294, 2147483648
    %v2314 = vxor.u32 %v2298, 2147483648
    %v2315 = vmul.f32 %v2313, 1.442695
    %v2316 = vpow.pop %v2315
    %v2317 = vmul.f32 %v2314, 1.442695
    %v2318 = vpow.pop %v2317
    %v2319 = vadd.f32 %v2316, 1.0
    %v2320 = vadd.f32 %v2318, 1.0
    %v2321 = vrcp.pop %v2319
    %v2322 = vmul.f32 1.0, %v2321
    %v2323 = vrcp.pop %v2320
    %v2324 = vmul.f32 1.0, %v2323
    %v2325 = vtanh.pop %v2295
    %v2326 = vtanh.pop %v2299
    %v2327 = vxor.u32 %v2296, 2147483648
    %v2328 = vxor.u32 %v2300, 2147483648
    %v2329 = vmul.f32 %v2327, 1.442695
    %v2330 = vpow.pop %v2329
    %v2331 = vmul.f32 %v2328, 1.442695
    %v2332 = vpow.pop %v2331
    %v2333 = vadd.f32 %v2330, 1.0
    %v2334 = vadd.f32 %v2332, 1.0
    %v2335 = vrcp.pop %v2333
    %v2336 = vmul.f32 1.0, %v2335
    %v2337 = vrcp.pop %v2334
    %v2338 = vmul.f32 1.0, %v2337
    %v2341 = vrot.slane %v2049, 7
    %v2342 = vrot.slane %v2050, 7
    %v2345 = vmul.f32 %v2322, %v2341
    %v2346 = vmul.f32 %v2324, %v2342
    %v2347 = vmul.f32 %v2310, %v2325
    %v2348 = vmul.f32 %v2312, %v2326
    %v2349 = vadd.f32 %v2345, %v2347
    %v2350 = vadd.f32 %v2346, %v2348
    %v2351 = vtanh.pop %v2349
    %v2352 = vtanh.pop %v2350
    %v2353 = vmul.f32 %v2336, %v2351
    %v2354 = vmul.f32 %v2338, %v2352
    %v2357 = vrot.slane %v2354, 7
    %vm2358 = vcmask 1047559
    %v2359 = vsel %vm2358, %v2357, %v2353
    %s2361 = scalar_lea.vmem [#allocation2], 12
    %2362 = vst [vmem:[%s2361 - $0x6] sm:$0xc0] %v2359
    %v2363 = vld [vmem:[#allocation4] sm:$0xff]
    %v2364 = vld [vmem:[#allocation4 + $0x8] sm:$0xff]
    %v2365 = vld [vmem:[#allocation4 + $0x10] sm:$0xff]
    %v2366 = vld [vmem:[#allocation4 + $0x18] sm:$0xff]
    %v2367 = vld [vmem:[#allocation4 + $0x20] sm:$0xff]
    %v2368 = vld [vmem:[#allocation4 + $0x28] sm:$0xff]
    %v2369 = vld [vmem:[#allocation4 + $0x30] sm:$0xff]
    %v2370 = vld [vmem:[#allocation4 + $0x38] sm:$0xff]
    %v2371 = vld [vmem:[#allocation4 + $0x40] sm:$0xff]
    %v2372 = vld [vmem:[#allocation4 + $0x48] sm:$0xff]
    %v2373 = vld [vmem:[#allocation4 + $0x50] sm:$0xff]
    %v2374 = vld [vmem:[#allocation4 + $0x58] sm:$0xff]
    %v2375 = vld [vmem:[#allocation4 + $0x60] sm:$0xff]
    %v2376 = vld [vmem:[#allocation4 + $0x68] sm:$0xff]
    %v2377 = vld [vmem:[#allocation4 + $0x70] sm:$0xff]
    %v2378 = vld [vmem:[#allocation4 + $0x78] sm:$0xff]
    %v2379 = vld [vmem:[#allocation4 + $0x80] sm:$0xff]
    %v2380 = vld [vmem:[#allocation4 + $0x88] sm:$0xff]
    %v2381 = vld [vmem:[#allocation4 + $0x90] sm:$0xff]
    %v2382 = vld [vmem:[#allocation4 + $0x98] sm:$0xff]
    %v2383 = vld [vmem:[#allocation4 + $0xa0] sm:$0xff]
    %v2384 = vld [vmem:[#allocation4 + $0xa8] sm:$0xff]
    %v2385 = vld [vmem:[#allocation4 + $0xb0] sm:$0xff]
    %v2386 = vld [vmem:[#allocation4 + $0xb8] sm:$0xff]
    %v2387 = vld [vmem:[#allocation4 + $0xc0] sm:$0xff]
    %v2388 = vld [vmem:[#allocation4 + $0xc8] sm:$0xff]
    %v2389 = vld [vmem:[#allocation4 + $0xd0] sm:$0xff]
    %v2390 = vld [vmem:[#allocation4 + $0xd8] sm:$0xff]
    %v2391 = vld [vmem:[#allocation4 + $0xe0] sm:$0xff]
    %v2392 = vld [vmem:[#allocation4 + $0xe8] sm:$0xff]
    %v2393 = vld [vmem:[#allocation4 + $0xf0] sm:$0xff]
    %v2394 = vld [vmem:[#allocation4 + $0xf8] sm:$0xff]
    %v2395 = vld [vmem:[#allocation4 + $0x100] sm:$0xff]
    %v2396 = vld [vmem:[#allocation4 + $0x108] sm:$0xff]
    %v2397 = vld [vmem:[#allocation4 + $0x110] sm:$0xff]
    %v2398 = vld [vmem:[#allocation4 + $0x118] sm:$0xff]
    %v2399 = vld [vmem:[#allocation4 + $0x120] sm:$0xff]
    %v2400 = vld [vmem:[#allocation4 + $0x128] sm:$0xff]
    %v2401 = vld [vmem:[#allocation4 + $0x130] sm:$0xff]
    %v2402 = vld [vmem:[#allocation4 + $0x138] sm:$0xff]
    %v2403 = vld [vmem:[#allocation4 + $0x140] sm:$0xff]
    %v2404 = vld [vmem:[#allocation4 + $0x148] sm:$0xff]
    %v2405 = vld [vmem:[#allocation4 + $0x150] sm:$0xff]
    %v2406 = vld [vmem:[#allocation4 + $0x158] sm:$0xff]
    %v2407 = vld [vmem:[#allocation4 + $0x160] sm:$0xff]
    %v2408 = vld [vmem:[#allocation4 + $0x168] sm:$0xff]
    %v2409 = vld [vmem:[#allocation4 + $0x170] sm:$0xff]
    %v2410 = vld [vmem:[#allocation4 + $0x178] sm:$0xff]
    %v2411 = vld [vmem:[#allocation4 + $0x180] sm:$0xff]
    %v2412 = vld [vmem:[#allocation4 + $0x188] sm:$0xff]
    %v2413 = vld [vmem:[#allocation4 + $0x190] sm:$0xff]
    %v2414 = vld [vmem:[#allocation4 + $0x198] sm:$0xff]
    %v2415 = vld [vmem:[#allocation4 + $0x1a0] sm:$0xff]
    %v2416 = vld [vmem:[#allocation4 + $0x1a8] sm:$0xff]
    %v2417 = vld [vmem:[#allocation4 + $0x1b0] sm:$0xff]
    %v2418 = vld [vmem:[#allocation4 + $0x1b8] sm:$0xff]
    %v2419 = vld [vmem:[#allocation4 + $0x1c0] sm:$0xff]
    %v2420 = vld [vmem:[#allocation4 + $0x1c8] sm:$0xff]
    %v2421 = vld [vmem:[#allocation4 + $0x1d0] sm:$0xff]
    %v2422 = vld [vmem:[#allocation4 + $0x1d8] sm:$0xff]
    %v2423 = vld [vmem:[#allocation4 + $0x1e0] sm:$0xff]
    %v2424 = vld [vmem:[#allocation4 + $0x1e8] sm:$0xff]
    %v2425 = vld [vmem:[#allocation4 + $0x1f0] sm:$0xff]
    %v2426 = vld [vmem:[#allocation4 + $0x1f8] sm:$0xff]
    %v2427 = vrot.slane %v2353, 6
    %v2428 = vrot.slane %v2354, 5
    %v2429 = vsel %vm568, %v2428, %v2427
    %2431 = vmatprep.subr.mxu0 %v2364
    %2432 = vmatpush1.msra.mxu0 %v2363
    %2433 = vmatprep.subr.mxu0 %v2368
    %2434 = vmatpush1.msra.mxu0 %v2367
    %2435 = vmatprep.subr.mxu0 %v2372
    %2436 = vmatpush1.msra.mxu0 %v2371
    %2437 = vmatprep.subr.mxu0 %v2376
    %2438 = vmatpush1.msra.mxu0 %v2375
    %2439 = vmatprep.subr.mxu0 %v2380
    %2440 = vmatpush1.msra.mxu0 %v2379
    %2441 = vmatprep.subr.mxu0 %v2384
    %2442 = vmatpush1.msra.mxu0 %v2383
    %2443 = vmatprep.subr.mxu0 %v2388
    %2444 = vmatpush1.msra.mxu0 %v2387
    %2445 = vmatprep.subr.mxu0 %v2392
    %2446 = vmatpush1.msra.mxu0 %v2391
    %2447 = vmatprep.subr.mxu0 %v2396
    %2448 = vmatpush1.msra.mxu0 %v2395
    %2449 = vmatprep.subr.mxu0 %v2400
    %2450 = vmatpush1.msra.mxu0 %v2399
    %2451 = vmatprep.subr.mxu0 %v2404
    %2452 = vmatpush1.msra.mxu0 %v2403
    %2453 = vmatprep.subr.mxu0 %v2408
    %2454 = vmatpush1.msra.mxu0 %v2407
    %2455 = vmatprep.subr.mxu0 %v2412
    %2456 = vmatpush1.msra.mxu0 %v2411
    %2457 = vmatprep.subr.mxu0 %v2416
    %2458 = vmatpush1.msra.mxu0 %v2415
    %2459 = vmatprep.subr.mxu0 %v2420
    %2460 = vmatpush1.msra.mxu0 %v2419
    %2461 = vmatprep.subr.mxu0 %v2424
    %2462 = vmatpush1.msra.mxu0 %v2423
    %2463 = vmatprep.subr.mxu0 0.0
    %2464 = vmatpush1.msra.mxu0 0.0
    %2465 = vmatprep.subr.mxu0 0.0
    %2466 = vmatpush1.msra.mxu0 0.0
    %2467 = vmatprep.subr.mxu0 0.0
    %2468 = vmatpush1.msra.mxu0 0.0
    %2469 = vmatprep.subr.mxu0 0.0
    %2470 = vmatpush1.msra.mxu0 0.0
    %2471 = vmatprep.subr.mxu0 0.0
    %2472 = vmatpush1.msra.mxu0 0.0
    %2473 = vmatprep.subr.mxu0 0.0
    %2474 = vmatpush1.msra.mxu0 0.0
    %2475 = vmatprep.subr.mxu0 0.0
    %2476 = vmatpush1.msra.mxu0 0.0
    %2477 = vmatprep.subr.mxu0 0.0
    %2478 = vmatpush1.msra.mxu0 0.0
    %2479 = vmatprep.subr.mxu0 0.0
    %2480 = vmatpush1.msra.mxu0 0.0
    %2481 = vmatprep.subr.mxu0 0.0
    %2482 = vmatpush1.msra.mxu0 0.0
    %2483 = vmatprep.subr.mxu0 0.0
    %2484 = vmatpush1.msra.mxu0 0.0
    %2485 = vmatprep.subr.mxu0 0.0
    %2486 = vmatpush1.msra.mxu0 0.0
    %2487 = vmatprep.subr.mxu0 0.0
    %2488 = vmatpush1.msra.mxu0 0.0
    %2489 = vmatprep.subr.mxu0 0.0
    %2490 = vmatpush1.msra.mxu0 0.0
    %2491 = vmatprep.subr.mxu0 0.0
    %2492 = vmatpush1.msra.mxu0 0.0
    %2493 = vmatprep.subr.mxu0 0.0
    %2494 = vmatpush1.msra.mxu0 0.0
    %2495 = vmatprep.mubr.f32.mxu0 0.0
    %2496 = vmatmul.mubr.f32.gmra.mrb[0].mxu0 %v2429
    %v2497 = vpop.f32.mrb[0].mxu0
    %v2498 = vadd.f32 0.0, %v2497
    %v2499 = vpop.f32.mrb[0].mxu0
    %v2500 = vadd.f32 0.0, %v2499
    %2501 = vdwg.mxu0
    %2502 = vmatprep.subr.mxu0 %v2366
    %2503 = vmatpush1.msra.mxu0 %v2365
    %2504 = vmatprep.subr.mxu0 %v2370
    %2505 = vmatpush1.msra.mxu0 %v2369
    %2506 = vmatprep.subr.mxu0 %v2374
    %2507 = vmatpush1.msra.mxu0 %v2373
    %2508 = vmatprep.subr.mxu0 %v2378
    %2509 = vmatpush1.msra.mxu0 %v2377
    %2510 = vmatprep.subr.mxu0 %v2382
    %2511 = vmatpush1.msra.mxu0 %v2381
    %2512 = vmatprep.subr.mxu0 %v2386
    %2513 = vmatpush1.msra.mxu0 %v2385
    %2514 = vmatprep.subr.mxu0 %v2390
    %2515 = vmatpush1.msra.mxu0 %v2389
    %2516 = vmatprep.subr.mxu0 %v2394
    %2517 = vmatpush1.msra.mxu0 %v2393
    %2518 = vmatprep.subr.mxu0 %v2398
    %2519 = vmatpush1.msra.mxu0 %v2397
    %2520 = vmatprep.subr.mxu0 %v2402
    %2521 = vmatpush1.msra.mxu0 %v2401
    %2522 = vmatprep.subr.mxu0 %v2406
    %2523 = vmatpush1.msra.mxu0 %v2405
    %2524 = vmatprep.subr.mxu0 %v2410
    %2525 = vmatpush1.msra.mxu0 %v2409
    %2526 = vmatprep.subr.mxu0 %v2414
    %2527 = vmatpush1.msra.mxu0 %v2413
    %2528 = vmatprep.subr.mxu0 %v2418
    %2529 = vmatpush1.msra.mxu0 %v2417
    %2530 = vmatprep.subr.mxu0 %v2422
    %2531 = vmatpush1.msra.mxu0 %v2421
    %2532 = vmatprep.subr.mxu0 %v2426
    %2533 = vmatpush1.msra.mxu0 %v2425
    %2534 = vmatprep.subr.mxu0 0.0
    %2535 = vmatpush1.msra.mxu0 0.0
    %2536 = vmatprep.subr.mxu0 0.0
    %2537 = vmatpush1.msra.mxu0 0.0
    %2538 = vmatprep.subr.mxu0 0.0
    %2539 = vmatpush1.msra.mxu0 0.0
    %2540 = vmatprep.subr.mxu0 0.0
    %2541 = vmatpush1.msra.mxu0 0.0
    %2542 = vmatprep.subr.mxu0 0.0
    %2543 = vmatpush1.msra.mxu0 0.0
    %2544 = vmatprep.subr.mxu0 0.0
    %2545 = vmatpush1.msra.mxu0 0.0
    %2546 = vmatprep.subr.mxu0 0.0
    %2547 = vmatpush1.msra.mxu0 0.0
    %2548 = vmatprep.subr.mxu0 0.0
    %2549 = vmatpush1.msra.mxu0 0.0
    %2550 = vmatprep.subr.mxu0 0.0
    %2551 = vmatpush1.msra.mxu0 0.0
    %2552 = vmatprep.subr.mxu0 0.0
    %2553 = vmatpush1.msra.mxu0 0.0
    %2554 = vmatprep.subr.mxu0 0.0
    %2555 = vmatpush1.msra.mxu0 0.0
    %2556 = vmatprep.subr.mxu0 0.0
    %2557 = vmatpush1.msra.mxu0 0.0
    %2558 = vmatprep.subr.mxu0 0.0
    %2559 = vmatpush1.msra.mxu0 0.0
    %2560 = vmatprep.subr.mxu0 0.0
    %2561 = vmatpush1.msra.mxu0 0.0
    %2562 = vmatprep.subr.mxu0 0.0
    %2563 = vmatpush1.msra.mxu0 0.0
    %2564 = vmatprep.subr.mxu0 0.0
    %2565 = vmatpush1.msra.mxu0 0.0
    %2566 = vmatprep.mubr.f32.mxu0 0.0
    %2567 = vmatmul.mubr.f32.gmra.mrb[0].mxu0 %v2429
    %v2568 = vpop.f32.mrb[0].mxu0
    %v2569 = vadd.f32 0.0, %v2568
    %v2570 = vpop.f32.mrb[0].mxu0
    %v2571 = vadd.f32 0.0, %v2570
    %2572 = vdwg.mxu0
    %v2577 = vrot.slane %v2498, 1
    %v2578 = vrot.slane %v2500, 1
    %v2579 = vrot.slane %v2569, 1
    %v2580 = vrot.slane %v2571, 1
    %v2581 = vrot.slane %v2498, 2
    %v2582 = vrot.slane %v2500, 2
    %v2583 = vrot.slane %v2569, 2
    %v2584 = vrot.slane %v2571, 2
    %v2593 = vadd.f32 %v200, %v2577
    %v2594 = vadd.f32 %v202, %v2578
    %v2595 = vadd.f32 %v277, %v2579
    %v2596 = vadd.f32 %v279, %v2580
    %v2597 = vadd.f32 %v206, %v2581
    %v2598 = vadd.f32 %v208, %v2582
    %v2599 = vadd.f32 %v283, %v2583
    %v2600 = vadd.f32 %v285, %v2584
    %v2601 = vxor.u32 %v2593, 2147483648
    %v2602 = vxor.u32 %v2597, 2147483648
    %v2603 = vmul.f32 %v2601, 1.442695
    %v2604 = vpow.pop %v2603
    %v2605 = vmul.f32 %v2602, 1.442695
    %v2606 = vpow.pop %v2605
    %v2607 = vadd.f32 %v2604, 1.0
    %v2608 = vadd.f32 %v2606, 1.0
    %v2609 = vrcp.pop %v2607
    %v2610 = vmul.f32 1.0, %v2609
    %v2611 = vrcp.pop %v2608
    %v2612 = vmul.f32 1.0, %v2611
    %v2613 = vxor.u32 %v2594, 2147483648
    %v2614 = vxor.u32 %v2598, 2147483648
    %v2615 = vmul.f32 %v2613, 1.442695
    %v2616 = vpow.pop %v2615
    %v2617 = vmul.f32 %v2614, 1.442695
    %v2618 = vpow.pop %v2617
    %v2619 = vadd.f32 %v2616, 1.0
    %v2620 = vadd.f32 %v2618, 1.0
    %v2621 = vrcp.pop %v2619
    %v2622 = vmul.f32 1.0, %v2621
    %v2623 = vrcp.pop %v2620
    %v2624 = vmul.f32 1.0, %v2623
    %v2625 = vtanh.pop %v2595
    %v2626 = vtanh.pop %v2599
    %v2627 = vxor.u32 %v2596, 2147483648
    %v2628 = vxor.u32 %v2600, 2147483648
    %v2629 = vmul.f32 %v2627, 1.442695
    %v2630 = vpow.pop %v2629
    %v2631 = vmul.f32 %v2628, 1.442695
    %v2632 = vpow.pop %v2631
    %v2633 = vadd.f32 %v2630, 1.0
    %v2634 = vadd.f32 %v2632, 1.0
    %v2635 = vrcp.pop %v2633
    %v2636 = vmul.f32 1.0, %v2635
    %v2637 = vrcp.pop %v2634
    %v2638 = vmul.f32 1.0, %v2637
    %v2641 = vrot.slane %v2349, 7
    %v2642 = vrot.slane %v2350, 7
    %v2645 = vmul.f32 %v2622, %v2641
    %v2646 = vmul.f32 %v2624, %v2642
    %v2647 = vmul.f32 %v2610, %v2625
    %v2648 = vmul.f32 %v2612, %v2626
    %v2649 = vadd.f32 %v2645, %v2647
    %v2650 = vadd.f32 %v2646, %v2648
    %v2651 = vtanh.pop %v2649
    %v2652 = vtanh.pop %v2650
    %v2653 = vmul.f32 %v2636, %v2651
    %v2654 = vmul.f32 %v2638, %v2652
    %v2657 = vrot.slane %v2654, 7
    %s2660 = scalar_lea.vmem [#allocation2], 14
    %2661 = vst [vmem:[%s2660 - $0x7] sm:$0x80] %v2653
    %2662 = vst [vmem:[%s2660 + $0x1] sm:$0x1] %v2657
    %v2663 = vld [vmem:[#allocation2] sm:$0x3]
    %v2664 = vld [vmem:[#allocation2 + $0x2] sm:$0x3]
    %v2665 = vld [vmem:[#allocation2 + $0x4] sm:$0x3]
    %v2666 = vld [vmem:[#allocation2 + $0x6] sm:$0x3]
    %v2667 = vld [vmem:[#allocation2 + $0x8] sm:$0x3]
    %v2668 = vld [vmem:[#allocation2 + $0xa] sm:$0x3]
    %v2669 = vld [vmem:[#allocation2 + $0xc] sm:$0x3]
    %v2670 = vld [vmem:[#allocation2 + $0xe] sm:$0x3]
    %v2671 = vld [vmem:[#allocation6] sm:$0xff]
    %v2672 = vld [vmem:[#allocation6 + $0x8] sm:$0xff]
    %v2673 = vld [vmem:[#allocation6 + $0x10] sm:$0xff]
    %v2674 = vld [vmem:[#allocation6 + $0x18] sm:$0xff]
    %v2675 = vld [vmem:[#allocation6 + $0x20] sm:$0xff]
    %v2676 = vld [vmem:[#allocation6 + $0x28] sm:$0xff]
    %v2677 = vld [vmem:[#allocation6 + $0x30] sm:$0xff]
    %v2678 = vld [vmem:[#allocation6 + $0x38] sm:$0xff]
    %v2679 = vld [vmem:[#allocation6 + $0x40] sm:$0xff]
    %v2680 = vld [vmem:[#allocation6 + $0x48] sm:$0xff]
    %v2681 = vld [vmem:[#allocation6 + $0x50] sm:$0xff]
    %v2682 = vld [vmem:[#allocation6 + $0x58] sm:$0xff]
    %v2683 = vld [vmem:[#allocation6 + $0x60] sm:$0xff]
    %v2684 = vld [vmem:[#allocation6 + $0x68] sm:$0xff]
    %v2685 = vld [vmem:[#allocation6 + $0x70] sm:$0xff]
    %v2686 = vld [vmem:[#allocation6 + $0x78] sm:$0xff]
    %v2687 = vld [vmem:[#allocation6 + $0x80] sm:$0xff]
    %v2688 = vld [vmem:[#allocation6 + $0x88] sm:$0xff]
    %v2689 = vld [vmem:[#allocation6 + $0x90] sm:$0xff]
    %v2690 = vld [vmem:[#allocation6 + $0x98] sm:$0xff]
    %v2691 = vld [vmem:[#allocation6 + $0xa0] sm:$0xff]
    %v2692 = vld [vmem:[#allocation6 + $0xa8] sm:$0xff]
    %v2693 = vld [vmem:[#allocation6 + $0xb0] sm:$0xff]
    %v2694 = vld [vmem:[#allocation6 + $0xb8] sm:$0xff]
    %v2695 = vld [vmem:[#allocation6 + $0xc0] sm:$0xff]
    %v2696 = vld [vmem:[#allocation6 + $0xc8] sm:$0xff]
    %v2697 = vld [vmem:[#allocation6 + $0xd0] sm:$0xff]
    %v2698 = vld [vmem:[#allocation6 + $0xd8] sm:$0xff]
    %v2699 = vld [vmem:[#allocation6 + $0xe0] sm:$0xff]
    %v2700 = vld [vmem:[#allocation6 + $0xe8] sm:$0xff]
    %v2701 = vld [vmem:[#allocation6 + $0xf0] sm:$0xff]
    %v2702 = vld [vmem:[#allocation6 + $0xf8] sm:$0xff]
    %v2703 = vld [vmem:[#allocation6 + $0x100] sm:$0xff]
    %v2704 = vld [vmem:[#allocation6 + $0x108] sm:$0xff]
    %v2705 = vld [vmem:[#allocation6 + $0x110] sm:$0xff]
    %v2706 = vld [vmem:[#allocation6 + $0x118] sm:$0xff]
    %v2707 = vld [vmem:[#allocation6 + $0x120] sm:$0xff]
    %v2708 = vld [vmem:[#allocation6 + $0x128] sm:$0xff]
    %v2709 = vld [vmem:[#allocation6 + $0x130] sm:$0xff]
    %v2710 = vld [vmem:[#allocation6 + $0x138] sm:$0xff]
    %v2711 = vld [vmem:[#allocation6 + $0x140] sm:$0xff]
    %v2712 = vld [vmem:[#allocation6 + $0x148] sm:$0xff]
    %v2713 = vld [vmem:[#allocation6 + $0x150] sm:$0xff]
    %v2714 = vld [vmem:[#allocation6 + $0x158] sm:$0xff]
    %v2715 = vld [vmem:[#allocation6 + $0x160] sm:$0xff]
    %v2716 = vld [vmem:[#allocation6 + $0x168] sm:$0xff]
    %v2717 = vld [vmem:[#allocation6 + $0x170] sm:$0xff]
    %v2718 = vld [vmem:[#allocation6 + $0x178] sm:$0xff]
    %v2719 = vld [vmem:[#allocation6 + $0x180] sm:$0xff]
    %v2720 = vld [vmem:[#allocation6 + $0x188] sm:$0xff]
    %v2721 = vld [vmem:[#allocation6 + $0x190] sm:$0xff]
    %v2722 = vld [vmem:[#allocation6 + $0x198] sm:$0xff]
    %v2723 = vld [vmem:[#allocation6 + $0x1a0] sm:$0xff]
    %v2724 = vld [vmem:[#allocation6 + $0x1a8] sm:$0xff]
    %v2725 = vld [vmem:[#allocation6 + $0x1b0] sm:$0xff]
    %v2726 = vld [vmem:[#allocation6 + $0x1b8] sm:$0xff]
    %v2727 = vld [vmem:[#allocation6 + $0x1c0] sm:$0xff]
    %v2728 = vld [vmem:[#allocation6 + $0x1c8] sm:$0xff]
    %v2729 = vld [vmem:[#allocation6 + $0x1d0] sm:$0xff]
    %v2730 = vld [vmem:[#allocation6 + $0x1d8] sm:$0xff]
    %v2731 = vld [vmem:[#allocation6 + $0x1e0] sm:$0xff]
    %v2732 = vld [vmem:[#allocation6 + $0x1e8] sm:$0xff]
    %v2733 = vld [vmem:[#allocation6 + $0x1f0] sm:$0xff]
    %v2734 = vld [vmem:[#allocation6 + $0x1f8] sm:$0xff]
    %v2735 = vld [vmem:[%s6] sm:$0xf]
    %v2737 = vlaneseq
    %v2738 = vshrl.u32 %v2737, 7
    %v2739 = vsub.s32 0, %v2738
    %v2740 = vrot.slane %v2735, %v2739
    %v2741 = vlaneseq
    %v2742 = vshrl.u32 %v2741, 7
    %v2743 = vsub.s32 1, %v2742
    %v2744 = vrot.slane %v2735, %v2743
    %v2745 = vlaneseq
    %v2746 = vshrl.u32 %v2745, 7
    %v2747 = vsub.s32 2, %v2746
    %v2748 = vrot.slane %v2735, %v2747
    %v2749 = vlaneseq
    %v2750 = vshrl.u32 %v2749, 7
    %v2751 = vsub.s32 3, %v2750
    %v2752 = vrot.slane %v2735, %v2751
    %v2765 = vcombine.low %v2663, %v2664
    %v2766 = vcombine.low %v2665, %v2666
    %v2768 = vunpack.c.l.s4 1983009808
    %v2769 = vunpack.c.0.s8 %v2768
    %v2770 = vlaneseq
    %v2771 = vshrl.u32 %v2770, 7
    %v2772 = vsub.s32 %v2769, %v2771
    %v2773 = vrot.slane %v2765, %v2772
    %v2775 = vunpack.c.l.s4 1983009808
    %v2776 = vunpack.c.0.s8 %v2775
    %v2777 = vlaneseq
    %v2778 = vshrl.u32 %v2777, 7
    %v2779 = vsub.s32 %v2776, %v2778
    %v2780 = vrot.slane %v2766, %v2779
    %v2781 = vcombine.low %v2773, %v2780
    %v2782 = vcombine.low %v2667, %v2668
    %v2783 = vcombine.low %v2669, %v2670
    %v2785 = vunpack.c.l.s4 1983009808
    %v2786 = vunpack.c.0.s8 %v2785
    %v2787 = vlaneseq
    %v2788 = vshrl.u32 %v2787, 7
    %v2789 = vsub.s32 %v2786, %v2788
    %v2790 = vrot.slane %v2782, %v2789
    %v2792 = vunpack.c.l.s4 1983009808
    %v2793 = vunpack.c.0.s8 %v2792
    %v2794 = vlaneseq
    %v2795 = vshrl.u32 %v2794, 7
    %v2796 = vsub.s32 %v2793, %v2795
    %v2797 = vrot.slane %v2783, %v2796
    %v2798 = vcombine.low %v2790, %v2797
    %2801 = vmatprep.subr.mxu0 %v2672
    %2802 = vmatpush1.msra.mxu0 %v2671
    %2803 = vmatprep.subr.mxu0 %v2676
    %2804 = vmatpush1.msra.mxu0 %v2675
    %2805 = vmatprep.subr.mxu0 %v2680
    %2806 = vmatpush1.msra.mxu0 %v2679
    %2807 = vmatprep.subr.mxu0 %v2684
    %2808 = vmatpush1.msra.mxu0 %v2683
    %2809 = vmatprep.subr.mxu0 %v2688
    %2810 = vmatpush1.msra.mxu0 %v2687
    %2811 = vmatprep.subr.mxu0 %v2692
    %2812 = vmatpush1.msra.mxu0 %v2691
    %2813 = vmatprep.subr.mxu0 %v2696
    %2814 = vmatpush1.msra.mxu0 %v2695
    %2815 = vmatprep.subr.mxu0 %v2700
    %2816 = vmatpush1.msra.mxu0 %v2699
    %2817 = vmatprep.subr.mxu0 %v2704
    %2818 = vmatpush1.msra.mxu0 %v2703
    %2819 = vmatprep.subr.mxu0 %v2708
    %2820 = vmatpush1.msra.mxu0 %v2707
    %2821 = vmatprep.subr.mxu0 %v2712
    %2822 = vmatpush1.msra.mxu0 %v2711
    %2823 = vmatprep.subr.mxu0 %v2716
    %2824 = vmatpush1.msra.mxu0 %v2715
    %2825 = vmatprep.subr.mxu0 %v2720
    %2826 = vmatpush1.msra.mxu0 %v2719
    %2827 = vmatprep.subr.mxu0 %v2724
    %2828 = vmatpush1.msra.mxu0 %v2723
    %2829 = vmatprep.subr.mxu0 %v2728
    %2830 = vmatpush1.msra.mxu0 %v2727
    %2831 = vmatprep.subr.mxu0 %v2732
    %2832 = vmatpush1.msra.mxu0 %v2731
    %2833 = vmatprep.subr.mxu0 0.0
    %2834 = vmatpush1.msra.mxu0 0.0
    %2835 = vmatprep.subr.mxu0 0.0
    %2836 = vmatpush1.msra.mxu0 0.0
    %2837 = vmatprep.subr.mxu0 0.0
    %2838 = vmatpush1.msra.mxu0 0.0
    %2839 = vmatprep.subr.mxu0 0.0
    %2840 = vmatpush1.msra.mxu0 0.0
    %2841 = vmatprep.subr.mxu0 0.0
    %2842 = vmatpush1.msra.mxu0 0.0
    %2843 = vmatprep.subr.mxu0 0.0
    %2844 = vmatpush1.msra.mxu0 0.0
    %2845 = vmatprep.subr.mxu0 0.0
    %2846 = vmatpush1.msra.mxu0 0.0
    %2847 = vmatprep.subr.mxu0 0.0
    %2848 = vmatpush1.msra.mxu0 0.0
    %2849 = vmatprep.subr.mxu0 0.0
    %2850 = vmatpush1.msra.mxu0 0.0
    %2851 = vmatprep.subr.mxu0 0.0
    %2852 = vmatpush1.msra.mxu0 0.0
    %2853 = vmatprep.subr.mxu0 0.0
    %2854 = vmatpush1.msra.mxu0 0.0
    %2855 = vmatprep.subr.mxu0 0.0
    %2856 = vmatpush1.msra.mxu0 0.0
    %2857 = vmatprep.subr.mxu0 0.0
    %2858 = vmatpush1.msra.mxu0 0.0
    %2859 = vmatprep.subr.mxu0 0.0
    %2860 = vmatpush1.msra.mxu0 0.0
    %2861 = vmatprep.subr.mxu0 0.0
    %2862 = vmatpush1.msra.mxu0 0.0
    %2863 = vmatprep.subr.mxu0 0.0
    %2864 = vmatpush1.msra.mxu0 0.0
    %2865 = vmatprep.mubr.f32.mxu0 0.0
    %2866 = vmatmul.mubr.f32.gmra.mrb[0].mxu0 %v2781
    %v2867 = vpop.f32.mrb[0].mxu0
    %v2868 = vadd.f32 %v2740, %v2867
    %v2869 = vpop.f32.mrb[0].mxu0
    %v2870 = vadd.f32 %v2744, %v2869
    %2871 = vmatprep.mubr.f32.mxu0 0.0
    %2872 = vmatmul.mubr.f32.gmra.mrb[0].mxu0 %v2798
    %v2873 = vpop.f32.mrb[0].mxu0
    %v2874 = vadd.f32 %v2740, %v2873
    %v2875 = vpop.f32.mrb[0].mxu0
    %v2876 = vadd.f32 %v2744, %v2875
    %2877 = vdwg.mxu0
    %2878 = vmatprep.subr.mxu0 %v2674
    %2879 = vmatpush1.msra.mxu0 %v2673
    %2880 = vmatprep.subr.mxu0 %v2678
    %2881 = vmatpush1.msra.mxu0 %v2677
    %2882 = vmatprep.subr.mxu0 %v2682
    %2883 = vmatpush1.msra.mxu0 %v2681
    %2884 = vmatprep.subr.mxu0 %v2686
    %2885 = vmatpush1.msra.mxu0 %v2685
    %2886 = vmatprep.subr.mxu0 %v2690
    %2887 = vmatpush1.msra.mxu0 %v2689
    %2888 = vmatprep.subr.mxu0 %v2694
    %2889 = vmatpush1.msra.mxu0 %v2693
    %2890 = vmatprep.subr.mxu0 %v2698
    %2891 = vmatpush1.msra.mxu0 %v2697
    %2892 = vmatprep.subr.mxu0 %v2702
    %2893 = vmatpush1.msra.mxu0 %v2701
    %2894 = vmatprep.subr.mxu0 %v2706
    %2895 = vmatpush1.msra.mxu0 %v2705
    %2896 = vmatprep.subr.mxu0 %v2710
    %2897 = vmatpush1.msra.mxu0 %v2709
    %2898 = vmatprep.subr.mxu0 %v2714
    %2899 = vmatpush1.msra.mxu0 %v2713
    %2900 = vmatprep.subr.mxu0 %v2718
    %2901 = vmatpush1.msra.mxu0 %v2717
    %2902 = vmatprep.subr.mxu0 %v2722
    %2903 = vmatpush1.msra.mxu0 %v2721
    %2904 = vmatprep.subr.mxu0 %v2726
    %2905 = vmatpush1.msra.mxu0 %v2725
    %2906 = vmatprep.subr.mxu0 %v2730
    %2907 = vmatpush1.msra.mxu0 %v2729
    %2908 = vmatprep.subr.mxu0 %v2734
    %2909 = vmatpush1.msra.mxu0 %v2733
    %2910 = vmatprep.subr.mxu0 0.0
    %2911 = vmatpush1.msra.mxu0 0.0
    %2912 = vmatprep.subr.mxu0 0.0
    %2913 = vmatpush1.msra.mxu0 0.0
    %2914 = vmatprep.subr.mxu0 0.0
    %2915 = vmatpush1.msra.mxu0 0.0
    %2916 = vmatprep.subr.mxu0 0.0
    %2917 = vmatpush1.msra.mxu0 0.0
    %2918 = vmatprep.subr.mxu0 0.0
    %2919 = vmatpush1.msra.mxu0 0.0
    %2920 = vmatprep.subr.mxu0 0.0
    %2921 = vmatpush1.msra.mxu0 0.0
    %2922 = vmatprep.subr.mxu0 0.0
    %2923 = vmatpush1.msra.mxu0 0.0
    %2924 = vmatprep.subr.mxu0 0.0
    %2925 = vmatpush1.msra.mxu0 0.0
    %2926 = vmatprep.subr.mxu0 0.0
    %2927 = vmatpush1.msra.mxu0 0.0
    %2928 = vmatprep.subr.mxu0 0.0
    %2929 = vmatpush1.msra.mxu0 0.0
    %2930 = vmatprep.subr.mxu0 0.0
    %2931 = vmatpush1.msra.mxu0 0.0
    %2932 = vmatprep.subr.mxu0 0.0
    %2933 = vmatpush1.msra.mxu0 0.0
    %2934 = vmatprep.subr.mxu0 0.0
    %2935 = vmatpush1.msra.mxu0 0.0
    %2936 = vmatprep.subr.mxu0 0.0
    %2937 = vmatpush1.msra.mxu0 0.0
    %2938 = vmatprep.subr.mxu0 0.0
    %2939 = vmatpush1.msra.mxu0 0.0
    %2940 = vmatprep.subr.mxu0 0.0
    %2941 = vmatpush1.msra.mxu0 0.0
    %2942 = vmatprep.mubr.f32.mxu0 0.0
    %2943 = vmatmul.mubr.f32.gmra.mrb[0].mxu0 %v2781
    %v2944 = vpop.f32.mrb[0].mxu0
    %v2945 = vadd.f32 %v2748, %v2944
    %v2946 = vpop.f32.mrb[0].mxu0
    %v2947 = vadd.f32 %v2752, %v2946
    %2948 = vmatprep.mubr.f32.mxu0 0.0
    %2949 = vmatmul.mubr.f32.gmra.mrb[0].mxu0 %v2798
    %v2950 = vpop.f32.mrb[0].mxu0
    %v2951 = vadd.f32 %v2748, %v2950
    %v2952 = vpop.f32.mrb[0].mxu0
    %v2953 = vadd.f32 %v2752, %v2952
    %2954 = vdwg.mxu0
    %v2963 = vcombine.low %v2868, %v2870
    %v2964 = vcombine.high %v2868, %v2870
    %v2965 = vcombine.low %v2945, %v2947
    %v2966 = vcombine.high %v2945, %v2947
    %v2968 = vunpack.c.l.s4 1983009808
    %v2969 = vunpack.c.0.s8 %v2968
    %v2970 = vlaneseq
    %v2971 = vshrl.u32 %v2970, 7
    %v2972 = vsub.s32 %v2969, %v2971
    %v2973 = vrot.slane %v2963, %v2972
    %v2975 = vunpack.c.l.s4 1983009808
    %v2976 = vunpack.c.0.s8 %v2975
    %v2977 = vlaneseq
    %v2978 = vshrl.u32 %v2977, 7
    %v2979 = vsub.s32 %v2976, %v2978
    %v2980 = vrot.slane %v2964, %v2979
    %v2982 = vunpack.c.l.s4 1983009808
    %v2983 = vunpack.c.0.s8 %v2982
    %v2984 = vlaneseq
    %v2985 = vshrl.u32 %v2984, 7
    %v2986 = vsub.s32 %v2983, %v2985
    %v2987 = vrot.slane %v2965, %v2986
    %v2989 = vunpack.c.l.s4 1983009808
    %v2990 = vunpack.c.0.s8 %v2989
    %v2991 = vlaneseq
    %v2992 = vshrl.u32 %v2991, 7
    %v2993 = vsub.s32 %v2990, %v2992
    %v2994 = vrot.slane %v2966, %v2993
    %v2995 = vcombine.low %v2973, %v2987
    %v2996 = vcombine.high %v2973, %v2987
    %v2997 = vcombine.low %v2980, %v2994
    %v2998 = vcombine.high %v2980, %v2994
    %v2999 = vcombine.low %v2874, %v2876
    %v3000 = vcombine.high %v2874, %v2876
    %v3001 = vcombine.low %v2951, %v2953
    %v3002 = vcombine.high %v2951, %v2953
    %v3004 = vunpack.c.l.s4 1983009808
    %v3005 = vunpack.c.0.s8 %v3004
    %v3006 = vlaneseq
    %v3007 = vshrl.u32 %v3006, 7
    %v3008 = vsub.s32 %v3005, %v3007
    %v3009 = vrot.slane %v2999, %v3008
    %v3011 = vunpack.c.l.s4 1983009808
    %v3012 = vunpack.c.0.s8 %v3011
    %v3013 = vlaneseq
    %v3014 = vshrl.u32 %v3013, 7
    %v3015 = vsub.s32 %v3012, %v3014
    %v3016 = vrot.slane %v3000, %v3015
    %v3018 = vunpack.c.l.s4 1983009808
    %v3019 = vunpack.c.0.s8 %v3018
    %v3020 = vlaneseq
    %v3021 = vshrl.u32 %v3020, 7
    %v3022 = vsub.s32 %v3019, %v3021
    %v3023 = vrot.slane %v3001, %v3022
    %v3025 = vunpack.c.l.s4 1983009808
    %v3026 = vunpack.c.0.s8 %v3025
    %v3027 = vlaneseq
    %v3028 = vshrl.u32 %v3027, 7
    %v3029 = vsub.s32 %v3026, %v3028
    %v3030 = vrot.slane %v3002, %v3029
    %v3031 = vcombine.low %v3009, %v3023
    %v3032 = vcombine.high %v3009, %v3023
    %v3033 = vcombine.low %v3016, %v3030
    %v3034 = vcombine.high %v3016, %v3030
    %v3043 = vld [vmem:[#allocation8] sm:$0xff]
    %v3044 = vld [vmem:[#allocation8 + $0x8] sm:$0xff]
    %v3045 = vld [vmem:[#allocation8 + $0x10] sm:$0xff]
    %v3046 = vld [vmem:[#allocation8 + $0x18] sm:$0xff]
    %v3047 = vld [vmem:[#allocation8 + $0x20] sm:$0xff]
    %v3048 = vld [vmem:[#allocation8 + $0x28] sm:$0xff]
    %v3049 = vld [vmem:[#allocation8 + $0x30] sm:$0xff]
    %v3050 = vld [vmem:[#allocation8 + $0x38] sm:$0xff]
    %v3051 = vld [vmem:[#allocation8 + $0x40] sm:$0xff]
    %v3052 = vld [vmem:[#allocation8 + $0x48] sm:$0xff]
    %v3053 = vld [vmem:[#allocation8 + $0x50] sm:$0xff]
    %v3054 = vld [vmem:[#allocation8 + $0x58] sm:$0xff]
    %v3055 = vld [vmem:[#allocation8 + $0x60] sm:$0xff]
    %v3056 = vld [vmem:[#allocation8 + $0x68] sm:$0xff]
    %v3057 = vld [vmem:[#allocation8 + $0x70] sm:$0xff]
    %v3058 = vld [vmem:[#allocation8 + $0x78] sm:$0xff]
    %v3059 = vld [vmem:[#allocation8 + $0x80] sm:$0xff]
    %v3060 = vld [vmem:[#allocation8 + $0x88] sm:$0xff]
    %v3061 = vld [vmem:[#allocation8 + $0x90] sm:$0xff]
    %v3062 = vld [vmem:[#allocation8 + $0x98] sm:$0xff]
    %v3063 = vld [vmem:[#allocation8 + $0xa0] sm:$0xff]
    %v3064 = vld [vmem:[#allocation8 + $0xa8] sm:$0xff]
    %v3065 = vld [vmem:[#allocation8 + $0xb0] sm:$0xff]
    %v3066 = vld [vmem:[#allocation8 + $0xb8] sm:$0xff]
    %v3067 = vld [vmem:[#allocation8 + $0xc0] sm:$0xff]
    %v3068 = vld [vmem:[#allocation8 + $0xc8] sm:$0xff]
    %v3069 = vld [vmem:[#allocation8 + $0xd0] sm:$0xff]
    %v3070 = vld [vmem:[#allocation8 + $0xd8] sm:$0xff]
    %v3071 = vld [vmem:[#allocation8 + $0xe0] sm:$0xff]
    %v3072 = vld [vmem:[#allocation8 + $0xe8] sm:$0xff]
    %v3073 = vld [vmem:[#allocation8 + $0xf0] sm:$0xff]
    %v3074 = vld [vmem:[#allocation8 + $0xf8] sm:$0xff]
    %v3075 = vld [vmem:[#allocation8 + $0x100] sm:$0xff]
    %v3076 = vld [vmem:[#allocation8 + $0x108] sm:$0xff]
    %v3077 = vld [vmem:[#allocation8 + $0x110] sm:$0xff]
    %v3078 = vld [vmem:[#allocation8 + $0x118] sm:$0xff]
    %v3079 = vld [vmem:[#allocation8 + $0x120] sm:$0xff]
    %v3080 = vld [vmem:[#allocation8 + $0x128] sm:$0xff]
    %v3081 = vld [vmem:[#allocation8 + $0x130] sm:$0xff]
    %v3082 = vld [vmem:[#allocation8 + $0x138] sm:$0xff]
    %v3083 = vld [vmem:[#allocation8 + $0x140] sm:$0xff]
    %v3084 = vld [vmem:[#allocation8 + $0x148] sm:$0xff]
    %v3085 = vld [vmem:[#allocation8 + $0x150] sm:$0xff]
    %v3086 = vld [vmem:[#allocation8 + $0x158] sm:$0xff]
    %v3087 = vld [vmem:[#allocation8 + $0x160] sm:$0xff]
    %v3088 = vld [vmem:[#allocation8 + $0x168] sm:$0xff]
    %v3089 = vld [vmem:[#allocation8 + $0x170] sm:$0xff]
    %v3090 = vld [vmem:[#allocation8 + $0x178] sm:$0xff]
    %v3091 = vld [vmem:[#allocation8 + $0x180] sm:$0xff]
    %v3092 = vld [vmem:[#allocation8 + $0x188] sm:$0xff]
    %v3093 = vld [vmem:[#allocation8 + $0x190] sm:$0xff]
    %v3094 = vld [vmem:[#allocation8 + $0x198] sm:$0xff]
    %v3095 = vld [vmem:[#allocation8 + $0x1a0] sm:$0xff]
    %v3096 = vld [vmem:[#allocation8 + $0x1a8] sm:$0xff]
    %v3097 = vld [vmem:[#allocation8 + $0x1b0] sm:$0xff]
    %v3098 = vld [vmem:[#allocation8 + $0x1b8] sm:$0xff]
    %v3099 = vld [vmem:[#allocation8 + $0x1c0] sm:$0xff]
    %v3100 = vld [vmem:[#allocation8 + $0x1c8] sm:$0xff]
    %v3101 = vld [vmem:[#allocation8 + $0x1d0] sm:$0xff]
    %v3102 = vld [vmem:[#allocation8 + $0x1d8] sm:$0xff]
    %v3103 = vld [vmem:[#allocation8 + $0x1e0] sm:$0xff]
    %v3104 = vld [vmem:[#allocation8 + $0x1e8] sm:$0xff]
    %v3105 = vld [vmem:[#allocation8 + $0x1f0] sm:$0xff]
    %v3106 = vld [vmem:[#allocation8 + $0x1f8] sm:$0xff]
    %3107 = vmatprep.subr.mxu0 %v3044
    %3108 = vmatpush1.msra.mxu0 %v3043
    %3109 = vmatprep.subr.mxu0 %v3048
    %3110 = vmatpush1.msra.mxu0 %v3047
    %3111 = vmatprep.subr.mxu0 %v3052
    %3112 = vmatpush1.msra.mxu0 %v3051
    %3113 = vmatprep.subr.mxu0 %v3056
    %3114 = vmatpush1.msra.mxu0 %v3055
    %3115 = vmatprep.subr.mxu0 %v3060
    %3116 = vmatpush1.msra.mxu0 %v3059
    %3117 = vmatprep.subr.mxu0 %v3064
    %3118 = vmatpush1.msra.mxu0 %v3063
    %3119 = vmatprep.subr.mxu0 %v3068
    %3120 = vmatpush1.msra.mxu0 %v3067
    %3121 = vmatprep.subr.mxu0 %v3072
    %3122 = vmatpush1.msra.mxu0 %v3071
    %3123 = vmatprep.subr.mxu0 %v3076
    %3124 = vmatpush1.msra.mxu0 %v3075
    %3125 = vmatprep.subr.mxu0 %v3080
    %3126 = vmatpush1.msra.mxu0 %v3079
    %3127 = vmatprep.subr.mxu0 %v3084
    %3128 = vmatpush1.msra.mxu0 %v3083
    %3129 = vmatprep.subr.mxu0 %v3088
    %3130 = vmatpush1.msra.mxu0 %v3087
    %3131 = vmatprep.subr.mxu0 %v3092
    %3132 = vmatpush1.msra.mxu0 %v3091
    %3133 = vmatprep.subr.mxu0 %v3096
    %3134 = vmatpush1.msra.mxu0 %v3095
    %3135 = vmatprep.subr.mxu0 %v3100
    %3136 = vmatpush1.msra.mxu0 %v3099
    %3137 = vmatprep.subr.mxu0 %v3104
    %3138 = vmatpush1.msra.mxu0 %v3103
    %3139 = vmatprep.subr.mxu0 0.0
    %3140 = vmatpush1.msra.mxu0 0.0
    %3141 = vmatprep.subr.mxu0 0.0
    %3142 = vmatpush1.msra.mxu0 0.0
    %3143 = vmatprep.subr.mxu0 0.0
    %3144 = vmatpush1.msra.mxu0 0.0
    %3145 = vmatprep.subr.mxu0 0.0
    %3146 = vmatpush1.msra.mxu0 0.0
    %3147 = vmatprep.subr.mxu0 0.0
    %3148 = vmatpush1.msra.mxu0 0.0
    %3149 = vmatprep.subr.mxu0 0.0
    %3150 = vmatpush1.msra.mxu0 0.0
    %3151 = vmatprep.subr.mxu0 0.0
    %3152 = vmatpush1.msra.mxu0 0.0
    %3153 = vmatprep.subr.mxu0 0.0
    %3154 = vmatpush1.msra.mxu0 0.0
    %3155 = vmatprep.subr.mxu0 0.0
    %3156 = vmatpush1.msra.mxu0 0.0
    %3157 = vmatprep.subr.mxu0 0.0
    %3158 = vmatpush1.msra.mxu0 0.0
    %3159 = vmatprep.subr.mxu0 0.0
    %3160 = vmatpush1.msra.mxu0 0.0
    %3161 = vmatprep.subr.mxu0 0.0
    %3162 = vmatpush1.msra.mxu0 0.0
    %3163 = vmatprep.subr.mxu0 0.0
    %3164 = vmatpush1.msra.mxu0 0.0
    %3165 = vmatprep.subr.mxu0 0.0
    %3166 = vmatpush1.msra.mxu0 0.0
    %3167 = vmatprep.subr.mxu0 0.0
    %3168 = vmatpush1.msra.mxu0 0.0
    %3169 = vmatprep.subr.mxu0 0.0
    %3170 = vmatpush1.msra.mxu0 0.0
    %3171 = vmatprep.mubr.f32.mxu0 0.0
    %3172 = vmatmul.mubr.f32.gmra.mrb[0].mxu0 0.0
    %v3173 = vpop.f32.mrb[0].mxu0
    %v3174 = vadd.f32 0.0, %v3173
    %v3175 = vpop.f32.mrb[0].mxu0
    %v3176 = vadd.f32 0.0, %v3175
    %3177 = vdwg.mxu0
    %3178 = vmatprep.subr.mxu0 %v3046
    %3179 = vmatpush1.msra.mxu0 %v3045
    %3180 = vmatprep.subr.mxu0 %v3050
    %3181 = vmatpush1.msra.mxu0 %v3049
    %3182 = vmatprep.subr.mxu0 %v3054
    %3183 = vmatpush1.msra.mxu0 %v3053
    %3184 = vmatprep.subr.mxu0 %v3058
    %3185 = vmatpush1.msra.mxu0 %v3057
    %3186 = vmatprep.subr.mxu0 %v3062
    %3187 = vmatpush1.msra.mxu0 %v3061
    %3188 = vmatprep.subr.mxu0 %v3066
    %3189 = vmatpush1.msra.mxu0 %v3065
    %3190 = vmatprep.subr.mxu0 %v3070
    %3191 = vmatpush1.msra.mxu0 %v3069
    %3192 = vmatprep.subr.mxu0 %v3074
    %3193 = vmatpush1.msra.mxu0 %v3073
    %3194 = vmatprep.subr.mxu0 %v3078
    %3195 = vmatpush1.msra.mxu0 %v3077
    %3196 = vmatprep.subr.mxu0 %v3082
    %3197 = vmatpush1.msra.mxu0 %v3081
    %3198 = vmatprep.subr.mxu0 %v3086
    %3199 = vmatpush1.msra.mxu0 %v3085
    %3200 = vmatprep.subr.mxu0 %v3090
    %3201 = vmatpush1.msra.mxu0 %v3089
    %3202 = vmatprep.subr.mxu0 %v3094
    %3203 = vmatpush1.msra.mxu0 %v3093
    %3204 = vmatprep.subr.mxu0 %v3098
    %3205 = vmatpush1.msra.mxu0 %v3097
    %3206 = vmatprep.subr.mxu0 %v3102
    %3207 = vmatpush1.msra.mxu0 %v3101
    %3208 = vmatprep.subr.mxu0 %v3106
    %3209 = vmatpush1.msra.mxu0 %v3105
    %3210 = vmatprep.subr.mxu0 0.0
    %3211 = vmatpush1.msra.mxu0 0.0
    %3212 = vmatprep.subr.mxu0 0.0
    %3213 = vmatpush1.msra.mxu0 0.0
    %3214 = vmatprep.subr.mxu0 0.0
    %3215 = vmatpush1.msra.mxu0 0.0
    %3216 = vmatprep.subr.mxu0 0.0
    %3217 = vmatpush1.msra.mxu0 0.0
    %3218 = vmatprep.subr.mxu0 0.0
    %3219 = vmatpush1.msra.mxu0 0.0
    %3220 = vmatprep.subr.mxu0 0.0
    %3221 = vmatpush1.msra.mxu0 0.0
    %3222 = vmatprep.subr.mxu0 0.0
    %3223 = vmatpush1.msra.mxu0 0.0
    %3224 = vmatprep.subr.mxu0 0.0
    %3225 = vmatpush1.msra.mxu0 0.0
    %3226 = vmatprep.subr.mxu0 0.0
    %3227 = vmatpush1.msra.mxu0 0.0
    %3228 = vmatprep.subr.mxu0 0.0
    %3229 = vmatpush1.msra.mxu0 0.0
    %3230 = vmatprep.subr.mxu0 0.0
    %3231 = vmatpush1.msra.mxu0 0.0
    %3232 = vmatprep.subr.mxu0 0.0
    %3233 = vmatpush1.msra.mxu0 0.0
    %3234 = vmatprep.subr.mxu0 0.0
    %3235 = vmatpush1.msra.mxu0 0.0
    %3236 = vmatprep.subr.mxu0 0.0
    %3237 = vmatpush1.msra.mxu0 0.0
    %3238 = vmatprep.subr.mxu0 0.0
    %3239 = vmatpush1.msra.mxu0 0.0
    %3240 = vmatprep.subr.mxu0 0.0
    %3241 = vmatpush1.msra.mxu0 0.0
    %3242 = vmatprep.mubr.f32.mxu0 0.0
    %3243 = vmatmul.mubr.f32.gmra.mrb[0].mxu0 0.0
    %v3244 = vpop.f32.mrb[0].mxu0
    %v3245 = vadd.f32 0.0, %v3244
    %v3246 = vpop.f32.mrb[0].mxu0
    %v3247 = vadd.f32 0.0, %v3246
    %3248 = vdwg.mxu0
    %v3253 = vcombine.low %v3174, %v3176
    %v3254 = vcombine.low %v3245, %v3247
    %v3256 = vunpack.c.l.s4 1983009808
    %v3257 = vunpack.c.0.s8 %v3256
    %v3258 = vlaneseq
    %v3259 = vshrl.u32 %v3258, 7
    %v3260 = vsub.s32 %v3257, %v3259
    %v3261 = vrot.slane %v3253, %v3260
    %v3263 = vunpack.c.l.s4 1983009808
    %v3264 = vunpack.c.0.s8 %v3263
    %v3265 = vlaneseq
    %v3266 = vshrl.u32 %v3265, 7
    %v3267 = vsub.s32 %v3264, %v3266
    %v3268 = vrot.slane %v3254, %v3267
    %v3269 = vcombine.low %v3261, %v3268
    %v3271 = vadd.f32 %v2995, %v3269
    %v3272 = vxor.u32 %v3271, 2147483648
    %v3273 = vmul.f32 %v3272, 1.442695
    %v3274 = vpow.pop %v3273
    %v3275 = vadd.f32 %v3274, 1.0
    %v3276 = vrcp.pop %v3275
    %v3277 = vmul.f32 1.0, %v3276
    %v3279 = vrot.slane %v3271, 2
    %v3281 = vxor.u32 %v3279, 2147483648
    %v3282 = vmul.f32 %v3281, 1.442695
    %v3283 = vpow.pop %v3282
    %v3284 = vadd.f32 %v3283, 1.0
    %v3285 = vrcp.pop %v3284
    %v3286 = vmul.f32 1.0, %v3285
    %v3287 = vrot.slane %v3271, 4
    %v3289 = vtanh.pop %v3287
    %v3290 = vrot.slane %v3271, 6
    %v3292 = vxor.u32 %v3290, 2147483648
    %v3293 = vmul.f32 %v3292, 1.442695
    %v3294 = vpow.pop %v3293
    %v3295 = vadd.f32 %v3294, 1.0
    %v3296 = vrcp.pop %v3295
    %v3297 = vmul.f32 1.0, %v3296
    %v3298 = vmul.f32 %v3286, 0.0
    %v3299 = vmul.f32 %v3277, %v3289
    %v3300 = vadd.f32 %v3298, %v3299
    %v3301 = vtanh.pop %v3300
    %v3302 = vmul.f32 %v3297, %v3301
    %3303 = vmatprep.subr.mxu0 %v3044
    %3304 = vmatpush1.msra.mxu0 %v3043
    %3305 = vmatprep.subr.mxu0 %v3048
    %3306 = vmatpush1.msra.mxu0 %v3047
    %3307 = vmatprep.subr.mxu0 %v3052
    %3308 = vmatpush1.msra.mxu0 %v3051
    %3309 = vmatprep.subr.mxu0 %v3056
    %3310 = vmatpush1.msra.mxu0 %v3055
    %3311 = vmatprep.subr.mxu0 %v3060
    %3312 = vmatpush1.msra.mxu0 %v3059
    %3313 = vmatprep.subr.mxu0 %v3064
    %3314 = vmatpush1.msra.mxu0 %v3063
    %3315 = vmatprep.subr.mxu0 %v3068
    %3316 = vmatpush1.msra.mxu0 %v3067
    %3317 = vmatprep.subr.mxu0 %v3072
    %3318 = vmatpush1.msra.mxu0 %v3071
    %3319 = vmatprep.subr.mxu0 %v3076
    %3320 = vmatpush1.msra.mxu0 %v3075
    %3321 = vmatprep.subr.mxu0 %v3080
    %3322 = vmatpush1.msra.mxu0 %v3079
    %3323 = vmatprep.subr.mxu0 %v3084
    %3324 = vmatpush1.msra.mxu0 %v3083
    %3325 = vmatprep.subr.mxu0 %v3088
    %3326 = vmatpush1.msra.mxu0 %v3087
    %3327 = vmatprep.subr.mxu0 %v3092
    %3328 = vmatpush1.msra.mxu0 %v3091
    %3329 = vmatprep.subr.mxu0 %v3096
    %3330 = vmatpush1.msra.mxu0 %v3095
    %3331 = vmatprep.subr.mxu0 %v3100
    %3332 = vmatpush1.msra.mxu0 %v3099
    %3333 = vmatprep.subr.mxu0 %v3104
    %3334 = vmatpush1.msra.mxu0 %v3103
    %3335 = vmatprep.subr.mxu0 0.0
    %3336 = vmatpush1.msra.mxu0 0.0
    %3337 = vmatprep.subr.mxu0 0.0
    %3338 = vmatpush1.msra.mxu0 0.0
    %3339 = vmatprep.subr.mxu0 0.0
    %3340 = vmatpush1.msra.mxu0 0.0
    %3341 = vmatprep.subr.mxu0 0.0
    %3342 = vmatpush1.msra.mxu0 0.0
    %3343 = vmatprep.subr.mxu0 0.0
    %3344 = vmatpush1.msra.mxu0 0.0
    %3345 = vmatprep.subr.mxu0 0.0
    %3346 = vmatpush1.msra.mxu0 0.0
    %3347 = vmatprep.subr.mxu0 0.0
    %3348 = vmatpush1.msra.mxu0 0.0
    %3349 = vmatprep.subr.mxu0 0.0
    %3350 = vmatpush1.msra.mxu0 0.0
    %3351 = vmatprep.subr.mxu0 0.0
    %3352 = vmatpush1.msra.mxu0 0.0
    %3353 = vmatprep.subr.mxu0 0.0
    %3354 = vmatpush1.msra.mxu0 0.0
    %3355 = vmatprep.subr.mxu0 0.0
    %3356 = vmatpush1.msra.mxu0 0.0
    %3357 = vmatprep.subr.mxu0 0.0
    %3358 = vmatpush1.msra.mxu0 0.0
    %3359 = vmatprep.subr.mxu0 0.0
    %3360 = vmatpush1.msra.mxu0 0.0
    %3361 = vmatprep.subr.mxu0 0.0
    %3362 = vmatpush1.msra.mxu0 0.0
    %3363 = vmatprep.subr.mxu0 0.0
    %3364 = vmatpush1.msra.mxu0 0.0
    %3365 = vmatprep.subr.mxu0 0.0
    %3366 = vmatpush1.msra.mxu0 0.0
    %3367 = vmatprep.mubr.f32.mxu0 0.0
    %3368 = vmatmul.mubr.f32.gmra.mrb[0].mxu0 %v3302
    %v3369 = vpop.f32.mrb[0].mxu0
    %v3370 = vadd.f32 0.0, %v3369
    %v3371 = vpop.f32.mrb[0].mxu0
    %v3372 = vadd.f32 0.0, %v3371
    %3373 = vdwg.mxu0
    %3374 = vmatprep.subr.mxu0 %v3046
    %3375 = vmatpush1.msra.mxu0 %v3045
    %3376 = vmatprep.subr.mxu0 %v3050
    %3377 = vmatpush1.msra.mxu0 %v3049
    %3378 = vmatprep.subr.mxu0 %v3054
    %3379 = vmatpush1.msra.mxu0 %v3053
    %3380 = vmatprep.subr.mxu0 %v3058
    %3381 = vmatpush1.msra.mxu0 %v3057
    %3382 = vmatprep.subr.mxu0 %v3062
    %3383 = vmatpush1.msra.mxu0 %v3061
    %3384 = vmatprep.subr.mxu0 %v3066
    %3385 = vmatpush1.msra.mxu0 %v3065
    %3386 = vmatprep.subr.mxu0 %v3070
    %3387 = vmatpush1.msra.mxu0 %v3069
    %3388 = vmatprep.subr.mxu0 %v3074
    %3389 = vmatpush1.msra.mxu0 %v3073
    %3390 = vmatprep.subr.mxu0 %v3078
    %3391 = vmatpush1.msra.mxu0 %v3077
    %3392 = vmatprep.subr.mxu0 %v3082
    %3393 = vmatpush1.msra.mxu0 %v3081
    %3394 = vmatprep.subr.mxu0 %v3086
    %3395 = vmatpush1.msra.mxu0 %v3085
    %3396 = vmatprep.subr.mxu0 %v3090
    %3397 = vmatpush1.msra.mxu0 %v3089
    %3398 = vmatprep.subr.mxu0 %v3094
    %3399 = vmatpush1.msra.mxu0 %v3093
    %3400 = vmatprep.subr.mxu0 %v3098
    %3401 = vmatpush1.msra.mxu0 %v3097
    %3402 = vmatprep.subr.mxu0 %v3102
    %3403 = vmatpush1.msra.mxu0 %v3101
    %3404 = vmatprep.subr.mxu0 %v3106
    %3405 = vmatpush1.msra.mxu0 %v3105
    %3406 = vmatprep.subr.mxu0 0.0
    %3407 = vmatpush1.msra.mxu0 0.0
    %3408 = vmatprep.subr.mxu0 0.0
    %3409 = vmatpush1.msra.mxu0 0.0
    %3410 = vmatprep.subr.mxu0 0.0
    %3411 = vmatpush1.msra.mxu0 0.0
    %3412 = vmatprep.subr.mxu0 0.0
    %3413 = vmatpush1.msra.mxu0 0.0
    %3414 = vmatprep.subr.mxu0 0.0
    %3415 = vmatpush1.msra.mxu0 0.0
    %3416 = vmatprep.subr.mxu0 0.0
    %3417 = vmatpush1.msra.mxu0 0.0
    %3418 = vmatprep.subr.mxu0 0.0
    %3419 = vmatpush1.msra.mxu0 0.0
    %3420 = vmatprep.subr.mxu0 0.0
    %3421 = vmatpush1.msra.mxu0 0.0
    %3422 = vmatprep.subr.mxu0 0.0
    %3423 = vmatpush1.msra.mxu0 0.0
    %3424 = vmatprep.subr.mxu0 0.0
    %3425 = vmatpush1.msra.mxu0 0.0
    %3426 = vmatprep.subr.mxu0 0.0
    %3427 = vmatpush1.msra.mxu0 0.0
    %3428 = vmatprep.subr.mxu0 0.0
    %3429 = vmatpush1.msra.mxu0 0.0
    %3430 = vmatprep.subr.mxu0 0.0
    %3431 = vmatpush1.msra.mxu0 0.0
    %3432 = vmatprep.subr.mxu0 0.0
    %3433 = vmatpush1.msra.mxu0 0.0
    %3434 = vmatprep.subr.mxu0 0.0
    %3435 = vmatpush1.msra.mxu0 0.0
    %3436 = vmatprep.subr.mxu0 0.0
    %3437 = vmatpush1.msra.mxu0 0.0
    %3438 = vmatprep.mubr.f32.mxu0 0.0
    %3439 = vmatmul.mubr.f32.gmra.mrb[0].mxu0 %v3302
    %v3440 = vpop.f32.mrb[0].mxu0
    %v3441 = vadd.f32 0.0, %v3440
    %v3442 = vpop.f32.mrb[0].mxu0
    %v3443 = vadd.f32 0.0, %v3442
    %3444 = vdwg.mxu0
    %v3449 = vcombine.low %v3370, %v3372
    %v3450 = vcombine.low %v3441, %v3443
    %v3452 = vunpack.c.l.s4 1983009808
    %v3453 = vunpack.c.0.s8 %v3452
    %v3454 = vlaneseq
    %v3455 = vshrl.u32 %v3454, 7
    %v3456 = vsub.s32 %v3453, %v3455
    %v3457 = vrot.slane %v3449, %v3456
    %v3459 = vunpack.c.l.s4 1983009808
    %v3460 = vunpack.c.0.s8 %v3459
    %v3461 = vlaneseq
    %v3462 = vshrl.u32 %v3461, 7
    %v3463 = vsub.s32 %v3460, %v3462
    %v3464 = vrot.slane %v3450, %v3463
    %v3465 = vcombine.low %v3457, %v3464
    %v3467 = vadd.f32 %v2996, %v3465
    %v3468 = vxor.u32 %v3467, 2147483648
    %v3469 = vmul.f32 %v3468, 1.442695
    %v3470 = vpow.pop %v3469
    %v3471 = vadd.f32 %v3470, 1.0
    %v3472 = vrcp.pop %v3471
    %v3473 = vmul.f32 1.0, %v3472
    %v3475 = vrot.slane %v3467, 2
    %v3477 = vxor.u32 %v3475, 2147483648
    %v3478 = vmul.f32 %v3477, 1.442695
    %v3479 = vpow.pop %v3478
    %v3480 = vadd.f32 %v3479, 1.0
    %v3481 = vrcp.pop %v3480
    %v3482 = vmul.f32 1.0, %v3481
    %v3483 = vrot.slane %v3467, 4
    %v3485 = vtanh.pop %v3483
    %v3486 = vrot.slane %v3467, 6
    %v3488 = vxor.u32 %v3486, 2147483648
    %v3489 = vmul.f32 %v3488, 1.442695
    %v3490 = vpow.pop %v3489
    %v3491 = vadd.f32 %v3490, 1.0
    %v3492 = vrcp.pop %v3491
    %v3493 = vmul.f32 1.0, %v3492
    %v3494 = vmul.f32 %v3482, %v3300
    %v3495 = vmul.f32 %v3473, %v3485
    %v3496 = vadd.f32 %v3494, %v3495
    %v3497 = vtanh.pop %v3496
    %v3498 = vmul.f32 %v3493, %v3497
    %3499 = vmatprep.subr.mxu0 %v3044
    %3500 = vmatpush1.msra.mxu0 %v3043
    %3501 = vmatprep.subr.mxu0 %v3048
    %3502 = vmatpush1.msra.mxu0 %v3047
    %3503 = vmatprep.subr.mxu0 %v3052
    %3504 = vmatpush1.msra.mxu0 %v3051
    %3505 = vmatprep.subr.mxu0 %v3056
    %3506 = vmatpush1.msra.mxu0 %v3055
    %3507 = vmatprep.subr.mxu0 %v3060
    %3508 = vmatpush1.msra.mxu0 %v3059
    %3509 = vmatprep.subr.mxu0 %v3064
    %3510 = vmatpush1.msra.mxu0 %v3063
    %3511 = vmatprep.subr.mxu0 %v3068
    %3512 = vmatpush1.msra.mxu0 %v3067
    %3513 = vmatprep.subr.mxu0 %v3072
    %3514 = vmatpush1.msra.mxu0 %v3071
    %3515 = vmatprep.subr.mxu0 %v3076
    %3516 = vmatpush1.msra.mxu0 %v3075
    %3517 = vmatprep.subr.mxu0 %v3080
    %3518 = vmatpush1.msra.mxu0 %v3079
    %3519 = vmatprep.subr.mxu0 %v3084
    %3520 = vmatpush1.msra.mxu0 %v3083
    %3521 = vmatprep.subr.mxu0 %v3088
    %3522 = vmatpush1.msra.mxu0 %v3087
    %3523 = vmatprep.subr.mxu0 %v3092
    %3524 = vmatpush1.msra.mxu0 %v3091
    %3525 = vmatprep.subr.mxu0 %v3096
    %3526 = vmatpush1.msra.mxu0 %v3095
    %3527 = vmatprep.subr.mxu0 %v3100
    %3528 = vmatpush1.msra.mxu0 %v3099
    %3529 = vmatprep.subr.mxu0 %v3104
    %3530 = vmatpush1.msra.mxu0 %v3103
    %3531 = vmatprep.subr.mxu0 0.0
    %3532 = vmatpush1.msra.mxu0 0.0
    %3533 = vmatprep.subr.mxu0 0.0
    %3534 = vmatpush1.msra.mxu0 0.0
    %3535 = vmatprep.subr.mxu0 0.0
    %3536 = vmatpush1.msra.mxu0 0.0
    %3537 = vmatprep.subr.mxu0 0.0
    %3538 = vmatpush1.msra.mxu0 0.0
    %3539 = vmatprep.subr.mxu0 0.0
    %3540 = vmatpush1.msra.mxu0 0.0
    %3541 = vmatprep.subr.mxu0 0.0
    %3542 = vmatpush1.msra.mxu0 0.0
    %3543 = vmatprep.subr.mxu0 0.0
    %3544 = vmatpush1.msra.mxu0 0.0
    %3545 = vmatprep.subr.mxu0 0.0
    %3546 = vmatpush1.msra.mxu0 0.0
    %3547 = vmatprep.subr.mxu0 0.0
    %3548 = vmatpush1.msra.mxu0 0.0
    %3549 = vmatprep.subr.mxu0 0.0
    %3550 = vmatpush1.msra.mxu0 0.0
    %3551 = vmatprep.subr.mxu0 0.0
    %3552 = vmatpush1.msra.mxu0 0.0
    %3553 = vmatprep.subr.mxu0 0.0
    %3554 = vmatpush1.msra.mxu0 0.0
    %3555 = vmatprep.subr.mxu0 0.0
    %3556 = vmatpush1.msra.mxu0 0.0
    %3557 = vmatprep.subr.mxu0 0.0
    %3558 = vmatpush1.msra.mxu0 0.0
    %3559 = vmatprep.subr.mxu0 0.0
    %3560 = vmatpush1.msra.mxu0 0.0
    %3561 = vmatprep.subr.mxu0 0.0
    %3562 = vmatpush1.msra.mxu0 0.0
    %3563 = vmatprep.mubr.f32.mxu0 0.0
    %3564 = vmatmul.mubr.f32.gmra.mrb[0].mxu0 %v3498
    %v3565 = vpop.f32.mrb[0].mxu0
    %v3566 = vadd.f32 0.0, %v3565
    %v3567 = vpop.f32.mrb[0].mxu0
    %v3568 = vadd.f32 0.0, %v3567
    %3569 = vdwg.mxu0
    %3570 = vmatprep.subr.mxu0 %v3046
    %3571 = vmatpush1.msra.mxu0 %v3045
    %3572 = vmatprep.subr.mxu0 %v3050
    %3573 = vmatpush1.msra.mxu0 %v3049
    %3574 = vmatprep.subr.mxu0 %v3054
    %3575 = vmatpush1.msra.mxu0 %v3053
    %3576 = vmatprep.subr.mxu0 %v3058
    %3577 = vmatpush1.msra.mxu0 %v3057
    %3578 = vmatprep.subr.mxu0 %v3062
    %3579 = vmatpush1.msra.mxu0 %v3061
    %3580 = vmatprep.subr.mxu0 %v3066
    %3581 = vmatpush1.msra.mxu0 %v3065
    %3582 = vmatprep.subr.mxu0 %v3070
    %3583 = vmatpush1.msra.mxu0 %v3069
    %3584 = vmatprep.subr.mxu0 %v3074
    %3585 = vmatpush1.msra.mxu0 %v3073
    %3586 = vmatprep.subr.mxu0 %v3078
    %3587 = vmatpush1.msra.mxu0 %v3077
    %3588 = vmatprep.subr.mxu0 %v3082
    %3589 = vmatpush1.msra.mxu0 %v3081
    %3590 = vmatprep.subr.mxu0 %v3086
    %3591 = vmatpush1.msra.mxu0 %v3085
    %3592 = vmatprep.subr.mxu0 %v3090
    %3593 = vmatpush1.msra.mxu0 %v3089
    %3594 = vmatprep.subr.mxu0 %v3094
    %3595 = vmatpush1.msra.mxu0 %v3093
    %3596 = vmatprep.subr.mxu0 %v3098
    %3597 = vmatpush1.msra.mxu0 %v3097
    %3598 = vmatprep.subr.mxu0 %v3102
    %3599 = vmatpush1.msra.mxu0 %v3101
    %3600 = vmatprep.subr.mxu0 %v3106
    %3601 = vmatpush1.msra.mxu0 %v3105
    %3602 = vmatprep.subr.mxu0 0.0
    %3603 = vmatpush1.msra.mxu0 0.0
    %3604 = vmatprep.subr.mxu0 0.0
    %3605 = vmatpush1.msra.mxu0 0.0
    %3606 = vmatprep.subr.mxu0 0.0
    %3607 = vmatpush1.msra.mxu0 0.0
    %3608 = vmatprep.subr.mxu0 0.0
    %3609 = vmatpush1.msra.mxu0 0.0
    %3610 = vmatprep.subr.mxu0 0.0
    %3611 = vmatpush1.msra.mxu0 0.0
    %3612 = vmatprep.subr.mxu0 0.0
    %3613 = vmatpush1.msra.mxu0 0.0
    %3614 = vmatprep.subr.mxu0 0.0
    %3615 = vmatpush1.msra.mxu0 0.0
    %3616 = vmatprep.subr.mxu0 0.0
    %3617 = vmatpush1.msra.mxu0 0.0
    %3618 = vmatprep.subr.mxu0 0.0
    %3619 = vmatpush1.msra.mxu0 0.0
    %3620 = vmatprep.subr.mxu0 0.0
    %3621 = vmatpush1.msra.mxu0 0.0
    %3622 = vmatprep.subr.mxu0 0.0
    %3623 = vmatpush1.msra.mxu0 0.0
    %3624 = vmatprep.subr.mxu0 0.0
    %3625 = vmatpush1.msra.mxu0 0.0
    %3626 = vmatprep.subr.mxu0 0.0
    %3627 = vmatpush1.msra.mxu0 0.0
    %3628 = vmatprep.subr.mxu0 0.0
    %3629 = vmatpush1.msra.mxu0 0.0
    %3630 = vmatprep.subr.mxu0 0.0
    %3631 = vmatpush1.msra.mxu0 0.0
    %3632 = vmatprep.subr.mxu0 0.0
    %3633 = vmatpush1.msra.mxu0 0.0
    %3634 = vmatprep.mubr.f32.mxu0 0.0
    %3635 = vmatmul.mubr.f32.gmra.mrb[0].mxu0 %v3498
    %v3636 = vpop.f32.mrb[0].mxu0
    %v3637 = vadd.f32 0.0, %v3636
    %v3638 = vpop.f32.mrb[0].mxu0
    %v3639 = vadd.f32 0.0, %v3638
    %3640 = vdwg.mxu0
    %v3645 = vcombine.low %v3566, %v3568
    %v3646 = vcombine.low %v3637, %v3639
    %v3648 = vunpack.c.l.s4 1983009808
    %v3649 = vunpack.c.0.s8 %v3648
    %v3650 = vlaneseq
    %v3651 = vshrl.u32 %v3650, 7
    %v3652 = vsub.s32 %v3649, %v3651
    %v3653 = vrot.slane %v3645, %v3652
    %v3655 = vunpack.c.l.s4 1983009808
    %v3656 = vunpack.c.0.s8 %v3655
    %v3657 = vlaneseq
    %v3658 = vshrl.u32 %v3657, 7
    %v3659 = vsub.s32 %v3656, %v3658
    %v3660 = vrot.slane %v3646, %v3659
    %v3661 = vcombine.low %v3653, %v3660
    %v3663 = vadd.f32 %v2997, %v3661
    %v3664 = vxor.u32 %v3663, 2147483648
    %v3665 = vmul.f32 %v3664, 1.442695
    %v3666 = vpow.pop %v3665
    %v3667 = vadd.f32 %v3666, 1.0
    %v3668 = vrcp.pop %v3667
    %v3669 = vmul.f32 1.0, %v3668
    %v3671 = vrot.slane %v3663, 2
    %v3673 = vxor.u32 %v3671, 2147483648
    %v3674 = vmul.f32 %v3673, 1.442695
    %v3675 = vpow.pop %v3674
    %v3676 = vadd.f32 %v3675, 1.0
    %v3677 = vrcp.pop %v3676
    %v3678 = vmul.f32 1.0, %v3677
    %v3679 = vrot.slane %v3663, 4
    %v3681 = vtanh.pop %v3679
    %v3682 = vrot.slane %v3663, 6
    %v3684 = vxor.u32 %v3682, 2147483648
    %v3685 = vmul.f32 %v3684, 1.442695
    %v3686 = vpow.pop %v3685
    %v3687 = vadd.f32 %v3686, 1.0
    %v3688 = vrcp.pop %v3687
    %v3689 = vmul.f32 1.0, %v3688
    %v3690 = vmul.f32 %v3678, %v3496
    %v3691 = vmul.f32 %v3669, %v3681
    %v3692 = vadd.f32 %v3690, %v3691
    %v3693 = vtanh.pop %v3692
    %v3694 = vmul.f32 %v3689, %v3693
    %3695 = vmatprep.subr.mxu0 %v3044
    %3696 = vmatpush1.msra.mxu0 %v3043
    %3697 = vmatprep.subr.mxu0 %v3048
    %3698 = vmatpush1.msra.mxu0 %v3047
    %3699 = vmatprep.subr.mxu0 %v3052
    %3700 = vmatpush1.msra.mxu0 %v3051
    %3701 = vmatprep.subr.mxu0 %v3056
    %3702 = vmatpush1.msra.mxu0 %v3055
    %3703 = vmatprep.subr.mxu0 %v3060
    %3704 = vmatpush1.msra.mxu0 %v3059
    %3705 = vmatprep.subr.mxu0 %v3064
    %3706 = vmatpush1.msra.mxu0 %v3063
    %3707 = vmatprep.subr.mxu0 %v3068
    %3708 = vmatpush1.msra.mxu0 %v3067
    %3709 = vmatprep.subr.mxu0 %v3072
    %3710 = vmatpush1.msra.mxu0 %v3071
    %3711 = vmatprep.subr.mxu0 %v3076
    %3712 = vmatpush1.msra.mxu0 %v3075
    %3713 = vmatprep.subr.mxu0 %v3080
    %3714 = vmatpush1.msra.mxu0 %v3079
    %3715 = vmatprep.subr.mxu0 %v3084
    %3716 = vmatpush1.msra.mxu0 %v3083
    %3717 = vmatprep.subr.mxu0 %v3088
    %3718 = vmatpush1.msra.mxu0 %v3087
    %3719 = vmatprep.subr.mxu0 %v3092
    %3720 = vmatpush1.msra.mxu0 %v3091
    %3721 = vmatprep.subr.mxu0 %v3096
    %3722 = vmatpush1.msra.mxu0 %v3095
    %3723 = vmatprep.subr.mxu0 %v3100
    %3724 = vmatpush1.msra.mxu0 %v3099
    %3725 = vmatprep.subr.mxu0 %v3104
    %3726 = vmatpush1.msra.mxu0 %v3103
    %3727 = vmatprep.subr.mxu0 0.0
    %3728 = vmatpush1.msra.mxu0 0.0
    %3729 = vmatprep.subr.mxu0 0.0
    %3730 = vmatpush1.msra.mxu0 0.0
    %3731 = vmatprep.subr.mxu0 0.0
    %3732 = vmatpush1.msra.mxu0 0.0
    %3733 = vmatprep.subr.mxu0 0.0
    %3734 = vmatpush1.msra.mxu0 0.0
    %3735 = vmatprep.subr.mxu0 0.0
    %3736 = vmatpush1.msra.mxu0 0.0
    %3737 = vmatprep.subr.mxu0 0.0
    %3738 = vmatpush1.msra.mxu0 0.0
    %3739 = vmatprep.subr.mxu0 0.0
    %3740 = vmatpush1.msra.mxu0 0.0
    %3741 = vmatprep.subr.mxu0 0.0
    %3742 = vmatpush1.msra.mxu0 0.0
    %3743 = vmatprep.subr.mxu0 0.0
    %3744 = vmatpush1.msra.mxu0 0.0
    %3745 = vmatprep.subr.mxu0 0.0
    %3746 = vmatpush1.msra.mxu0 0.0
    %3747 = vmatprep.subr.mxu0 0.0
    %3748 = vmatpush1.msra.mxu0 0.0
    %3749 = vmatprep.subr.mxu0 0.0
    %3750 = vmatpush1.msra.mxu0 0.0
    %3751 = vmatprep.subr.mxu0 0.0
    %3752 = vmatpush1.msra.mxu0 0.0
    %3753 = vmatprep.subr.mxu0 0.0
    %3754 = vmatpush1.msra.mxu0 0.0
    %3755 = vmatprep.subr.mxu0 0.0
    %3756 = vmatpush1.msra.mxu0 0.0
    %3757 = vmatprep.subr.mxu0 0.0
    %3758 = vmatpush1.msra.mxu0 0.0
    %3759 = vmatprep.mubr.f32.mxu0 0.0
    %3760 = vmatmul.mubr.f32.gmra.mrb[0].mxu0 %v3694
    %v3761 = vpop.f32.mrb[0].mxu0
    %v3762 = vadd.f32 0.0, %v3761
    %v3763 = vpop.f32.mrb[0].mxu0
    %v3764 = vadd.f32 0.0, %v3763
    %3765 = vdwg.mxu0
    %3766 = vmatprep.subr.mxu0 %v3046
    %3767 = vmatpush1.msra.mxu0 %v3045
    %3768 = vmatprep.subr.mxu0 %v3050
    %3769 = vmatpush1.msra.mxu0 %v3049
    %3770 = vmatprep.subr.mxu0 %v3054
    %3771 = vmatpush1.msra.mxu0 %v3053
    %3772 = vmatprep.subr.mxu0 %v3058
    %3773 = vmatpush1.msra.mxu0 %v3057
    %3774 = vmatprep.subr.mxu0 %v3062
    %3775 = vmatpush1.msra.mxu0 %v3061
    %3776 = vmatprep.subr.mxu0 %v3066
    %3777 = vmatpush1.msra.mxu0 %v3065
    %3778 = vmatprep.subr.mxu0 %v3070
    %3779 = vmatpush1.msra.mxu0 %v3069
    %3780 = vmatprep.subr.mxu0 %v3074
    %3781 = vmatpush1.msra.mxu0 %v3073
    %3782 = vmatprep.subr.mxu0 %v3078
    %3783 = vmatpush1.msra.mxu0 %v3077
    %3784 = vmatprep.subr.mxu0 %v3082
    %3785 = vmatpush1.msra.mxu0 %v3081
    %3786 = vmatprep.subr.mxu0 %v3086
    %3787 = vmatpush1.msra.mxu0 %v3085
    %3788 = vmatprep.subr.mxu0 %v3090
    %3789 = vmatpush1.msra.mxu0 %v3089
    %3790 = vmatprep.subr.mxu0 %v3094
    %3791 = vmatpush1.msra.mxu0 %v3093
    %3792 = vmatprep.subr.mxu0 %v3098
    %3793 = vmatpush1.msra.mxu0 %v3097
    %3794 = vmatprep.subr.mxu0 %v3102
    %3795 = vmatpush1.msra.mxu0 %v3101
    %3796 = vmatprep.subr.mxu0 %v3106
    %3797 = vmatpush1.msra.mxu0 %v3105
    %3798 = vmatprep.subr.mxu0 0.0
    %3799 = vmatpush1.msra.mxu0 0.0
    %3800 = vmatprep.subr.mxu0 0.0
    %3801 = vmatpush1.msra.mxu0 0.0
    %3802 = vmatprep.subr.mxu0 0.0
    %3803 = vmatpush1.msra.mxu0 0.0
    %3804 = vmatprep.subr.mxu0 0.0
    %3805 = vmatpush1.msra.mxu0 0.0
    %3806 = vmatprep.subr.mxu0 0.0
    %3807 = vmatpush1.msra.mxu0 0.0
    %3808 = vmatprep.subr.mxu0 0.0
    %3809 = vmatpush1.msra.mxu0 0.0
    %3810 = vmatprep.subr.mxu0 0.0
    %3811 = vmatpush1.msra.mxu0 0.0
    %3812 = vmatprep.subr.mxu0 0.0
    %3813 = vmatpush1.msra.mxu0 0.0
    %3814 = vmatprep.subr.mxu0 0.0
    %3815 = vmatpush1.msra.mxu0 0.0
    %3816 = vmatprep.subr.mxu0 0.0
    %3817 = vmatpush1.msra.mxu0 0.0
    %3818 = vmatprep.subr.mxu0 0.0
    %3819 = vmatpush1.msra.mxu0 0.0
    %3820 = vmatprep.subr.mxu0 0.0
    %3821 = vmatpush1.msra.mxu0 0.0
    %3822 = vmatprep.subr.mxu0 0.0
    %3823 = vmatpush1.msra.mxu0 0.0
    %3824 = vmatprep.subr.mxu0 0.0
    %3825 = vmatpush1.msra.mxu0 0.0
    %3826 = vmatprep.subr.mxu0 0.0
    %3827 = vmatpush1.msra.mxu0 0.0
    %3828 = vmatprep.subr.mxu0 0.0
    %3829 = vmatpush1.msra.mxu0 0.0
    %3830 = vmatprep.mubr.f32.mxu0 0.0
    %3831 = vmatmul.mubr.f32.gmra.mrb[0].mxu0 %v3694
    %v3832 = vpop.f32.mrb[0].mxu0
    %v3833 = vadd.f32 0.0, %v3832
    %v3834 = vpop.f32.mrb[0].mxu0
    %v3835 = vadd.f32 0.0, %v3834
    %3836 = vdwg.mxu0
    %v3841 = vcombine.low %v3762, %v3764
    %v3842 = vcombine.low %v3833, %v3835
    %v3844 = vunpack.c.l.s4 1983009808
    %v3845 = vunpack.c.0.s8 %v3844
    %v3846 = vlaneseq
    %v3847 = vshrl.u32 %v3846, 7
    %v3848 = vsub.s32 %v3845, %v3847
    %v3849 = vrot.slane %v3841, %v3848
    %v3851 = vunpack.c.l.s4 1983009808
    %v3852 = vunpack.c.0.s8 %v3851
    %v3853 = vlaneseq
    %v3854 = vshrl.u32 %v3853, 7
    %v3855 = vsub.s32 %v3852, %v3854
    %v3856 = vrot.slane %v3842, %v3855
    %v3857 = vcombine.low %v3849, %v3856
    %v3859 = vadd.f32 %v2998, %v3857
    %v3860 = vxor.u32 %v3859, 2147483648
    %v3861 = vmul.f32 %v3860, 1.442695
    %v3862 = vpow.pop %v3861
    %v3863 = vadd.f32 %v3862, 1.0
    %v3864 = vrcp.pop %v3863
    %v3865 = vmul.f32 1.0, %v3864
    %v3867 = vrot.slane %v3859, 2
    %v3869 = vxor.u32 %v3867, 2147483648
    %v3870 = vmul.f32 %v3869, 1.442695
    %v3871 = vpow.pop %v3870
    %v3872 = vadd.f32 %v3871, 1.0
    %v3873 = vrcp.pop %v3872
    %v3874 = vmul.f32 1.0, %v3873
    %v3875 = vrot.slane %v3859, 4
    %v3877 = vtanh.pop %v3875
    %v3878 = vrot.slane %v3859, 6
    %v3880 = vxor.u32 %v3878, 2147483648
    %v3881 = vmul.f32 %v3880, 1.442695
    %v3882 = vpow.pop %v3881
    %v3883 = vadd.f32 %v3882, 1.0
    %v3884 = vrcp.pop %v3883
    %v3885 = vmul.f32 1.0, %v3884
    %v3886 = vmul.f32 %v3874, %v3692
    %v3887 = vmul.f32 %v3865, %v3877
    %v3888 = vadd.f32 %v3886, %v3887
    %v3889 = vtanh.pop %v3888
    %v3890 = vmul.f32 %v3885, %v3889
    %3891 = vmatprep.subr.mxu0 %v3044
    %3892 = vmatpush1.msra.mxu0 %v3043
    %3893 = vmatprep.subr.mxu0 %v3048
    %3894 = vmatpush1.msra.mxu0 %v3047
    %3895 = vmatprep.subr.mxu0 %v3052
    %3896 = vmatpush1.msra.mxu0 %v3051
    %3897 = vmatprep.subr.mxu0 %v3056
    %3898 = vmatpush1.msra.mxu0 %v3055
    %3899 = vmatprep.subr.mxu0 %v3060
    %3900 = vmatpush1.msra.mxu0 %v3059
    %3901 = vmatprep.subr.mxu0 %v3064
    %3902 = vmatpush1.msra.mxu0 %v3063
    %3903 = vmatprep.subr.mxu0 %v3068
    %3904 = vmatpush1.msra.mxu0 %v3067
    %3905 = vmatprep.subr.mxu0 %v3072
    %3906 = vmatpush1.msra.mxu0 %v3071
    %3907 = vmatprep.subr.mxu0 %v3076
    %3908 = vmatpush1.msra.mxu0 %v3075
    %3909 = vmatprep.subr.mxu0 %v3080
    %3910 = vmatpush1.msra.mxu0 %v3079
    %3911 = vmatprep.subr.mxu0 %v3084
    %3912 = vmatpush1.msra.mxu0 %v3083
    %3913 = vmatprep.subr.mxu0 %v3088
    %3914 = vmatpush1.msra.mxu0 %v3087
    %3915 = vmatprep.subr.mxu0 %v3092
    %3916 = vmatpush1.msra.mxu0 %v3091
    %3917 = vmatprep.subr.mxu0 %v3096
    %3918 = vmatpush1.msra.mxu0 %v3095
    %3919 = vmatprep.subr.mxu0 %v3100
    %3920 = vmatpush1.msra.mxu0 %v3099
    %3921 = vmatprep.subr.mxu0 %v3104
    %3922 = vmatpush1.msra.mxu0 %v3103
    %3923 = vmatprep.subr.mxu0 0.0
    %3924 = vmatpush1.msra.mxu0 0.0
    %3925 = vmatprep.subr.mxu0 0.0
    %3926 = vmatpush1.msra.mxu0 0.0
    %3927 = vmatprep.subr.mxu0 0.0
    %3928 = vmatpush1.msra.mxu0 0.0
    %3929 = vmatprep.subr.mxu0 0.0
    %3930 = vmatpush1.msra.mxu0 0.0
    %3931 = vmatprep.subr.mxu0 0.0
    %3932 = vmatpush1.msra.mxu0 0.0
    %3933 = vmatprep.subr.mxu0 0.0
    %3934 = vmatpush1.msra.mxu0 0.0
    %3935 = vmatprep.subr.mxu0 0.0
    %3936 = vmatpush1.msra.mxu0 0.0
    %3937 = vmatprep.subr.mxu0 0.0
    %3938 = vmatpush1.msra.mxu0 0.0
    %3939 = vmatprep.subr.mxu0 0.0
    %3940 = vmatpush1.msra.mxu0 0.0
    %3941 = vmatprep.subr.mxu0 0.0
    %3942 = vmatpush1.msra.mxu0 0.0
    %3943 = vmatprep.subr.mxu0 0.0
    %3944 = vmatpush1.msra.mxu0 0.0
    %3945 = vmatprep.subr.mxu0 0.0
    %3946 = vmatpush1.msra.mxu0 0.0
    %3947 = vmatprep.subr.mxu0 0.0
    %3948 = vmatpush1.msra.mxu0 0.0
    %3949 = vmatprep.subr.mxu0 0.0
    %3950 = vmatpush1.msra.mxu0 0.0
    %3951 = vmatprep.subr.mxu0 0.0
    %3952 = vmatpush1.msra.mxu0 0.0
    %3953 = vmatprep.subr.mxu0 0.0
    %3954 = vmatpush1.msra.mxu0 0.0
    %3955 = vmatprep.mubr.f32.mxu0 0.0
    %3956 = vmatmul.mubr.f32.gmra.mrb[0].mxu0 %v3890
    %v3957 = vpop.f32.mrb[0].mxu0
    %v3958 = vadd.f32 0.0, %v3957
    %v3959 = vpop.f32.mrb[0].mxu0
    %v3960 = vadd.f32 0.0, %v3959
    %3961 = vdwg.mxu0
    %3962 = vmatprep.subr.mxu0 %v3046
    %3963 = vmatpush1.msra.mxu0 %v3045
    %3964 = vmatprep.subr.mxu0 %v3050
    %3965 = vmatpush1.msra.mxu0 %v3049
    %3966 = vmatprep.subr.mxu0 %v3054
    %3967 = vmatpush1.msra.mxu0 %v3053
    %3968 = vmatprep.subr.mxu0 %v3058
    %3969 = vmatpush1.msra.mxu0 %v3057
    %3970 = vmatprep.subr.mxu0 %v3062
    %3971 = vmatpush1.msra.mxu0 %v3061
    %3972 = vmatprep.subr.mxu0 %v3066
    %3973 = vmatpush1.msra.mxu0 %v3065
    %3974 = vmatprep.subr.mxu0 %v3070
    %3975 = vmatpush1.msra.mxu0 %v3069
    %3976 = vmatprep.subr.mxu0 %v3074
    %3977 = vmatpush1.msra.mxu0 %v3073
    %3978 = vmatprep.subr.mxu0 %v3078
    %3979 = vmatpush1.msra.mxu0 %v3077
    %3980 = vmatprep.subr.mxu0 %v3082
    %3981 = vmatpush1.msra.mxu0 %v3081
    %3982 = vmatprep.subr.mxu0 %v3086
    %3983 = vmatpush1.msra.mxu0 %v3085
    %3984 = vmatprep.subr.mxu0 %v3090
    %3985 = vmatpush1.msra.mxu0 %v3089
    %3986 = vmatprep.subr.mxu0 %v3094
    %3987 = vmatpush1.msra.mxu0 %v3093
    %3988 = vmatprep.subr.mxu0 %v3098
    %3989 = vmatpush1.msra.mxu0 %v3097
    %3990 = vmatprep.subr.mxu0 %v3102
    %3991 = vmatpush1.msra.mxu0 %v3101
    %3992 = vmatprep.subr.mxu0 %v3106
    %3993 = vmatpush1.msra.mxu0 %v3105
    %3994 = vmatprep.subr.mxu0 0.0
    %3995 = vmatpush1.msra.mxu0 0.0
    %3996 = vmatprep.subr.mxu0 0.0
    %3997 = vmatpush1.msra.mxu0 0.0
    %3998 = vmatprep.subr.mxu0 0.0
    %3999 = vmatpush1.msra.mxu0 0.0
    %4000 = vmatprep.subr.mxu0 0.0
    %4001 = vmatpush1.msra.mxu0 0.0
    %4002 = vmatprep.subr.mxu0 0.0
    %4003 = vmatpush1.msra.mxu0 0.0
    %4004 = vmatprep.subr.mxu0 0.0
    %4005 = vmatpush1.msra.mxu0 0.0
    %4006 = vmatprep.subr.mxu0 0.0
    %4007 = vmatpush1.msra.mxu0 0.0
    %4008 = vmatprep.subr.mxu0 0.0
    %4009 = vmatpush1.msra.mxu0 0.0
    %4010 = vmatprep.subr.mxu0 0.0
    %4011 = vmatpush1.msra.mxu0 0.0
    %4012 = vmatprep.subr.mxu0 0.0
    %4013 = vmatpush1.msra.mxu0 0.0
    %4014 = vmatprep.subr.mxu0 0.0
    %4015 = vmatpush1.msra.mxu0 0.0
    %4016 = vmatprep.subr.mxu0 0.0
    %4017 = vmatpush1.msra.mxu0 0.0
    %4018 = vmatprep.subr.mxu0 0.0
    %4019 = vmatpush1.msra.mxu0 0.0
    %4020 = vmatprep.subr.mxu0 0.0
    %4021 = vmatpush1.msra.mxu0 0.0
    %4022 = vmatprep.subr.mxu0 0.0
    %4023 = vmatpush1.msra.mxu0 0.0
    %4024 = vmatprep.subr.mxu0 0.0
    %4025 = vmatpush1.msra.mxu0 0.0
    %4026 = vmatprep.mubr.f32.mxu0 0.0
    %4027 = vmatmul.mubr.f32.gmra.mrb[0].mxu0 %v3890
    %v4028 = vpop.f32.mrb[0].mxu0
    %v4029 = vadd.f32 0.0, %v4028
    %v4030 = vpop.f32.mrb[0].mxu0
    %v4031 = vadd.f32 0.0, %v4030
    %4032 = vdwg.mxu0
    %v4037 = vcombine.low %v3958, %v3960
    %v4038 = vcombine.low %v4029, %v4031
    %v4040 = vunpack.c.l.s4 1983009808
    %v4041 = vunpack.c.0.s8 %v4040
    %v4042 = vlaneseq
    %v4043 = vshrl.u32 %v4042, 7
    %v4044 = vsub.s32 %v4041, %v4043
    %v4045 = vrot.slane %v4037, %v4044
    %v4047 = vunpack.c.l.s4 1983009808
    %v4048 = vunpack.c.0.s8 %v4047
    %v4049 = vlaneseq
    %v4050 = vshrl.u32 %v4049, 7
    %v4051 = vsub.s32 %v4048, %v4050
    %v4052 = vrot.slane %v4038, %v4051
    %v4053 = vcombine.low %v4045, %v4052
    %v4055 = vadd.f32 %v3031, %v4053
    %v4056 = vxor.u32 %v4055, 2147483648
    %v4057 = vmul.f32 %v4056, 1.442695
    %v4058 = vpow.pop %v4057
    %v4059 = vadd.f32 %v4058, 1.0
    %v4060 = vrcp.pop %v4059
    %v4061 = vmul.f32 1.0, %v4060
    %v4063 = vrot.slane %v4055, 2
    %v4065 = vxor.u32 %v4063, 2147483648
    %v4066 = vmul.f32 %v4065, 1.442695
    %v4067 = vpow.pop %v4066
    %v4068 = vadd.f32 %v4067, 1.0
    %v4069 = vrcp.pop %v4068
    %v4070 = vmul.f32 1.0, %v4069
    %v4071 = vrot.slane %v4055, 4
    %v4073 = vtanh.pop %v4071
    %v4074 = vrot.slane %v4055, 6
    %v4076 = vxor.u32 %v4074, 2147483648
    %v4077 = vmul.f32 %v4076, 1.442695
    %v4078 = vpow.pop %v4077
    %v4079 = vadd.f32 %v4078, 1.0
    %v4080 = vrcp.pop %v4079
    %v4081 = vmul.f32 1.0, %v4080
    %v4082 = vmul.f32 %v4070, %v3888
    %v4083 = vmul.f32 %v4061, %v4073
    %v4084 = vadd.f32 %v4082, %v4083
    %v4085 = vtanh.pop %v4084
    %v4086 = vmul.f32 %v4081, %v4085
    %4087 = vmatprep.subr.mxu0 %v3044
    %4088 = vmatpush1.msra.mxu0 %v3043
    %4089 = vmatprep.subr.mxu0 %v3048
    %4090 = vmatpush1.msra.mxu0 %v3047
    %4091 = vmatprep.subr.mxu0 %v3052
    %4092 = vmatpush1.msra.mxu0 %v3051
    %4093 = vmatprep.subr.mxu0 %v3056
    %4094 = vmatpush1.msra.mxu0 %v3055
    %4095 = vmatprep.subr.mxu0 %v3060
    %4096 = vmatpush1.msra.mxu0 %v3059
    %4097 = vmatprep.subr.mxu0 %v3064
    %4098 = vmatpush1.msra.mxu0 %v3063
    %4099 = vmatprep.subr.mxu0 %v3068
    %4100 = vmatpush1.msra.mxu0 %v3067
    %4101 = vmatprep.subr.mxu0 %v3072
    %4102 = vmatpush1.msra.mxu0 %v3071
    %4103 = vmatprep.subr.mxu0 %v3076
    %4104 = vmatpush1.msra.mxu0 %v3075
    %4105 = vmatprep.subr.mxu0 %v3080
    %4106 = vmatpush1.msra.mxu0 %v3079
    %4107 = vmatprep.subr.mxu0 %v3084
    %4108 = vmatpush1.msra.mxu0 %v3083
    %4109 = vmatprep.subr.mxu0 %v3088
    %4110 = vmatpush1.msra.mxu0 %v3087
    %4111 = vmatprep.subr.mxu0 %v3092
    %4112 = vmatpush1.msra.mxu0 %v3091
    %4113 = vmatprep.subr.mxu0 %v3096
    %4114 = vmatpush1.msra.mxu0 %v3095
    %4115 = vmatprep.subr.mxu0 %v3100
    %4116 = vmatpush1.msra.mxu0 %v3099
    %4117 = vmatprep.subr.mxu0 %v3104
    %4118 = vmatpush1.msra.mxu0 %v3103
    %4119 = vmatprep.subr.mxu0 0.0
    %4120 = vmatpush1.msra.mxu0 0.0
    %4121 = vmatprep.subr.mxu0 0.0
    %4122 = vmatpush1.msra.mxu0 0.0
    %4123 = vmatprep.subr.mxu0 0.0
    %4124 = vmatpush1.msra.mxu0 0.0
    %4125 = vmatprep.subr.mxu0 0.0
    %4126 = vmatpush1.msra.mxu0 0.0
    %4127 = vmatprep.subr.mxu0 0.0
    %4128 = vmatpush1.msra.mxu0 0.0
    %4129 = vmatprep.subr.mxu0 0.0
    %4130 = vmatpush1.msra.mxu0 0.0
    %4131 = vmatprep.subr.mxu0 0.0
    %4132 = vmatpush1.msra.mxu0 0.0
    %4133 = vmatprep.subr.mxu0 0.0
    %4134 = vmatpush1.msra.mxu0 0.0
    %4135 = vmatprep.subr.mxu0 0.0
    %4136 = vmatpush1.msra.mxu0 0.0
    %4137 = vmatprep.subr.mxu0 0.0
    %4138 = vmatpush1.msra.mxu0 0.0
    %4139 = vmatprep.subr.mxu0 0.0
    %4140 = vmatpush1.msra.mxu0 0.0
    %4141 = vmatprep.subr.mxu0 0.0
    %4142 = vmatpush1.msra.mxu0 0.0
    %4143 = vmatprep.subr.mxu0 0.0
    %4144 = vmatpush1.msra.mxu0 0.0
    %4145 = vmatprep.subr.mxu0 0.0
    %4146 = vmatpush1.msra.mxu0 0.0
    %4147 = vmatprep.subr.mxu0 0.0
    %4148 = vmatpush1.msra.mxu0 0.0
    %4149 = vmatprep.subr.mxu0 0.0
    %4150 = vmatpush1.msra.mxu0 0.0
    %4151 = vmatprep.mubr.f32.mxu0 0.0
    %4152 = vmatmul.mubr.f32.gmra.mrb[0].mxu0 %v4086
    %v4153 = vpop.f32.mrb[0].mxu0
    %v4154 = vadd.f32 0.0, %v4153
    %v4155 = vpop.f32.mrb[0].mxu0
    %v4156 = vadd.f32 0.0, %v4155
    %4157 = vdwg.mxu0
    %4158 = vmatprep.subr.mxu0 %v3046
    %4159 = vmatpush1.msra.mxu0 %v3045
    %4160 = vmatprep.subr.mxu0 %v3050
    %4161 = vmatpush1.msra.mxu0 %v3049
    %4162 = vmatprep.subr.mxu0 %v3054
    %4163 = vmatpush1.msra.mxu0 %v3053
    %4164 = vmatprep.subr.mxu0 %v3058
    %4165 = vmatpush1.msra.mxu0 %v3057
    %4166 = vmatprep.subr.mxu0 %v3062
    %4167 = vmatpush1.msra.mxu0 %v3061
    %4168 = vmatprep.subr.mxu0 %v3066
    %4169 = vmatpush1.msra.mxu0 %v3065
    %4170 = vmatprep.subr.mxu0 %v3070
    %4171 = vmatpush1.msra.mxu0 %v3069
    %4172 = vmatprep.subr.mxu0 %v3074
    %4173 = vmatpush1.msra.mxu0 %v3073
    %4174 = vmatprep.subr.mxu0 %v3078
    %4175 = vmatpush1.msra.mxu0 %v3077
    %4176 = vmatprep.subr.mxu0 %v3082
    %4177 = vmatpush1.msra.mxu0 %v3081
    %4178 = vmatprep.subr.mxu0 %v3086
    %4179 = vmatpush1.msra.mxu0 %v3085
    %4180 = vmatprep.subr.mxu0 %v3090
    %4181 = vmatpush1.msra.mxu0 %v3089
    %4182 = vmatprep.subr.mxu0 %v3094
    %4183 = vmatpush1.msra.mxu0 %v3093
    %4184 = vmatprep.subr.mxu0 %v3098
    %4185 = vmatpush1.msra.mxu0 %v3097
    %4186 = vmatprep.subr.mxu0 %v3102
    %4187 = vmatpush1.msra.mxu0 %v3101
    %4188 = vmatprep.subr.mxu0 %v3106
    %4189 = vmatpush1.msra.mxu0 %v3105
    %4190 = vmatprep.subr.mxu0 0.0
    %4191 = vmatpush1.msra.mxu0 0.0
    %4192 = vmatprep.subr.mxu0 0.0
    %4193 = vmatpush1.msra.mxu0 0.0
    %4194 = vmatprep.subr.mxu0 0.0
    %4195 = vmatpush1.msra.mxu0 0.0
    %4196 = vmatprep.subr.mxu0 0.0
    %4197 = vmatpush1.msra.mxu0 0.0
    %4198 = vmatprep.subr.mxu0 0.0
    %4199 = vmatpush1.msra.mxu0 0.0
    %4200 = vmatprep.subr.mxu0 0.0
    %4201 = vmatpush1.msra.mxu0 0.0
    %4202 = vmatprep.subr.mxu0 0.0
    %4203 = vmatpush1.msra.mxu0 0.0
    %4204 = vmatprep.subr.mxu0 0.0
    %4205 = vmatpush1.msra.mxu0 0.0
    %4206 = vmatprep.subr.mxu0 0.0
    %4207 = vmatpush1.msra.mxu0 0.0
    %4208 = vmatprep.subr.mxu0 0.0
    %4209 = vmatpush1.msra.mxu0 0.0
    %4210 = vmatprep.subr.mxu0 0.0
    %4211 = vmatpush1.msra.mxu0 0.0
    %4212 = vmatprep.subr.mxu0 0.0
    %4213 = vmatpush1.msra.mxu0 0.0
    %4214 = vmatprep.subr.mxu0 0.0
    %4215 = vmatpush1.msra.mxu0 0.0
    %4216 = vmatprep.subr.mxu0 0.0
    %4217 = vmatpush1.msra.mxu0 0.0
    %4218 = vmatprep.subr.mxu0 0.0
    %4219 = vmatpush1.msra.mxu0 0.0
    %4220 = vmatprep.subr.mxu0 0.0
    %4221 = vmatpush1.msra.mxu0 0.0
    %4222 = vmatprep.mubr.f32.mxu0 0.0
    %4223 = vmatmul.mubr.f32.gmra.mrb[0].mxu0 %v4086
    %v4224 = vpop.f32.mrb[0].mxu0
    %v4225 = vadd.f32 0.0, %v4224
    %v4226 = vpop.f32.mrb[0].mxu0
    %v4227 = vadd.f32 0.0, %v4226
    %4228 = vdwg.mxu0
    %v4233 = vcombine.low %v4154, %v4156
    %v4234 = vcombine.low %v4225, %v4227
    %v4236 = vunpack.c.l.s4 1983009808
    %v4237 = vunpack.c.0.s8 %v4236
    %v4238 = vlaneseq
    %v4239 = vshrl.u32 %v4238, 7
    %v4240 = vsub.s32 %v4237, %v4239
    %v4241 = vrot.slane %v4233, %v4240
    %v4243 = vunpack.c.l.s4 1983009808
    %v4244 = vunpack.c.0.s8 %v4243
    %v4245 = vlaneseq
    %v4246 = vshrl.u32 %v4245, 7
    %v4247 = vsub.s32 %v4244, %v4246
    %v4248 = vrot.slane %v4234, %v4247
    %v4249 = vcombine.low %v4241, %v4248
    %v4251 = vadd.f32 %v3032, %v4249
    %v4252 = vxor.u32 %v4251, 2147483648
    %v4253 = vmul.f32 %v4252, 1.442695
    %v4254 = vpow.pop %v4253
    %v4255 = vadd.f32 %v4254, 1.0
    %v4256 = vrcp.pop %v4255
    %v4257 = vmul.f32 1.0, %v4256
    %v4259 = vrot.slane %v4251, 2
    %v4261 = vxor.u32 %v4259, 2147483648
    %v4262 = vmul.f32 %v4261, 1.442695
    %v4263 = vpow.pop %v4262
    %v4264 = vadd.f32 %v4263, 1.0
    %v4265 = vrcp.pop %v4264
    %v4266 = vmul.f32 1.0, %v4265
    %v4267 = vrot.slane %v4251, 4
    %v4269 = vtanh.pop %v4267
    %v4270 = vrot.slane %v4251, 6
    %v4272 = vxor.u32 %v4270, 2147483648
    %v4273 = vmul.f32 %v4272, 1.442695
    %v4274 = vpow.pop %v4273
    %v4275 = vadd.f32 %v4274, 1.0
    %v4276 = vrcp.pop %v4275
    %v4277 = vmul.f32 1.0, %v4276
    %v4278 = vmul.f32 %v4266, %v4084
    %v4279 = vmul.f32 %v4257, %v4269
    %v4280 = vadd.f32 %v4278, %v4279
    %v4281 = vtanh.pop %v4280
    %v4282 = vmul.f32 %v4277, %v4281
    %4283 = vmatprep.subr.mxu0 %v3044
    %4284 = vmatpush1.msra.mxu0 %v3043
    %4285 = vmatprep.subr.mxu0 %v3048
    %4286 = vmatpush1.msra.mxu0 %v3047
    %4287 = vmatprep.subr.mxu0 %v3052
    %4288 = vmatpush1.msra.mxu0 %v3051
    %4289 = vmatprep.subr.mxu0 %v3056
    %4290 = vmatpush1.msra.mxu0 %v3055
    %4291 = vmatprep.subr.mxu0 %v3060
    %4292 = vmatpush1.msra.mxu0 %v3059
    %4293 = vmatprep.subr.mxu0 %v3064
    %4294 = vmatpush1.msra.mxu0 %v3063
    %4295 = vmatprep.subr.mxu0 %v3068
    %4296 = vmatpush1.msra.mxu0 %v3067
    %4297 = vmatprep.subr.mxu0 %v3072
    %4298 = vmatpush1.msra.mxu0 %v3071
    %4299 = vmatprep.subr.mxu0 %v3076
    %4300 = vmatpush1.msra.mxu0 %v3075
    %4301 = vmatprep.subr.mxu0 %v3080
    %4302 = vmatpush1.msra.mxu0 %v3079
    %4303 = vmatprep.subr.mxu0 %v3084
    %4304 = vmatpush1.msra.mxu0 %v3083
    %4305 = vmatprep.subr.mxu0 %v3088
    %4306 = vmatpush1.msra.mxu0 %v3087
    %4307 = vmatprep.subr.mxu0 %v3092
    %4308 = vmatpush1.msra.mxu0 %v3091
    %4309 = vmatprep.subr.mxu0 %v3096
    %4310 = vmatpush1.msra.mxu0 %v3095
    %4311 = vmatprep.subr.mxu0 %v3100
    %4312 = vmatpush1.msra.mxu0 %v3099
    %4313 = vmatprep.subr.mxu0 %v3104
    %4314 = vmatpush1.msra.mxu0 %v3103
    %4315 = vmatprep.subr.mxu0 0.0
    %4316 = vmatpush1.msra.mxu0 0.0
    %4317 = vmatprep.subr.mxu0 0.0
    %4318 = vmatpush1.msra.mxu0 0.0
    %4319 = vmatprep.subr.mxu0 0.0
    %4320 = vmatpush1.msra.mxu0 0.0
    %4321 = vmatprep.subr.mxu0 0.0
    %4322 = vmatpush1.msra.mxu0 0.0
    %4323 = vmatprep.subr.mxu0 0.0
    %4324 = vmatpush1.msra.mxu0 0.0
    %4325 = vmatprep.subr.mxu0 0.0
    %4326 = vmatpush1.msra.mxu0 0.0
    %4327 = vmatprep.subr.mxu0 0.0
    %4328 = vmatpush1.msra.mxu0 0.0
    %4329 = vmatprep.subr.mxu0 0.0
    %4330 = vmatpush1.msra.mxu0 0.0
    %4331 = vmatprep.subr.mxu0 0.0
    %4332 = vmatpush1.msra.mxu0 0.0
    %4333 = vmatprep.subr.mxu0 0.0
    %4334 = vmatpush1.msra.mxu0 0.0
    %4335 = vmatprep.subr.mxu0 0.0
    %4336 = vmatpush1.msra.mxu0 0.0
    %4337 = vmatprep.subr.mxu0 0.0
    %4338 = vmatpush1.msra.mxu0 0.0
    %4339 = vmatprep.subr.mxu0 0.0
    %4340 = vmatpush1.msra.mxu0 0.0
    %4341 = vmatprep.subr.mxu0 0.0
    %4342 = vmatpush1.msra.mxu0 0.0
    %4343 = vmatprep.subr.mxu0 0.0
    %4344 = vmatpush1.msra.mxu0 0.0
    %4345 = vmatprep.subr.mxu0 0.0
    %4346 = vmatpush1.msra.mxu0 0.0
    %4347 = vmatprep.mubr.f32.mxu0 0.0
    %4348 = vmatmul.mubr.f32.gmra.mrb[0].mxu0 %v4282
    %v4349 = vpop.f32.mrb[0].mxu0
    %v4350 = vadd.f32 0.0, %v4349
    %v4351 = vpop.f32.mrb[0].mxu0
    %v4352 = vadd.f32 0.0, %v4351
    %4353 = vdwg.mxu0
    %4354 = vmatprep.subr.mxu0 %v3046
    %4355 = vmatpush1.msra.mxu0 %v3045
    %4356 = vmatprep.subr.mxu0 %v3050
    %4357 = vmatpush1.msra.mxu0 %v3049
    %4358 = vmatprep.subr.mxu0 %v3054
    %4359 = vmatpush1.msra.mxu0 %v3053
    %4360 = vmatprep.subr.mxu0 %v3058
    %4361 = vmatpush1.msra.mxu0 %v3057
    %4362 = vmatprep.subr.mxu0 %v3062
    %4363 = vmatpush1.msra.mxu0 %v3061
    %4364 = vmatprep.subr.mxu0 %v3066
    %4365 = vmatpush1.msra.mxu0 %v3065
    %4366 = vmatprep.subr.mxu0 %v3070
    %4367 = vmatpush1.msra.mxu0 %v3069
    %4368 = vmatprep.subr.mxu0 %v3074
    %4369 = vmatpush1.msra.mxu0 %v3073
    %4370 = vmatprep.subr.mxu0 %v3078
    %4371 = vmatpush1.msra.mxu0 %v3077
    %4372 = vmatprep.subr.mxu0 %v3082
    %4373 = vmatpush1.msra.mxu0 %v3081
    %4374 = vmatprep.subr.mxu0 %v3086
    %4375 = vmatpush1.msra.mxu0 %v3085
    %4376 = vmatprep.subr.mxu0 %v3090
    %4377 = vmatpush1.msra.mxu0 %v3089
    %4378 = vmatprep.subr.mxu0 %v3094
    %4379 = vmatpush1.msra.mxu0 %v3093
    %4380 = vmatprep.subr.mxu0 %v3098
    %4381 = vmatpush1.msra.mxu0 %v3097
    %4382 = vmatprep.subr.mxu0 %v3102
    %4383 = vmatpush1.msra.mxu0 %v3101
    %4384 = vmatprep.subr.mxu0 %v3106
    %4385 = vmatpush1.msra.mxu0 %v3105
    %4386 = vmatprep.subr.mxu0 0.0
    %4387 = vmatpush1.msra.mxu0 0.0
    %4388 = vmatprep.subr.mxu0 0.0
    %4389 = vmatpush1.msra.mxu0 0.0
    %4390 = vmatprep.subr.mxu0 0.0
    %4391 = vmatpush1.msra.mxu0 0.0
    %4392 = vmatprep.subr.mxu0 0.0
    %4393 = vmatpush1.msra.mxu0 0.0
    %4394 = vmatprep.subr.mxu0 0.0
    %4395 = vmatpush1.msra.mxu0 0.0
    %4396 = vmatprep.subr.mxu0 0.0
    %4397 = vmatpush1.msra.mxu0 0.0
    %4398 = vmatprep.subr.mxu0 0.0
    %4399 = vmatpush1.msra.mxu0 0.0
    %4400 = vmatprep.subr.mxu0 0.0
    %4401 = vmatpush1.msra.mxu0 0.0
    %4402 = vmatprep.subr.mxu0 0.0
    %4403 = vmatpush1.msra.mxu0 0.0
    %4404 = vmatprep.subr.mxu0 0.0
    %4405 = vmatpush1.msra.mxu0 0.0
    %4406 = vmatprep.subr.mxu0 0.0
    %4407 = vmatpush1.msra.mxu0 0.0
    %4408 = vmatprep.subr.mxu0 0.0
    %4409 = vmatpush1.msra.mxu0 0.0
    %4410 = vmatprep.subr.mxu0 0.0
    %4411 = vmatpush1.msra.mxu0 0.0
    %4412 = vmatprep.subr.mxu0 0.0
    %4413 = vmatpush1.msra.mxu0 0.0
    %4414 = vmatprep.subr.mxu0 0.0
    %4415 = vmatpush1.msra.mxu0 0.0
    %4416 = vmatprep.subr.mxu0 0.0
    %4417 = vmatpush1.msra.mxu0 0.0
    %4418 = vmatprep.mubr.f32.mxu0 0.0
    %4419 = vmatmul.mubr.f32.gmra.mrb[0].mxu0 %v4282
    %v4420 = vpop.f32.mrb[0].mxu0
    %v4421 = vadd.f32 0.0, %v4420
    %v4422 = vpop.f32.mrb[0].mxu0
    %v4423 = vadd.f32 0.0, %v4422
    %4424 = vdwg.mxu0
    %v4429 = vcombine.low %v4350, %v4352
    %v4430 = vcombine.low %v4421, %v4423
    %v4432 = vunpack.c.l.s4 1983009808
    %v4433 = vunpack.c.0.s8 %v4432
    %v4434 = vlaneseq
    %v4435 = vshrl.u32 %v4434, 7
    %v4436 = vsub.s32 %v4433, %v4435
    %v4437 = vrot.slane %v4429, %v4436
    %v4439 = vunpack.c.l.s4 1983009808
    %v4440 = vunpack.c.0.s8 %v4439
    %v4441 = vlaneseq
    %v4442 = vshrl.u32 %v4441, 7
    %v4443 = vsub.s32 %v4440, %v4442
    %v4444 = vrot.slane %v4430, %v4443
    %v4445 = vcombine.low %v4437, %v4444
    %v4447 = vadd.f32 %v3033, %v4445
    %v4448 = vxor.u32 %v4447, 2147483648
    %v4449 = vmul.f32 %v4448, 1.442695
    %v4450 = vpow.pop %v4449
    %v4451 = vadd.f32 %v4450, 1.0
    %v4452 = vrcp.pop %v4451
    %v4453 = vmul.f32 1.0, %v4452
    %v4455 = vrot.slane %v4447, 2
    %v4457 = vxor.u32 %v4455, 2147483648
    %v4458 = vmul.f32 %v4457, 1.442695
    %v4459 = vpow.pop %v4458
    %v4460 = vadd.f32 %v4459, 1.0
    %v4461 = vrcp.pop %v4460
    %v4462 = vmul.f32 1.0, %v4461
    %v4463 = vrot.slane %v4447, 4
    %v4465 = vtanh.pop %v4463
    %v4466 = vrot.slane %v4447, 6
    %v4468 = vxor.u32 %v4466, 2147483648
    %v4469 = vmul.f32 %v4468, 1.442695
    %v4470 = vpow.pop %v4469
    %v4471 = vadd.f32 %v4470, 1.0
    %v4472 = vrcp.pop %v4471
    %v4473 = vmul.f32 1.0, %v4472
    %v4474 = vmul.f32 %v4462, %v4280
    %v4475 = vmul.f32 %v4453, %v4465
    %v4476 = vadd.f32 %v4474, %v4475
    %v4477 = vtanh.pop %v4476
    %v4478 = vmul.f32 %v4473, %v4477
    %4479 = vmatprep.subr.mxu0 %v3044
    %4480 = vmatpush1.msra.mxu0 %v3043
    %4481 = vmatprep.subr.mxu0 %v3048
    %4482 = vmatpush1.msra.mxu0 %v3047
    %4483 = vmatprep.subr.mxu0 %v3052
    %4484 = vmatpush1.msra.mxu0 %v3051
    %4485 = vmatprep.subr.mxu0 %v3056
    %4486 = vmatpush1.msra.mxu0 %v3055
    %4487 = vmatprep.subr.mxu0 %v3060
    %4488 = vmatpush1.msra.mxu0 %v3059
    %4489 = vmatprep.subr.mxu0 %v3064
    %4490 = vmatpush1.msra.mxu0 %v3063
    %4491 = vmatprep.subr.mxu0 %v3068
    %4492 = vmatpush1.msra.mxu0 %v3067
    %4493 = vmatprep.subr.mxu0 %v3072
    %4494 = vmatpush1.msra.mxu0 %v3071
    %4495 = vmatprep.subr.mxu0 %v3076
    %4496 = vmatpush1.msra.mxu0 %v3075
    %4497 = vmatprep.subr.mxu0 %v3080
    %4498 = vmatpush1.msra.mxu0 %v3079
    %4499 = vmatprep.subr.mxu0 %v3084
    %4500 = vmatpush1.msra.mxu0 %v3083
    %4501 = vmatprep.subr.mxu0 %v3088
    %4502 = vmatpush1.msra.mxu0 %v3087
    %4503 = vmatprep.subr.mxu0 %v3092
    %4504 = vmatpush1.msra.mxu0 %v3091
    %4505 = vmatprep.subr.mxu0 %v3096
    %4506 = vmatpush1.msra.mxu0 %v3095
    %4507 = vmatprep.subr.mxu0 %v3100
    %4508 = vmatpush1.msra.mxu0 %v3099
    %4509 = vmatprep.subr.mxu0 %v3104
    %4510 = vmatpush1.msra.mxu0 %v3103
    %4511 = vmatprep.subr.mxu0 0.0
    %4512 = vmatpush1.msra.mxu0 0.0
    %4513 = vmatprep.subr.mxu0 0.0
    %4514 = vmatpush1.msra.mxu0 0.0
    %4515 = vmatprep.subr.mxu0 0.0
    %4516 = vmatpush1.msra.mxu0 0.0
    %4517 = vmatprep.subr.mxu0 0.0
    %4518 = vmatpush1.msra.mxu0 0.0
    %4519 = vmatprep.subr.mxu0 0.0
    %4520 = vmatpush1.msra.mxu0 0.0
    %4521 = vmatprep.subr.mxu0 0.0
    %4522 = vmatpush1.msra.mxu0 0.0
    %4523 = vmatprep.subr.mxu0 0.0
    %4524 = vmatpush1.msra.mxu0 0.0
    %4525 = vmatprep.subr.mxu0 0.0
    %4526 = vmatpush1.msra.mxu0 0.0
    %4527 = vmatprep.subr.mxu0 0.0
    %4528 = vmatpush1.msra.mxu0 0.0
    %4529 = vmatprep.subr.mxu0 0.0
    %4530 = vmatpush1.msra.mxu0 0.0
    %4531 = vmatprep.subr.mxu0 0.0
    %4532 = vmatpush1.msra.mxu0 0.0
    %4533 = vmatprep.subr.mxu0 0.0
    %4534 = vmatpush1.msra.mxu0 0.0
    %4535 = vmatprep.subr.mxu0 0.0
    %4536 = vmatpush1.msra.mxu0 0.0
    %4537 = vmatprep.subr.mxu0 0.0
    %4538 = vmatpush1.msra.mxu0 0.0
    %4539 = vmatprep.subr.mxu0 0.0
    %4540 = vmatpush1.msra.mxu0 0.0
    %4541 = vmatprep.subr.mxu0 0.0
    %4542 = vmatpush1.msra.mxu0 0.0
    %4543 = vmatprep.mubr.f32.mxu0 0.0
    %4544 = vmatmul.mubr.f32.gmra.mrb[0].mxu0 %v4478
    %v4545 = vpop.f32.mrb[0].mxu0
    %v4546 = vadd.f32 0.0, %v4545
    %v4547 = vpop.f32.mrb[0].mxu0
    %v4548 = vadd.f32 0.0, %v4547
    %4549 = vdwg.mxu0
    %4550 = vmatprep.subr.mxu0 %v3046
    %4551 = vmatpush1.msra.mxu0 %v3045
    %4552 = vmatprep.subr.mxu0 %v3050
    %4553 = vmatpush1.msra.mxu0 %v3049
    %4554 = vmatprep.subr.mxu0 %v3054
    %4555 = vmatpush1.msra.mxu0 %v3053
    %4556 = vmatprep.subr.mxu0 %v3058
    %4557 = vmatpush1.msra.mxu0 %v3057
    %4558 = vmatprep.subr.mxu0 %v3062
    %4559 = vmatpush1.msra.mxu0 %v3061
    %4560 = vmatprep.subr.mxu0 %v3066
    %4561 = vmatpush1.msra.mxu0 %v3065
    %4562 = vmatprep.subr.mxu0 %v3070
    %4563 = vmatpush1.msra.mxu0 %v3069
    %4564 = vmatprep.subr.mxu0 %v3074
    %4565 = vmatpush1.msra.mxu0 %v3073
    %4566 = vmatprep.subr.mxu0 %v3078
    %4567 = vmatpush1.msra.mxu0 %v3077
    %4568 = vmatprep.subr.mxu0 %v3082
    %4569 = vmatpush1.msra.mxu0 %v3081
    %4570 = vmatprep.subr.mxu0 %v3086
    %4571 = vmatpush1.msra.mxu0 %v3085
    %4572 = vmatprep.subr.mxu0 %v3090
    %4573 = vmatpush1.msra.mxu0 %v3089
    %4574 = vmatprep.subr.mxu0 %v3094
    %4575 = vmatpush1.msra.mxu0 %v3093
    %4576 = vmatprep.subr.mxu0 %v3098
    %4577 = vmatpush1.msra.mxu0 %v3097
    %4578 = vmatprep.subr.mxu0 %v3102
    %4579 = vmatpush1.msra.mxu0 %v3101
    %4580 = vmatprep.subr.mxu0 %v3106
    %4581 = vmatpush1.msra.mxu0 %v3105
    %4582 = vmatprep.subr.mxu0 0.0
    %4583 = vmatpush1.msra.mxu0 0.0
    %4584 = vmatprep.subr.mxu0 0.0
    %4585 = vmatpush1.msra.mxu0 0.0
    %4586 = vmatprep.subr.mxu0 0.0
    %4587 = vmatpush1.msra.mxu0 0.0
    %4588 = vmatprep.subr.mxu0 0.0
    %4589 = vmatpush1.msra.mxu0 0.0
    %4590 = vmatprep.subr.mxu0 0.0
    %4591 = vmatpush1.msra.mxu0 0.0
    %4592 = vmatprep.subr.mxu0 0.0
    %4593 = vmatpush1.msra.mxu0 0.0
    %4594 = vmatprep.subr.mxu0 0.0
    %4595 = vmatpush1.msra.mxu0 0.0
    %4596 = vmatprep.subr.mxu0 0.0
    %4597 = vmatpush1.msra.mxu0 0.0
    %4598 = vmatprep.subr.mxu0 0.0
    %4599 = vmatpush1.msra.mxu0 0.0
    %4600 = vmatprep.subr.mxu0 0.0
    %4601 = vmatpush1.msra.mxu0 0.0
    %4602 = vmatprep.subr.mxu0 0.0
    %4603 = vmatpush1.msra.mxu0 0.0
    %4604 = vmatprep.subr.mxu0 0.0
    %4605 = vmatpush1.msra.mxu0 0.0
    %4606 = vmatprep.subr.mxu0 0.0
    %4607 = vmatpush1.msra.mxu0 0.0
    %4608 = vmatprep.subr.mxu0 0.0
    %4609 = vmatpush1.msra.mxu0 0.0
    %4610 = vmatprep.subr.mxu0 0.0
    %4611 = vmatpush1.msra.mxu0 0.0
    %4612 = vmatprep.subr.mxu0 0.0
    %4613 = vmatpush1.msra.mxu0 0.0
    %4614 = vmatprep.mubr.f32.mxu0 0.0
    %4615 = vmatmul.mubr.f32.gmra.mrb[0].mxu0 %v4478
    %v4616 = vpop.f32.mrb[0].mxu0
    %v4617 = vadd.f32 0.0, %v4616
    %v4618 = vpop.f32.mrb[0].mxu0
    %v4619 = vadd.f32 0.0, %v4618
    %4620 = vdwg.mxu0
    %v4625 = vcombine.low %v4546, %v4548
    %v4626 = vcombine.low %v4617, %v4619
    %v4628 = vunpack.c.l.s4 1983009808
    %v4629 = vunpack.c.0.s8 %v4628
    %v4630 = vlaneseq
    %v4631 = vshrl.u32 %v4630, 7
    %v4632 = vsub.s32 %v4629, %v4631
    %v4633 = vrot.slane %v4625, %v4632
    %v4635 = vunpack.c.l.s4 1983009808
    %v4636 = vunpack.c.0.s8 %v4635
    %v4637 = vlaneseq
    %v4638 = vshrl.u32 %v4637, 7
    %v4639 = vsub.s32 %v4636, %v4638
    %v4640 = vrot.slane %v4626, %v4639
    %v4641 = vcombine.low %v4633, %v4640
    %v4643 = vadd.f32 %v3034, %v4641
    %v4644 = vxor.u32 %v4643, 2147483648
    %v4645 = vmul.f32 %v4644, 1.442695
    %v4646 = vpow.pop %v4645
    %v4647 = vadd.f32 %v4646, 1.0
    %v4648 = vrcp.pop %v4647
    %v4649 = vmul.f32 1.0, %v4648
    %v4651 = vrot.slane %v4643, 2
    %v4653 = vxor.u32 %v4651, 2147483648
    %v4654 = vmul.f32 %v4653, 1.442695
    %v4655 = vpow.pop %v4654
    %v4656 = vadd.f32 %v4655, 1.0
    %v4657 = vrcp.pop %v4656
    %v4658 = vmul.f32 1.0, %v4657
    %v4659 = vrot.slane %v4643, 4
    %v4661 = vtanh.pop %v4659
    %v4662 = vrot.slane %v4643, 6
    %v4664 = vxor.u32 %v4662, 2147483648
    %v4665 = vmul.f32 %v4664, 1.442695
    %v4666 = vpow.pop %v4665
    %v4667 = vadd.f32 %v4666, 1.0
    %v4668 = vrcp.pop %v4667
    %v4669 = vmul.f32 1.0, %v4668
    %v4670 = vmul.f32 %v4658, %v4476
    %v4671 = vmul.f32 %v4649, %v4661
    %v4672 = vadd.f32 %v4670, %v4671
    %v4673 = vtanh.pop %v4672
    %v4674 = vmul.f32 %v4669, %v4673
    %vm4675 = vcmask 1041408
    %v4676 = vsel %vm4675, %v4674, 0.0
    %v4677 = vrot.slane %v4676, 4
    %v4678 = vadd.f32 %v4676, %v4677
    %v4679 = vrot.slane %v4678, 2
    %v4680 = vadd.f32 %v4678, %v4679
    %v4681 = vrot.slane %v4680, 1
    %v4682 = vadd.f32 %v4680, %v4681
    %v4683 = vrcp.pop 2.0
    %v4684 = vmul.f32 %v4682, %v4683
    %v4685 = vsub.f32 %v4674, %v4684
    %v4686 = vmul.f32 %v4685, %v4685
    %v4687 = vsel %vm4675, %v4686, 0.0
    %v4688 = vrot.slane %v4687, 4
    %v4689 = vadd.f32 %v4687, %v4688
    %v4690 = vrot.slane %v4689, 2
    %v4691 = vadd.f32 %v4689, %v4690
    %v4692 = vrot.slane %v4691, 1
    %v4693 = vadd.f32 %v4691, %v4692
    %v4694 = vmul.f32 %v4693, %v4683
    %v4695 = vadd.f32 %v4694, 1e-05
    %v4696 = vrsqrt.pop %v4695
    %v4697 = vmul.f32 %v4685, %v4696
    %v4698 = vld [vmem:[%s7] sm:$0x1]
    %v4700 = vlaneseq
    %v4701 = vshrl.u32 %v4700, 7
    %v4702 = vsub.s32 0, %v4701
    %v4703 = vrot.slane %v4698, %v4702
    %v4705 = vmul.f32 %v4697, %v4703
    %v4706 = vld [vmem:[%s8] sm:$0x1]
    %v4708 = vlaneseq
    %v4709 = vshrl.u32 %v4708, 7
    %v4710 = vsub.s32 0, %v4709
    %v4711 = vrot.slane %v4706, %v4710
    %v4713 = vadd.f32 %v4705, %v4711
    %v4714 = vld [vmem:[%s9] sm:$0xff]
    %v4715 = vld [vmem:[%s9 + $0x8] sm:$0xff]
    %v4716 = vld [vmem:[%s9 + $0x10] sm:$0xff]
    %v4717 = vld [vmem:[%s9 + $0x18] sm:$0xff]
    %v4718 = vld [vmem:[%s9 + $0x20] sm:$0xff]
    %v4719 = vld [vmem:[%s9 + $0x28] sm:$0xff]
    %v4720 = vld [vmem:[%s9 + $0x30] sm:$0xff]
    %v4721 = vld [vmem:[%s9 + $0x38] sm:$0xff]
    %v4722 = vld [vmem:[%s9 + $0x40] sm:$0xff]
    %v4723 = vld [vmem:[%s9 + $0x48] sm:$0xff]
    %v4724 = vld [vmem:[%s9 + $0x50] sm:$0xff]
    %v4725 = vld [vmem:[%s9 + $0x58] sm:$0xff]
    %v4726 = vld [vmem:[%s9 + $0x60] sm:$0xff]
    %v4727 = vld [vmem:[%s9 + $0x68] sm:$0xff]
    %v4728 = vld [vmem:[%s9 + $0x70] sm:$0xff]
    %v4729 = vld [vmem:[%s9 + $0x78] sm:$0xff]
    %v4730 = vld [vmem:[#allocation3] sm:$0x1]
    %v4732 = vlaneseq
    %v4733 = vshrl.u32 %v4732, 7
    %v4734 = vsub.s32 0, %v4733
    %v4735 = vrot.slane %v4730, %v4734
    %4737 = vmatprep.subr.mxu0 0.0
    %4738 = vmatpush1.msra.mxu0 %v4714
    %4739 = vmatprep.subr.mxu0 0.0
    %4740 = vmatpush1.msra.mxu0 %v4715
    %4741 = vmatprep.subr.mxu0 0.0
    %4742 = vmatpush1.msra.mxu0 %v4716
    %4743 = vmatprep.subr.mxu0 0.0
    %4744 = vmatpush1.msra.mxu0 %v4717
    %4745 = vmatprep.subr.mxu0 0.0
    %4746 = vmatpush1.msra.mxu0 %v4718
    %4747 = vmatprep.subr.mxu0 0.0
    %4748 = vmatpush1.msra.mxu0 %v4719
    %4749 = vmatprep.subr.mxu0 0.0
    %4750 = vmatpush1.msra.mxu0 %v4720
    %4751 = vmatprep.subr.mxu0 0.0
    %4752 = vmatpush1.msra.mxu0 %v4721
    %4753 = vmatprep.subr.mxu0 0.0
    %4754 = vmatpush1.msra.mxu0 %v4722
    %4755 = vmatprep.subr.mxu0 0.0
    %4756 = vmatpush1.msra.mxu0 %v4723
    %4757 = vmatprep.subr.mxu0 0.0
    %4758 = vmatpush1.msra.mxu0 %v4724
    %4759 = vmatprep.subr.mxu0 0.0
    %4760 = vmatpush1.msra.mxu0 %v4725
    %4761 = vmatprep.subr.mxu0 0.0
    %4762 = vmatpush1.msra.mxu0 %v4726
    %4763 = vmatprep.subr.mxu0 0.0
    %4764 = vmatpush1.msra.mxu0 %v4727
    %4765 = vmatprep.subr.mxu0 0.0
    %4766 = vmatpush1.msra.mxu0 %v4728
    %4767 = vmatprep.subr.mxu0 0.0
    %4768 = vmatpush1.msra.mxu0 %v4729
    %4769 = vmatprep.subr.mxu0 0.0
    %4770 = vmatpush1.msra.mxu0 0.0
    %4771 = vmatprep.subr.mxu0 0.0
    %4772 = vmatpush1.msra.mxu0 0.0
    %4773 = vmatprep.subr.mxu0 0.0
    %4774 = vmatpush1.msra.mxu0 0.0
    %4775 = vmatprep.subr.mxu0 0.0
    %4776 = vmatpush1.msra.mxu0 0.0
    %4777 = vmatprep.subr.mxu0 0.0
    %4778 = vmatpush1.msra.mxu0 0.0
    %4779 = vmatprep.subr.mxu0 0.0
    %4780 = vmatpush1.msra.mxu0 0.0
    %4781 = vmatprep.subr.mxu0 0.0
    %4782 = vmatpush1.msra.mxu0 0.0
    %4783 = vmatprep.subr.mxu0 0.0
    %4784 = vmatpush1.msra.mxu0 0.0
    %4785 = vmatprep.subr.mxu0 0.0
    %4786 = vmatpush1.msra.mxu0 0.0
    %4787 = vmatprep.subr.mxu0 0.0
    %4788 = vmatpush1.msra.mxu0 0.0
    %4789 = vmatprep.subr.mxu0 0.0
    %4790 = vmatpush1.msra.mxu0 0.0
    %4791 = vmatprep.subr.mxu0 0.0
    %4792 = vmatpush1.msra.mxu0 0.0
    %4793 = vmatprep.subr.mxu0 0.0
    %4794 = vmatpush1.msra.mxu0 0.0
    %4795 = vmatprep.subr.mxu0 0.0
    %4796 = vmatpush1.msra.mxu0 0.0
    %4797 = vmatprep.subr.mxu0 0.0
    %4798 = vmatpush1.msra.mxu0 0.0
    %4799 = vmatprep.subr.mxu0 0.0
    %4800 = vmatpush1.msra.mxu0 0.0
    %4801 = vmatprep.mubr.f32.mxu0 0.0
    %4802 = vmatmul.mubr.f32.gmra.mrb[0].mxu0 %v4713
    %v4803 = vpop.f32.mrb[0].mxu0
    %v4804 = vadd.f32 %v4735, %v4803
    %v4805 = vpop.f32.mrb[0].mxu0
    %4806 = vdwg.mxu0
    %v4807 = vxor.u32 %v4804, 2147483648
    %v4808 = vmul.f32 %v4807, 1.442695
    %v4809 = vpow.pop %v4808
    %v4810 = vadd.f32 %v4809, 1.0
    %v4811 = vrcp.pop %v4810
    %v4812 = vmul.f32 1.0, %v4811
    %vm4813 = vcmask 1024
    %4814 = vst.msk [vmem:[%s11] sm:$0x3] %vm4813, %v4812
    // Predicated region
    $region58: #{lstm_classifier_forward.1} parent=1 // pred_check
      _
    $region59: #{lstm_classifier_forward.1} parent=1 // pred_check_branch
      %4816 = sbr.rel (0) target = $region61
    $region60: #{lstm_classifier_forward.1} parent=1 // pred_region
      _
    $region61: #{lstm_classifier_forward.1} parent=1 // pred_fallthru
      _
    // Predicated region
    $region62: #{lstm_classifier_forward.1} parent=1 // pred_check
      _
    $region63: #{lstm_classifier_forward.1} parent=1 // pred_check_branch
      %4818 = sbr.rel (0) target = $region65
    $region64: #{lstm_classifier_forward.1} parent=1 // pred_region
      _
    $region65: #{lstm_classifier_forward.1} parent=1 // pred_fallthru
      _
    %4819 = vsyncpa [#allocation5], 1
    %4820 = vsyncpa [#allocation7], 1

</llo_original>
